<compile_context>
chip_gen: v6e
topology: v6e:2x2x1
jax: 0.10.0
libtpu: 0.0.40
codegen_flags: <defaults>
</compile_context>

<pallas_src>
import jax
import jax.numpy as jnp
from jax.experimental import pallas as pl
from jax.experimental.pallas import tpu as pltpu


def _upsample_fused_kernel(x_ref, w_ref, b_ref, e_ref, o_ref):
    # x_ref: (1, Cin, r*W)     input pixels, lanes = r rows of W (lane-dense)
    # w_ref: (4, Cout, Cin)    per-tap weights, tap t = kh*2 + kw
    # b_ref: (Cout, 1)         bias column
    # e_ref: (2, W, 2W)        0/1 lane-dilation matrices E0/E1 (kw interleave)
    # o_ref: (1, Cout, 4*r*W)  output lanes = r chunks of 4W = output rows 2h, 2h+1
    two_w = e_ref.shape[2]
    W = two_w // 2
    r = x_ref.shape[2] // W

    x = x_ref[0]                                            # (Cin, r*W)
    # Channel mixing: one small matmul per (kh, kw) tap. K = Cin, so the MXU has
    # huge slack (the kernel is HBM-bound).  Accumulation stays f32.
    s = [jnp.dot(w_ref[k], x, preferred_element_type=jnp.float32) for k in range(4)]

    e0 = e_ref[0].astype(jnp.float32)                       # (W, 2W): [w, 2w]   = 1
    e1 = e_ref[1].astype(jnp.float32)                       # (W, 2W): [w, 2w+1] = 1
    b = b_ref[...].astype(jnp.float32)                      # (Cout, 1)

    # Per input row j: build the two output rows (2h, 2h+1) already interleaved
    # along kw (via the 0/1 matmuls -> even/odd lanes), concat them into one
    # lane-dense 4W chunk and store it at its final NCHW position.
    for j in range(r):                                      # r is small & static
        lo, hi = j * W, (j + 1) * W
        top = (jnp.dot(s[0][:, lo:hi], e0, preferred_element_type=jnp.float32) +
               jnp.dot(s[1][:, lo:hi], e1, preferred_element_type=jnp.float32))
        bot = (jnp.dot(s[2][:, lo:hi], e0, preferred_element_type=jnp.float32) +
               jnp.dot(s[3][:, lo:hi], e1, preferred_element_type=jnp.float32))
        row_pair = jnp.concatenate([top, bot], axis=-1) + b  # (Cout, 4W)
        o_ref[0, :, j * 4 * W:(j + 1) * 4 * W] = row_pair.astype(o_ref.dtype)


def _pick_row_block(H, W, in_bytes_per_px, out_bytes_per_px,
                    budget_bytes=4 << 20, unroll_cap=64):
    """Largest row-block r s.t. r | H, blocks are tile-legal, and bytes fit budget."""
    best = None
    smallest = None
    for r in range(1, H + 1):
        if H % r:
            continue
        # input lanes r*W must be a multiple of 128 (or full image), output
        # sublane/lane constraints are full-dim and thus always legal.
        if not (r == H or (r % 8 == 0 and (r * W) % 128 == 0)):
            continue
        if smallest is None:
            smallest = r
        blk = r * W * (in_bytes_per_px + out_bytes_per_px)
        if r <= unroll_cap and blk <= budget_bytes:
            best = r
    # TODO(synk): ragged H with a huge image may only admit r == H; shrink via
    # an edge-masked grid if that ever exceeds VMEM.
    return best if best is not None else smallest


def upsample_conv_transpose2d(x, weight, bias, *, compute_dtype=None, out_dtype=None,
                              block_budget_bytes=4 << 20):
    """x: (N, Cin, H, W) NCHW; weight: (Cin, Cout, 2, 2); bias: (Cout,).
    Returns (N, Cout, 2H, 2W), matching nn.ConvTranspose2d(k=(2,2), s=(2,2))."""
    N, Cin, H, W = x.shape
    Cin_w, Cout, KH, KW = weight.shape
    assert Cin == Cin_w and (KH, KW) == (2, 2), "specialized to k=s=(2,2)"
    out_dtype = out_dtype or x.dtype

    if compute_dtype is not None:       # e.g. jnp.bfloat16 halves input HBM read
        x = x.astype(compute_dtype)
        weight = weight.astype(compute_dtype)

    # ---- glue: free reshapes / tiny tensors only (no extra HBM passes) -------
    x_flat = x.reshape(N, Cin, H * W)                                  # free: NCHW view
    w_taps = jnp.transpose(weight, (2, 3, 1, 0)).reshape(KH * KW, Cout, Cin)  # tiny
    b_col = bias.reshape(Cout, 1).astype(jnp.float32)                  # tiny
    lane = jnp.arange(2 * W)[None, :]
    col = jnp.arange(W)[:, None]
    e_mats = jnp.stack([(lane == 2 * col).astype(jnp.float32),         # E0
                        (lane == 2 * col + 1).astype(jnp.float32)], 0)  # E1: (2, W, 2W)

    itemsize_in = jnp.dtype(x_flat.dtype).itemsize
    itemsize_out = jnp.dtype(out_dtype).itemsize
    r = _pick_row_block(H, W, Cin * itemsize_in, KH * KW * Cout * itemsize_out,
                        budget_bytes=block_budget_bytes)
    grid = (N, H // r)   # both axes independent -> megacore-splittable on v7x

    # VMEM: double-buffered x/out blocks + resident small operands + f32 temps.
    blk_bytes = r * W * (Cin * itemsize_in + KH * KW * Cout * itemsize_out)
    interm = KH * KW * Cout * r * W * 4
    small = 2 * (w_taps.size * itemsize_in + b_col.size * 4 + e_mats.size * 4)
    need = 2 * blk_bytes + interm + small + (4 << 20)
    try:
        cap = (pltpu.get_tpu_info().vmem_capacity_bytes * 3) // 4      # v6e ~96M, v7x ~48M
    except Exception:
        cap = 48 << 20                                                 # safe everywhere
    vmem_limit = int(min(cap, max(32 << 20, need)))

    out_flat = pl.pallas_call(
        _upsample_fused_kernel,
        out_shape=jax.ShapeDtypeStruct((N, Cout, KH * KW * H * W), out_dtype),
        grid_spec=pltpu.PrefetchScalarGridSpec(
            num_scalar_prefetch=0,
            grid=grid,
            in_specs=[
                pl.BlockSpec((1, Cin, r * W), lambda n, i: (n, 0, i)),        # x rows
                pl.BlockSpec((KH * KW, Cout, Cin), lambda n, i: (0, 0, 0)),   # weights (resident, tiny)
                pl.BlockSpec((Cout, 1), lambda n, i: (0, 0)),                 # bias
                pl.BlockSpec((2, W, 2 * W), lambda n, i: (0, 0, 0)),          # dilation mats
            ],
            out_specs=pl.BlockSpec((1, Cout, KH * KW * r * W), lambda n, i: (n, 0, i)),
        ),
        compiler_params=pltpu.CompilerParams(
            dimension_semantics=("parallel", "parallel"),
            vmem_limit_bytes=vmem_limit,
        ),
    )(x_flat, w_taps, b_col, e_mats)

    # Free (row-major) reshape: (N, Cout, 4*H*W) == (N, Cout, 2H, 2W) NCHW.
    return out_flat.reshape(N, Cout, H * KH, W * KW)


def _reference(x, weight, bias):
    # pure-JAX reference of ConvTranspose2d(k=s=(2,2)) for the sanity check
    N, Cin, H, W = x.shape
    _, Cout, KH, KW = weight.shape
    y = jnp.einsum("nihw,iokl->nohwkl", x, weight)
    y = jnp.transpose(y, (0, 1, 2, 4, 3, 5)).reshape(N, Cout, H * KH, W * KW)
    return y + bias[None, :, None, None]


if __name__ == "__main__":
    key = jax.random.PRNGKey(0)
    k1, k2, k3 = jax.random.split(key, 3)

    N, Cin, Cout, H, W = 2, 4, 8, 16, 16
    KH, KW = 2, 2

    x = jax.random.normal(k1, (N, Cin, H, W), dtype=jnp.float32)
    # deterministic synthetic params (PyTorch shape convention: (Cin, Cout, KH, KW))
    weight = jax.random.normal(k2, (Cin, Cout, KH, KW), dtype=jnp.float32) * 0.1
    bias = jax.random.normal(k3, (Cout,), dtype=jnp.float32) * 0.1

    out = upsample_conv_transpose2d(x, weight, bias)
    out = jax.block_until_ready(out)

    ref = _reference(x, weight, bias)
    assert out.shape == (N, Cout, H * KH, W * KW), out.shape
    err = float(jnp.max(jnp.abs(out - ref)))
    assert jnp.allclose(out, ref, atol=2e-3, rtol=2e-3), f"mismatch vs reference: {err}"

    print("KERNEL_OK")
</pallas_src>

<mosaic_0001>
module attributes {stable_mosaic.version = 11 : i64} {
  func.func @_upsample_fused_kernel(%arg0: i32, %arg1: i32, %arg2: memref<1x4x256xf32, #tpu.memory_space<vmem>>, %arg3: memref<4x8x4xf32, #tpu.memory_space<vmem>>, %arg4: memref<8x1xf32, #tpu.memory_space<vmem>>, %arg5: memref<2x16x32xf32, #tpu.memory_space<vmem>>, %arg6: memref<1x8x1024xf32, #tpu.memory_space<vmem>>) attributes {dimension_semantics = [#tpu.dimension_semantics<parallel>, #tpu.dimension_semantics<parallel>], iteration_bounds = array<i64: 2, 1>, scalar_prefetch = 0 : i64, scratch_operands = 0 : i64, tpu.core_type = #tpu.core_type<tc>, window_params = [{transform_indices = @transform_0, window_bounds = array<i64: 1, 4, 256>}, {pipeline_mode = #tpu.pipeline_mode<synchronous>, transform_indices = @transform_1, window_bounds = array<i64: 4, 8, 4>}, {pipeline_mode = #tpu.pipeline_mode<synchronous>, transform_indices = @transform_2, window_bounds = array<i64: 8, 1>}, {pipeline_mode = #tpu.pipeline_mode<synchronous>, transform_indices = @transform_3, window_bounds = array<i64: 2, 16, 32>}, {transform_indices = @transform_4, window_bounds = array<i64: 1, 8, 1024>}]} {
    %c0 = arith.constant 0 : index
    %c0_0 = arith.constant 0 : index
    %c0_1 = arith.constant 0 : index
    %0 = vector.load %arg2[%c0, %c0_0, %c0_1] : memref<1x4x256xf32, #tpu.memory_space<vmem>>, vector<1x4x256xf32>
    %1 = vector.shape_cast %0 : vector<1x4x256xf32> to vector<4x256xf32>
    %c0_2 = arith.constant 0 : index
    %c0_3 = arith.constant 0 : index
    %c0_4 = arith.constant 0 : index
    %2 = vector.load %arg3[%c0_2, %c0_3, %c0_4] : memref<4x8x4xf32, #tpu.memory_space<vmem>>, vector<1x8x4xf32>
    %3 = vector.shape_cast %2 : vector<1x8x4xf32> to vector<8x4xf32>
    %cst = arith.constant dense<0.000000e+00> : vector<8x256xf32>
    %4 = tpu.matmul %3, %1, %cst {dimension_numbers = #tpu.dot_dimension_numbers<[1], [0], [0], [1], [0, 0, 1, 1], [], []>} : vector<8x4xf32>, vector<4x256xf32>, vector<8x256xf32> -> vector<8x256xf32>
    %c1 = arith.constant 1 : index
    %c0_5 = arith.constant 0 : index
    %c0_6 = arith.constant 0 : index
    %5 = vector.load %arg3[%c1, %c0_5, %c0_6] : memref<4x8x4xf32, #tpu.memory_space<vmem>>, vector<1x8x4xf32>
    %6 = vector.shape_cast %5 : vector<1x8x4xf32> to vector<8x4xf32>
    %cst_7 = arith.constant dense<0.000000e+00> : vector<8x256xf32>
    %7 = tpu.matmul %6, %1, %cst_7 {dimension_numbers = #tpu.dot_dimension_numbers<[1], [0], [0], [1], [0, 0, 1, 1], [], []>} : vector<8x4xf32>, vector<4x256xf32>, vector<8x256xf32> -> vector<8x256xf32>
    %c2 = arith.constant 2 : index
    %c0_8 = arith.constant 0 : index
    %c0_9 = arith.constant 0 : index
    %8 = vector.load %arg3[%c2, %c0_8, %c0_9] : memref<4x8x4xf32, #tpu.memory_space<vmem>>, vector<1x8x4xf32>
    %9 = vector.shape_cast %8 : vector<1x8x4xf32> to vector<8x4xf32>
    %cst_10 = arith.constant dense<0.000000e+00> : vector<8x256xf32>
    %10 = tpu.matmul %9, %1, %cst_10 {dimension_numbers = #tpu.dot_dimension_numbers<[1], [0], [0], [1], [0, 0, 1, 1], [], []>} : vector<8x4xf32>, vector<4x256xf32>, vector<8x256xf32> -> vector<8x256xf32>
    %c3 = arith.constant 3 : index
    %c0_11 = arith.constant 0 : index
    %c0_12 = arith.constant 0 : index
    %11 = vector.load %arg3[%c3, %c0_11, %c0_12] : memref<4x8x4xf32, #tpu.memory_space<vmem>>, vector<1x8x4xf32>
    %12 = vector.shape_cast %11 : vector<1x8x4xf32> to vector<8x4xf32>
    %cst_13 = arith.constant dense<0.000000e+00> : vector<8x256xf32>
    %13 = tpu.matmul %12, %1, %cst_13 {dimension_numbers = #tpu.dot_dimension_numbers<[1], [0], [0], [1], [0, 0, 1, 1], [], []>} : vector<8x4xf32>, vector<4x256xf32>, vector<8x256xf32> -> vector<8x256xf32>
    %c0_14 = arith.constant 0 : index
    %c0_15 = arith.constant 0 : index
    %c0_16 = arith.constant 0 : index
    %14 = vector.load %arg5[%c0_14, %c0_15, %c0_16] : memref<2x16x32xf32, #tpu.memory_space<vmem>>, vector<1x16x32xf32>
    %15 = vector.shape_cast %14 : vector<1x16x32xf32> to vector<16x32xf32>
    %c1_17 = arith.constant 1 : index
    %c0_18 = arith.constant 0 : index
    %c0_19 = arith.constant 0 : index
    %16 = vector.load %arg5[%c1_17, %c0_18, %c0_19] : memref<2x16x32xf32, #tpu.memory_space<vmem>>, vector<1x16x32xf32>
    %17 = vector.shape_cast %16 : vector<1x16x32xf32> to vector<16x32xf32>
    %c0_20 = arith.constant 0 : index
    %c0_21 = arith.constant 0 : index
    %18 = vector.load %arg4[%c0_20, %c0_21] : memref<8x1xf32, #tpu.memory_space<vmem>>, vector<8x1xf32>
    %19 = vector.extract_strided_slice %4 {offsets = [0, 0], sizes = [8, 16], strides = [1, 1]} : vector<8x256xf32> to vector<8x16xf32>
    %cst_22 = arith.constant dense<0.000000e+00> : vector<8x32xf32>
    %20 = tpu.matmul %19, %15, %cst_22 {dimension_numbers = #tpu.dot_dimension_numbers<[1], [0], [0], [1], [0, 0, 1, 1], [], []>} : vector<8x16xf32>, vector<16x32xf32>, vector<8x32xf32> -> vector<8x32xf32>
    %21 = vector.extract_strided_slice %7 {offsets = [0, 0], sizes = [8, 16], strides = [1, 1]} : vector<8x256xf32> to vector<8x16xf32>
    %cst_23 = arith.constant dense<0.000000e+00> : vector<8x32xf32>
    %22 = tpu.matmul %21, %17, %cst_23 {dimension_numbers = #tpu.dot_dimension_numbers<[1], [0], [0], [1], [0, 0, 1, 1], [], []>} : vector<8x16xf32>, vector<16x32xf32>, vector<8x32xf32> -> vector<8x32xf32>
    %23 = arith.addf %20, %22 : vector<8x32xf32>
    %24 = vector.extract_strided_slice %10 {offsets = [0, 0], sizes = [8, 16], strides = [1, 1]} : vector<8x256xf32> to vector<8x16xf32>
    %cst_24 = arith.constant dense<0.000000e+00> : vector<8x32xf32>
    %25 = tpu.matmul %24, %15, %cst_24 {dimension_numbers = #tpu.dot_dimension_numbers<[1], [0], [0], [1], [0, 0, 1, 1], [], []>} : vector<8x16xf32>, vector<16x32xf32>, vector<8x32xf32> -> vector<8x32xf32>
    %26 = vector.extract_strided_slice %13 {offsets = [0, 0], sizes = [8, 16], strides = [1, 1]} : vector<8x256xf32> to vector<8x16xf32>
    %cst_25 = arith.constant dense<0.000000e+00> : vector<8x32xf32>
    %27 = tpu.matmul %26, %17, %cst_25 {dimension_numbers = #tpu.dot_dimension_numbers<[1], [0], [0], [1], [0, 0, 1, 1], [], []>} : vector<8x16xf32>, vector<16x32xf32>, vector<8x32xf32> -> vector<8x32xf32>
    %28 = arith.addf %25, %27 : vector<8x32xf32>
    %29 = tpu.concatenate %23, %28 in 1 : vector<8x32xf32>, vector<8x32xf32> -> vector<8x64xf32>
    %30 = vector.broadcast %18 : vector<8x1xf32> to vector<8x64xf32>
    %31 = arith.addf %29, %30 : vector<8x64xf32>
    %c0_26 = arith.constant 0 : index
    %c0_27 = arith.constant 0 : index
    %c0_28 = arith.constant 0 : index
    %32 = vector.load %arg6[%c0_26, %c0_27, %c0_28] : memref<1x8x1024xf32, #tpu.memory_space<vmem>>, vector<1x8x64xf32>
    %33 = vector.shape_cast %32 : vector<1x8x64xf32> to vector<8x64xf32>
    %34 = vector.shape_cast %31 : vector<8x64xf32> to vector<1x8x64xf32>
    tpu.vector_store %arg6[%c0_26, %c0_27, %c0_28], %34 {strides = array<i32>} : memref<1x8x1024xf32, #tpu.memory_space<vmem>>, vector<1x8x64xf32>,
    %35 = vector.extract_strided_slice %4 {offsets = [0, 16], sizes = [8, 16], strides = [1, 1]} : vector<8x256xf32> to vector<8x16xf32>
    %cst_29 = arith.constant dense<0.000000e+00> : vector<8x32xf32>
    %36 = tpu.matmul %35, %15, %cst_29 {dimension_numbers = #tpu.dot_dimension_numbers<[1], [0], [0], [1], [0, 0, 1, 1], [], []>} : vector<8x16xf32>, vector<16x32xf32>, vector<8x32xf32> -> vector<8x32xf32>
    %37 = vector.extract_strided_slice %7 {offsets = [0, 16], sizes = [8, 16], strides = [1, 1]} : vector<8x256xf32> to vector<8x16xf32>
    %cst_30 = arith.constant dense<0.000000e+00> : vector<8x32xf32>
    %38 = tpu.matmul %37, %17, %cst_30 {dimension_numbers = #tpu.dot_dimension_numbers<[1], [0], [0], [1], [0, 0, 1, 1], [], []>} : vector<8x16xf32>, vector<16x32xf32>, vector<8x32xf32> -> vector<8x32xf32>
    %39 = arith.addf %36, %38 : vector<8x32xf32>
    %40 = vector.extract_strided_slice %10 {offsets = [0, 16], sizes = [8, 16], strides = [1, 1]} : vector<8x256xf32> to vector<8x16xf32>
    %cst_31 = arith.constant dense<0.000000e+00> : vector<8x32xf32>
    %41 = tpu.matmul %40, %15, %cst_31 {dimension_numbers = #tpu.dot_dimension_numbers<[1], [0], [0], [1], [0, 0, 1, 1], [], []>} : vector<8x16xf32>, vector<16x32xf32>, vector<8x32xf32> -> vector<8x32xf32>
    %42 = vector.extract_strided_slice %13 {offsets = [0, 16], sizes = [8, 16], strides = [1, 1]} : vector<8x256xf32> to vector<8x16xf32>
    %cst_32 = arith.constant dense<0.000000e+00> : vector<8x32xf32>
    %43 = tpu.matmul %42, %17, %cst_32 {dimension_numbers = #tpu.dot_dimension_numbers<[1], [0], [0], [1], [0, 0, 1, 1], [], []>} : vector<8x16xf32>, vector<16x32xf32>, vector<8x32xf32> -> vector<8x32xf32>
    %44 = arith.addf %41, %43 : vector<8x32xf32>
    %45 = tpu.concatenate %39, %44 in 1 : vector<8x32xf32>, vector<8x32xf32> -> vector<8x64xf32>
    %46 = vector.broadcast %18 : vector<8x1xf32> to vector<8x64xf32>
    %47 = arith.addf %45, %46 : vector<8x64xf32>
    %c0_33 = arith.constant 0 : index
    %c0_34 = arith.constant 0 : index
    %c64 = arith.constant 64 : index
    %48 = vector.load %arg6[%c0_33, %c0_34, %c64] : memref<1x8x1024xf32, #tpu.memory_space<vmem>>, vector<1x8x64xf32>
    %49 = vector.shape_cast %48 : vector<1x8x64xf32> to vector<8x64xf32>
    %50 = vector.shape_cast %47 : vector<8x64xf32> to vector<1x8x64xf32>
    tpu.vector_store %arg6[%c0_33, %c0_34, %c64], %50 {strides = array<i32>} : memref<1x8x1024xf32, #tpu.memory_space<vmem>>, vector<1x8x64xf32>,
    %51 = vector.extract_strided_slice %4 {offsets = [0, 32], sizes = [8, 16], strides = [1, 1]} : vector<8x256xf32> to vector<8x16xf32>
    %cst_35 = arith.constant dense<0.000000e+00> : vector<8x32xf32>
    %52 = tpu.matmul %51, %15, %cst_35 {dimension_numbers = #tpu.dot_dimension_numbers<[1], [0], [0], [1], [0, 0, 1, 1], [], []>} : vector<8x16xf32>, vector<16x32xf32>, vector<8x32xf32> -> vector<8x32xf32>
    %53 = vector.extract_strided_slice %7 {offsets = [0, 32], sizes = [8, 16], strides = [1, 1]} : vector<8x256xf32> to vector<8x16xf32>
    %cst_36 = arith.constant dense<0.000000e+00> : vector<8x32xf32>
    %54 = tpu.matmul %53, %17, %cst_36 {dimension_numbers = #tpu.dot_dimension_numbers<[1], [0], [0], [1], [0, 0, 1, 1], [], []>} : vector<8x16xf32>, vector<16x32xf32>, vector<8x32xf32> -> vector<8x32xf32>
    %55 = arith.addf %52, %54 : vector<8x32xf32>
    %56 = vector.extract_strided_slice %10 {offsets = [0, 32], sizes = [8, 16], strides = [1, 1]} : vector<8x256xf32> to vector<8x16xf32>
    %cst_37 = arith.constant dense<0.000000e+00> : vector<8x32xf32>
    %57 = tpu.matmul %56, %15, %cst_37 {dimension_numbers = #tpu.dot_dimension_numbers<[1], [0], [0], [1], [0, 0, 1, 1], [], []>} : vector<8x16xf32>, vector<16x32xf32>, vector<8x32xf32> -> vector<8x32xf32>
    %58 = vector.extract_strided_slice %13 {offsets = [0, 32], sizes = [8, 16], strides = [1, 1]} : vector<8x256xf32> to vector<8x16xf32>
    %cst_38 = arith.constant dense<0.000000e+00> : vector<8x32xf32>
    %59 = tpu.matmul %58, %17, %cst_38 {dimension_numbers = #tpu.dot_dimension_numbers<[1], [0], [0], [1], [0, 0, 1, 1], [], []>} : vector<8x16xf32>, vector<16x32xf32>, vector<8x32xf32> -> vector<8x32xf32>
    %60 = arith.addf %57, %59 : vector<8x32xf32>
    %61 = tpu.concatenate %55, %60 in 1 : vector<8x32xf32>, vector<8x32xf32> -> vector<8x64xf32>
    %62 = vector.broadcast %18 : vector<8x1xf32> to vector<8x64xf32>
    %63 = arith.addf %61, %62 : vector<8x64xf32>
    %c0_39 = arith.constant 0 : index
    %c0_40 = arith.constant 0 : index
    %c128 = arith.constant 128 : index
    %64 = vector.load %arg6[%c0_39, %c0_40, %c128] : memref<1x8x1024xf32, #tpu.memory_space<vmem>>, vector<1x8x64xf32>
    %65 = vector.shape_cast %64 : vector<1x8x64xf32> to vector<8x64xf32>
    %66 = vector.shape_cast %63 : vector<8x64xf32> to vector<1x8x64xf32>
    tpu.vector_store %arg6[%c0_39, %c0_40, %c128], %66 {strides = array<i32>} : memref<1x8x1024xf32, #tpu.memory_space<vmem>>, vector<1x8x64xf32>,
    %67 = vector.extract_strided_slice %4 {offsets = [0, 48], sizes = [8, 16], strides = [1, 1]} : vector<8x256xf32> to vector<8x16xf32>
    %cst_41 = arith.constant dense<0.000000e+00> : vector<8x32xf32>
    %68 = tpu.matmul %67, %15, %cst_41 {dimension_numbers = #tpu.dot_dimension_numbers<[1], [0], [0], [1], [0, 0, 1, 1], [], []>} : vector<8x16xf32>, vector<16x32xf32>, vector<8x32xf32> -> vector<8x32xf32>
    %69 = vector.extract_strided_slice %7 {offsets = [0, 48], sizes = [8, 16], strides = [1, 1]} : vector<8x256xf32> to vector<8x16xf32>
    %cst_42 = arith.constant dense<0.000000e+00> : vector<8x32xf32>
    %70 = tpu.matmul %69, %17, %cst_42 {dimension_numbers = #tpu.dot_dimension_numbers<[1], [0], [0], [1], [0, 0, 1, 1], [], []>} : vector<8x16xf32>, vector<16x32xf32>, vector<8x32xf32> -> vector<8x32xf32>
    %71 = arith.addf %68, %70 : vector<8x32xf32>
    %72 = vector.extract_strided_slice %10 {offsets = [0, 48], sizes = [8, 16], strides = [1, 1]} : vector<8x256xf32> to vector<8x16xf32>
    %cst_43 = arith.constant dense<0.000000e+00> : vector<8x32xf32>
    %73 = tpu.matmul %72, %15, %cst_43 {dimension_numbers = #tpu.dot_dimension_numbers<[1], [0], [0], [1], [0, 0, 1, 1], [], []>} : vector<8x16xf32>, vector<16x32xf32>, vector<8x32xf32> -> vector<8x32xf32>
    %74 = vector.extract_strided_slice %13 {offsets = [0, 48], sizes = [8, 16], strides = [1, 1]} : vector<8x256xf32> to vector<8x16xf32>
    %cst_44 = arith.constant dense<0.000000e+00> : vector<8x32xf32>
    %75 = tpu.matmul %74, %17, %cst_44 {dimension_numbers = #tpu.dot_dimension_numbers<[1], [0], [0], [1], [0, 0, 1, 1], [], []>} : vector<8x16xf32>, vector<16x32xf32>, vector<8x32xf32> -> vector<8x32xf32>
    %76 = arith.addf %73, %75 : vector<8x32xf32>
    %77 = tpu.concatenate %71, %76 in 1 : vector<8x32xf32>, vector<8x32xf32> -> vector<8x64xf32>
    %78 = vector.broadcast %18 : vector<8x1xf32> to vector<8x64xf32>
    %79 = arith.addf %77, %78 : vector<8x64xf32>
    %c0_45 = arith.constant 0 : index
    %c0_46 = arith.constant 0 : index
    %c192 = arith.constant 192 : index
    %80 = vector.load %arg6[%c0_45, %c0_46, %c192] : memref<1x8x1024xf32, #tpu.memory_space<vmem>>, vector<1x8x64xf32>
    %81 = vector.shape_cast %80 : vector<1x8x64xf32> to vector<8x64xf32>
    %82 = vector.shape_cast %79 : vector<8x64xf32> to vector<1x8x64xf32>
    tpu.vector_store %arg6[%c0_45, %c0_46, %c192], %82 {strides = array<i32>} : memref<1x8x1024xf32, #tpu.memory_space<vmem>>, vector<1x8x64xf32>,
    %83 = vector.extract_strided_slice %4 {offsets = [0, 64], sizes = [8, 16], strides = [1, 1]} : vector<8x256xf32> to vector<8x16xf32>
    %cst_47 = arith.constant dense<0.000000e+00> : vector<8x32xf32>
    %84 = tpu.matmul %83, %15, %cst_47 {dimension_numbers = #tpu.dot_dimension_numbers<[1], [0], [0], [1], [0, 0, 1, 1], [], []>} : vector<8x16xf32>, vector<16x32xf32>, vector<8x32xf32> -> vector<8x32xf32>
    %85 = vector.extract_strided_slice %7 {offsets = [0, 64], sizes = [8, 16], strides = [1, 1]} : vector<8x256xf32> to vector<8x16xf32>
    %cst_48 = arith.constant dense<0.000000e+00> : vector<8x32xf32>
    %86 = tpu.matmul %85, %17, %cst_48 {dimension_numbers = #tpu.dot_dimension_numbers<[1], [0], [0], [1], [0, 0, 1, 1], [], []>} : vector<8x16xf32>, vector<16x32xf32>, vector<8x32xf32> -> vector<8x32xf32>
    %87 = arith.addf %84, %86 : vector<8x32xf32>
    %88 = vector.extract_strided_slice %10 {offsets = [0, 64], sizes = [8, 16], strides = [1, 1]} : vector<8x256xf32> to vector<8x16xf32>
    %cst_49 = arith.constant dense<0.000000e+00> : vector<8x32xf32>
    %89 = tpu.matmul %88, %15, %cst_49 {dimension_numbers = #tpu.dot_dimension_numbers<[1], [0], [0], [1], [0, 0, 1, 1], [], []>} : vector<8x16xf32>, vector<16x32xf32>, vector<8x32xf32> -> vector<8x32xf32>
    %90 = vector.extract_strided_slice %13 {offsets = [0, 64], sizes = [8, 16], strides = [1, 1]} : vector<8x256xf32> to vector<8x16xf32>
    %cst_50 = arith.constant dense<0.000000e+00> : vector<8x32xf32>
    %91 = tpu.matmul %90, %17, %cst_50 {dimension_numbers = #tpu.dot_dimension_numbers<[1], [0], [0], [1], [0, 0, 1, 1], [], []>} : vector<8x16xf32>, vector<16x32xf32>, vector<8x32xf32> -> vector<8x32xf32>
    %92 = arith.addf %89, %91 : vector<8x32xf32>
    %93 = tpu.concatenate %87, %92 in 1 : vector<8x32xf32>, vector<8x32xf32> -> vector<8x64xf32>
    %94 = vector.broadcast %18 : vector<8x1xf32> to vector<8x64xf32>
    %95 = arith.addf %93, %94 : vector<8x64xf32>
    %c0_51 = arith.constant 0 : index
    %c0_52 = arith.constant 0 : index
    %c256 = arith.constant 256 : index
    %96 = vector.load %arg6[%c0_51, %c0_52, %c256] : memref<1x8x1024xf32, #tpu.memory_space<vmem>>, vector<1x8x64xf32>
    %97 = vector.shape_cast %96 : vector<1x8x64xf32> to vector<8x64xf32>
    %98 = vector.shape_cast %95 : vector<8x64xf32> to vector<1x8x64xf32>
    tpu.vector_store %arg6[%c0_51, %c0_52, %c256], %98 {strides = array<i32>} : memref<1x8x1024xf32, #tpu.memory_space<vmem>>, vector<1x8x64xf32>,
    %99 = vector.extract_strided_slice %4 {offsets = [0, 80], sizes = [8, 16], strides = [1, 1]} : vector<8x256xf32> to vector<8x16xf32>
    %cst_53 = arith.constant dense<0.000000e+00> : vector<8x32xf32>
    %100 = tpu.matmul %99, %15, %cst_53 {dimension_numbers = #tpu.dot_dimension_numbers<[1], [0], [0], [1], [0, 0, 1, 1], [], []>} : vector<8x16xf32>, vector<16x32xf32>, vector<8x32xf32> -> vector<8x32xf32>
    %101 = vector.extract_strided_slice %7 {offsets = [0, 80], sizes = [8, 16], strides = [1, 1]} : vector<8x256xf32> to vector<8x16xf32>
    %cst_54 = arith.constant dense<0.000000e+00> : vector<8x32xf32>
    %102 = tpu.matmul %101, %17, %cst_54 {dimension_numbers = #tpu.dot_dimension_numbers<[1], [0], [0], [1], [0, 0, 1, 1], [], []>} : vector<8x16xf32>, vector<16x32xf32>, vector<8x32xf32> -> vector<8x32xf32>
    %103 = arith.addf %100, %102 : vector<8x32xf32>
    %104 = vector.extract_strided_slice %10 {offsets = [0, 80], sizes = [8, 16], strides = [1, 1]} : vector<8x256xf32> to vector<8x16xf32>
    %cst_55 = arith.constant dense<0.000000e+00> : vector<8x32xf32>
    %105 = tpu.matmul %104, %15, %cst_55 {dimension_numbers = #tpu.dot_dimension_numbers<[1], [0], [0], [1], [0, 0, 1, 1], [], []>} : vector<8x16xf32>, vector<16x32xf32>, vector<8x32xf32> -> vector<8x32xf32>
    %106 = vector.extract_strided_slice %13 {offsets = [0, 80], sizes = [8, 16], strides = [1, 1]} : vector<8x256xf32> to vector<8x16xf32>
    %cst_56 = arith.constant dense<0.000000e+00> : vector<8x32xf32>
    %107 = tpu.matmul %106, %17, %cst_56 {dimension_numbers = #tpu.dot_dimension_numbers<[1], [0], [0], [1], [0, 0, 1, 1], [], []>} : vector<8x16xf32>, vector<16x32xf32>, vector<8x32xf32> -> vector<8x32xf32>
    %108 = arith.addf %105, %107 : vector<8x32xf32>
    %109 = tpu.concatenate %103, %108 in 1 : vector<8x32xf32>, vector<8x32xf32> -> vector<8x64xf32>
    %110 = vector.broadcast %18 : vector<8x1xf32> to vector<8x64xf32>
    %111 = arith.addf %109, %110 : vector<8x64xf32>
    %c0_57 = arith.constant 0 : index
    %c0_58 = arith.constant 0 : index
    %c320 = arith.constant 320 : index
    %112 = vector.load %arg6[%c0_57, %c0_58, %c320] : memref<1x8x1024xf32, #tpu.memory_space<vmem>>, vector<1x8x64xf32>
    %113 = vector.shape_cast %112 : vector<1x8x64xf32> to vector<8x64xf32>
    %114 = vector.shape_cast %111 : vector<8x64xf32> to vector<1x8x64xf32>
    tpu.vector_store %arg6[%c0_57, %c0_58, %c320], %114 {strides = array<i32>} : memref<1x8x1024xf32, #tpu.memory_space<vmem>>, vector<1x8x64xf32>,
    %115 = vector.extract_strided_slice %4 {offsets = [0, 96], sizes = [8, 16], strides = [1, 1]} : vector<8x256xf32> to vector<8x16xf32>
    %cst_59 = arith.constant dense<0.000000e+00> : vector<8x32xf32>
    %116 = tpu.matmul %115, %15, %cst_59 {dimension_numbers = #tpu.dot_dimension_numbers<[1], [0], [0], [1], [0, 0, 1, 1], [], []>} : vector<8x16xf32>, vector<16x32xf32>, vector<8x32xf32> -> vector<8x32xf32>
    %117 = vector.extract_strided_slice %7 {offsets = [0, 96], sizes = [8, 16], strides = [1, 1]} : vector<8x256xf32> to vector<8x16xf32>
    %cst_60 = arith.constant dense<0.000000e+00> : vector<8x32xf32>
    %118 = tpu.matmul %117, %17, %cst_60 {dimension_numbers = #tpu.dot_dimension_numbers<[1], [0], [0], [1], [0, 0, 1, 1], [], []>} : vector<8x16xf32>, vector<16x32xf32>, vector<8x32xf32> -> vector<8x32xf32>
    %119 = arith.addf %116, %118 : vector<8x32xf32>
    %120 = vector.extract_strided_slice %10 {offsets = [0, 96], sizes = [8, 16], strides = [1, 1]} : vector<8x256xf32> to vector<8x16xf32>
    %cst_61 = arith.constant dense<0.000000e+00> : vector<8x32xf32>
    %121 = tpu.matmul %120, %15, %cst_61 {dimension_numbers = #tpu.dot_dimension_numbers<[1], [0], [0], [1], [0, 0, 1, 1], [], []>} : vector<8x16xf32>, vector<16x32xf32>, vector<8x32xf32> -> vector<8x32xf32>
    %122 = vector.extract_strided_slice %13 {offsets = [0, 96], sizes = [8, 16], strides = [1, 1]} : vector<8x256xf32> to vector<8x16xf32>
    %cst_62 = arith.constant dense<0.000000e+00> : vector<8x32xf32>
    %123 = tpu.matmul %122, %17, %cst_62 {dimension_numbers = #tpu.dot_dimension_numbers<[1], [0], [0], [1], [0, 0, 1, 1], [], []>} : vector<8x16xf32>, vector<16x32xf32>, vector<8x32xf32> -> vector<8x32xf32>
    %124 = arith.addf %121, %123 : vector<8x32xf32>
    %125 = tpu.concatenate %119, %124 in 1 : vector<8x32xf32>, vector<8x32xf32> -> vector<8x64xf32>
    %126 = vector.broadcast %18 : vector<8x1xf32> to vector<8x64xf32>
    %127 = arith.addf %125, %126 : vector<8x64xf32>
    %c0_63 = arith.constant 0 : index
    %c0_64 = arith.constant 0 : index
    %c384 = arith.constant 384 : index
    %128 = vector.load %arg6[%c0_63, %c0_64, %c384] : memref<1x8x1024xf32, #tpu.memory_space<vmem>>, vector<1x8x64xf32>
    %129 = vector.shape_cast %128 : vector<1x8x64xf32> to vector<8x64xf32>
    %130 = vector.shape_cast %127 : vector<8x64xf32> to vector<1x8x64xf32>
    tpu.vector_store %arg6[%c0_63, %c0_64, %c384], %130 {strides = array<i32>} : memref<1x8x1024xf32, #tpu.memory_space<vmem>>, vector<1x8x64xf32>,
    %131 = vector.extract_strided_slice %4 {offsets = [0, 112], sizes = [8, 16], strides = [1, 1]} : vector<8x256xf32> to vector<8x16xf32>
    %cst_65 = arith.constant dense<0.000000e+00> : vector<8x32xf32>
    %132 = tpu.matmul %131, %15, %cst_65 {dimension_numbers = #tpu.dot_dimension_numbers<[1], [0], [0], [1], [0, 0, 1, 1], [], []>} : vector<8x16xf32>, vector<16x32xf32>, vector<8x32xf32> -> vector<8x32xf32>
    %133 = vector.extract_strided_slice %7 {offsets = [0, 112], sizes = [8, 16], strides = [1, 1]} : vector<8x256xf32> to vector<8x16xf32>
    %cst_66 = arith.constant dense<0.000000e+00> : vector<8x32xf32>
    %134 = tpu.matmul %133, %17, %cst_66 {dimension_numbers = #tpu.dot_dimension_numbers<[1], [0], [0], [1], [0, 0, 1, 1], [], []>} : vector<8x16xf32>, vector<16x32xf32>, vector<8x32xf32> -> vector<8x32xf32>
    %135 = arith.addf %132, %134 : vector<8x32xf32>
    %136 = vector.extract_strided_slice %10 {offsets = [0, 112], sizes = [8, 16], strides = [1, 1]} : vector<8x256xf32> to vector<8x16xf32>
    %cst_67 = arith.constant dense<0.000000e+00> : vector<8x32xf32>
    %137 = tpu.matmul %136, %15, %cst_67 {dimension_numbers = #tpu.dot_dimension_numbers<[1], [0], [0], [1], [0, 0, 1, 1], [], []>} : vector<8x16xf32>, vector<16x32xf32>, vector<8x32xf32> -> vector<8x32xf32>
    %138 = vector.extract_strided_slice %13 {offsets = [0, 112], sizes = [8, 16], strides = [1, 1]} : vector<8x256xf32> to vector<8x16xf32>
    %cst_68 = arith.constant dense<0.000000e+00> : vector<8x32xf32>
    %139 = tpu.matmul %138, %17, %cst_68 {dimension_numbers = #tpu.dot_dimension_numbers<[1], [0], [0], [1], [0, 0, 1, 1], [], []>} : vector<8x16xf32>, vector<16x32xf32>, vector<8x32xf32> -> vector<8x32xf32>
    %140 = arith.addf %137, %139 : vector<8x32xf32>
    %141 = tpu.concatenate %135, %140 in 1 : vector<8x32xf32>, vector<8x32xf32> -> vector<8x64xf32>
    %142 = vector.broadcast %18 : vector<8x1xf32> to vector<8x64xf32>
    %143 = arith.addf %141, %142 : vector<8x64xf32>
    %c0_69 = arith.constant 0 : index
    %c0_70 = arith.constant 0 : index
    %c448 = arith.constant 448 : index
    %144 = vector.load %arg6[%c0_69, %c0_70, %c448] : memref<1x8x1024xf32, #tpu.memory_space<vmem>>, vector<1x8x64xf32>
    %145 = vector.shape_cast %144 : vector<1x8x64xf32> to vector<8x64xf32>
    %146 = vector.shape_cast %143 : vector<8x64xf32> to vector<1x8x64xf32>
    tpu.vector_store %arg6[%c0_69, %c0_70, %c448], %146 {strides = array<i32>} : memref<1x8x1024xf32, #tpu.memory_space<vmem>>, vector<1x8x64xf32>,
    %147 = vector.extract_strided_slice %4 {offsets = [0, 128], sizes = [8, 16], strides = [1, 1]} : vector<8x256xf32> to vector<8x16xf32>
    %cst_71 = arith.constant dense<0.000000e+00> : vector<8x32xf32>
    %148 = tpu.matmul %147, %15, %cst_71 {dimension_numbers = #tpu.dot_dimension_numbers<[1], [0], [0], [1], [0, 0, 1, 1], [], []>} : vector<8x16xf32>, vector<16x32xf32>, vector<8x32xf32> -> vector<8x32xf32>
    %149 = vector.extract_strided_slice %7 {offsets = [0, 128], sizes = [8, 16], strides = [1, 1]} : vector<8x256xf32> to vector<8x16xf32>
    %cst_72 = arith.constant dense<0.000000e+00> : vector<8x32xf32>
    %150 = tpu.matmul %149, %17, %cst_72 {dimension_numbers = #tpu.dot_dimension_numbers<[1], [0], [0], [1], [0, 0, 1, 1], [], []>} : vector<8x16xf32>, vector<16x32xf32>, vector<8x32xf32> -> vector<8x32xf32>
    %151 = arith.addf %148, %150 : vector<8x32xf32>
    %152 = vector.extract_strided_slice %10 {offsets = [0, 128], sizes = [8, 16], strides = [1, 1]} : vector<8x256xf32> to vector<8x16xf32>
    %cst_73 = arith.constant dense<0.000000e+00> : vector<8x32xf32>
    %153 = tpu.matmul %152, %15, %cst_73 {dimension_numbers = #tpu.dot_dimension_numbers<[1], [0], [0], [1], [0, 0, 1, 1], [], []>} : vector<8x16xf32>, vector<16x32xf32>, vector<8x32xf32> -> vector<8x32xf32>
    %154 = vector.extract_strided_slice %13 {offsets = [0, 128], sizes = [8, 16], strides = [1, 1]} : vector<8x256xf32> to vector<8x16xf32>
    %cst_74 = arith.constant dense<0.000000e+00> : vector<8x32xf32>
    %155 = tpu.matmul %154, %17, %cst_74 {dimension_numbers = #tpu.dot_dimension_numbers<[1], [0], [0], [1], [0, 0, 1, 1], [], []>} : vector<8x16xf32>, vector<16x32xf32>, vector<8x32xf32> -> vector<8x32xf32>
    %156 = arith.addf %153, %155 : vector<8x32xf32>
    %157 = tpu.concatenate %151, %156 in 1 : vector<8x32xf32>, vector<8x32xf32> -> vector<8x64xf32>
    %158 = vector.broadcast %18 : vector<8x1xf32> to vector<8x64xf32>
    %159 = arith.addf %157, %158 : vector<8x64xf32>
    %c0_75 = arith.constant 0 : index
    %c0_76 = arith.constant 0 : index
    %c512 = arith.constant 512 : index
    %160 = vector.load %arg6[%c0_75, %c0_76, %c512] : memref<1x8x1024xf32, #tpu.memory_space<vmem>>, vector<1x8x64xf32>
    %161 = vector.shape_cast %160 : vector<1x8x64xf32> to vector<8x64xf32>
    %162 = vector.shape_cast %159 : vector<8x64xf32> to vector<1x8x64xf32>
    tpu.vector_store %arg6[%c0_75, %c0_76, %c512], %162 {strides = array<i32>} : memref<1x8x1024xf32, #tpu.memory_space<vmem>>, vector<1x8x64xf32>,
    %163 = vector.extract_strided_slice %4 {offsets = [0, 144], sizes = [8, 16], strides = [1, 1]} : vector<8x256xf32> to vector<8x16xf32>
    %cst_77 = arith.constant dense<0.000000e+00> : vector<8x32xf32>
    %164 = tpu.matmul %163, %15, %cst_77 {dimension_numbers = #tpu.dot_dimension_numbers<[1], [0], [0], [1], [0, 0, 1, 1], [], []>} : vector<8x16xf32>, vector<16x32xf32>, vector<8x32xf32> -> vector<8x32xf32>
    %165 = vector.extract_strided_slice %7 {offsets = [0, 144], sizes = [8, 16], strides = [1, 1]} : vector<8x256xf32> to vector<8x16xf32>
    %cst_78 = arith.constant dense<0.000000e+00> : vector<8x32xf32>
    %166 = tpu.matmul %165, %17, %cst_78 {dimension_numbers = #tpu.dot_dimension_numbers<[1], [0], [0], [1], [0, 0, 1, 1], [], []>} : vector<8x16xf32>, vector<16x32xf32>, vector<8x32xf32> -> vector<8x32xf32>
    %167 = arith.addf %164, %166 : vector<8x32xf32>
    %168 = vector.extract_strided_slice %10 {offsets = [0, 144], sizes = [8, 16], strides = [1, 1]} : vector<8x256xf32> to vector<8x16xf32>
    %cst_79 = arith.constant dense<0.000000e+00> : vector<8x32xf32>
    %169 = tpu.matmul %168, %15, %cst_79 {dimension_numbers = #tpu.dot_dimension_numbers<[1], [0], [0], [1], [0, 0, 1, 1], [], []>} : vector<8x16xf32>, vector<16x32xf32>, vector<8x32xf32> -> vector<8x32xf32>
    %170 = vector.extract_strided_slice %13 {offsets = [0, 144], sizes = [8, 16], strides = [1, 1]} : vector<8x256xf32> to vector<8x16xf32>
    %cst_80 = arith.constant dense<0.000000e+00> : vector<8x32xf32>
    %171 = tpu.matmul %170, %17, %cst_80 {dimension_numbers = #tpu.dot_dimension_numbers<[1], [0], [0], [1], [0, 0, 1, 1], [], []>} : vector<8x16xf32>, vector<16x32xf32>, vector<8x32xf32> -> vector<8x32xf32>
    %172 = arith.addf %169, %171 : vector<8x32xf32>
    %173 = tpu.concatenate %167, %172 in 1 : vector<8x32xf32>, vector<8x32xf32> -> vector<8x64xf32>
    %174 = vector.broadcast %18 : vector<8x1xf32> to vector<8x64xf32>
    %175 = arith.addf %173, %174 : vector<8x64xf32>
    %c0_81 = arith.constant 0 : index
    %c0_82 = arith.constant 0 : index
    %c576 = arith.constant 576 : index
    %176 = vector.load %arg6[%c0_81, %c0_82, %c576] : memref<1x8x1024xf32, #tpu.memory_space<vmem>>, vector<1x8x64xf32>
    %177 = vector.shape_cast %176 : vector<1x8x64xf32> to vector<8x64xf32>
    %178 = vector.shape_cast %175 : vector<8x64xf32> to vector<1x8x64xf32>
    tpu.vector_store %arg6[%c0_81, %c0_82, %c576], %178 {strides = array<i32>} : memref<1x8x1024xf32, #tpu.memory_space<vmem>>, vector<1x8x64xf32>,
    %179 = vector.extract_strided_slice %4 {offsets = [0, 160], sizes = [8, 16], strides = [1, 1]} : vector<8x256xf32> to vector<8x16xf32>
    %cst_83 = arith.constant dense<0.000000e+00> : vector<8x32xf32>
    %180 = tpu.matmul %179, %15, %cst_83 {dimension_numbers = #tpu.dot_dimension_numbers<[1], [0], [0], [1], [0, 0, 1, 1], [], []>} : vector<8x16xf32>, vector<16x32xf32>, vector<8x32xf32> -> vector<8x32xf32>
    %181 = vector.extract_strided_slice %7 {offsets = [0, 160], sizes = [8, 16], strides = [1, 1]} : vector<8x256xf32> to vector<8x16xf32>
    %cst_84 = arith.constant dense<0.000000e+00> : vector<8x32xf32>
    %182 = tpu.matmul %181, %17, %cst_84 {dimension_numbers = #tpu.dot_dimension_numbers<[1], [0], [0], [1], [0, 0, 1, 1], [], []>} : vector<8x16xf32>, vector<16x32xf32>, vector<8x32xf32> -> vector<8x32xf32>
    %183 = arith.addf %180, %182 : vector<8x32xf32>
    %184 = vector.extract_strided_slice %10 {offsets = [0, 160], sizes = [8, 16], strides = [1, 1]} : vector<8x256xf32> to vector<8x16xf32>
    %cst_85 = arith.constant dense<0.000000e+00> : vector<8x32xf32>
    %185 = tpu.matmul %184, %15, %cst_85 {dimension_numbers = #tpu.dot_dimension_numbers<[1], [0], [0], [1], [0, 0, 1, 1], [], []>} : vector<8x16xf32>, vector<16x32xf32>, vector<8x32xf32> -> vector<8x32xf32>
    %186 = vector.extract_strided_slice %13 {offsets = [0, 160], sizes = [8, 16], strides = [1, 1]} : vector<8x256xf32> to vector<8x16xf32>
    %cst_86 = arith.constant dense<0.000000e+00> : vector<8x32xf32>
    %187 = tpu.matmul %186, %17, %cst_86 {dimension_numbers = #tpu.dot_dimension_numbers<[1], [0], [0], [1], [0, 0, 1, 1], [], []>} : vector<8x16xf32>, vector<16x32xf32>, vector<8x32xf32> -> vector<8x32xf32>
    %188 = arith.addf %185, %187 : vector<8x32xf32>
    %189 = tpu.concatenate %183, %188 in 1 : vector<8x32xf32>, vector<8x32xf32> -> vector<8x64xf32>
    %190 = vector.broadcast %18 : vector<8x1xf32> to vector<8x64xf32>
    %191 = arith.addf %189, %190 : vector<8x64xf32>
    %c0_87 = arith.constant 0 : index
    %c0_88 = arith.constant 0 : index
    %c640 = arith.constant 640 : index
    %192 = vector.load %arg6[%c0_87, %c0_88, %c640] : memref<1x8x1024xf32, #tpu.memory_space<vmem>>, vector<1x8x64xf32>
    %193 = vector.shape_cast %192 : vector<1x8x64xf32> to vector<8x64xf32>
    %194 = vector.shape_cast %191 : vector<8x64xf32> to vector<1x8x64xf32>
    tpu.vector_store %arg6[%c0_87, %c0_88, %c640], %194 {strides = array<i32>} : memref<1x8x1024xf32, #tpu.memory_space<vmem>>, vector<1x8x64xf32>,
    %195 = vector.extract_strided_slice %4 {offsets = [0, 176], sizes = [8, 16], strides = [1, 1]} : vector<8x256xf32> to vector<8x16xf32>
    %cst_89 = arith.constant dense<0.000000e+00> : vector<8x32xf32>
    %196 = tpu.matmul %195, %15, %cst_89 {dimension_numbers = #tpu.dot_dimension_numbers<[1], [0], [0], [1], [0, 0, 1, 1], [], []>} : vector<8x16xf32>, vector<16x32xf32>, vector<8x32xf32> -> vector<8x32xf32>
    %197 = vector.extract_strided_slice %7 {offsets = [0, 176], sizes = [8, 16], strides = [1, 1]} : vector<8x256xf32> to vector<8x16xf32>
    %cst_90 = arith.constant dense<0.000000e+00> : vector<8x32xf32>
    %198 = tpu.matmul %197, %17, %cst_90 {dimension_numbers = #tpu.dot_dimension_numbers<[1], [0], [0], [1], [0, 0, 1, 1], [], []>} : vector<8x16xf32>, vector<16x32xf32>, vector<8x32xf32> -> vector<8x32xf32>
    %199 = arith.addf %196, %198 : vector<8x32xf32>
    %200 = vector.extract_strided_slice %10 {offsets = [0, 176], sizes = [8, 16], strides = [1, 1]} : vector<8x256xf32> to vector<8x16xf32>
    %cst_91 = arith.constant dense<0.000000e+00> : vector<8x32xf32>
    %201 = tpu.matmul %200, %15, %cst_91 {dimension_numbers = #tpu.dot_dimension_numbers<[1], [0], [0], [1], [0, 0, 1, 1], [], []>} : vector<8x16xf32>, vector<16x32xf32>, vector<8x32xf32> -> vector<8x32xf32>
    %202 = vector.extract_strided_slice %13 {offsets = [0, 176], sizes = [8, 16], strides = [1, 1]} : vector<8x256xf32> to vector<8x16xf32>
    %cst_92 = arith.constant dense<0.000000e+00> : vector<8x32xf32>
    %203 = tpu.matmul %202, %17, %cst_92 {dimension_numbers = #tpu.dot_dimension_numbers<[1], [0], [0], [1], [0, 0, 1, 1], [], []>} : vector<8x16xf32>, vector<16x32xf32>, vector<8x32xf32> -> vector<8x32xf32>
    %204 = arith.addf %201, %203 : vector<8x32xf32>
    %205 = tpu.concatenate %199, %204 in 1 : vector<8x32xf32>, vector<8x32xf32> -> vector<8x64xf32>
    %206 = vector.broadcast %18 : vector<8x1xf32> to vector<8x64xf32>
    %207 = arith.addf %205, %206 : vector<8x64xf32>
    %c0_93 = arith.constant 0 : index
    %c0_94 = arith.constant 0 : index
    %c704 = arith.constant 704 : index
    %208 = vector.load %arg6[%c0_93, %c0_94, %c704] : memref<1x8x1024xf32, #tpu.memory_space<vmem>>, vector<1x8x64xf32>
    %209 = vector.shape_cast %208 : vector<1x8x64xf32> to vector<8x64xf32>
    %210 = vector.shape_cast %207 : vector<8x64xf32> to vector<1x8x64xf32>
    tpu.vector_store %arg6[%c0_93, %c0_94, %c704], %210 {strides = array<i32>} : memref<1x8x1024xf32, #tpu.memory_space<vmem>>, vector<1x8x64xf32>,
    %211 = vector.extract_strided_slice %4 {offsets = [0, 192], sizes = [8, 16], strides = [1, 1]} : vector<8x256xf32> to vector<8x16xf32>
    %cst_95 = arith.constant dense<0.000000e+00> : vector<8x32xf32>
    %212 = tpu.matmul %211, %15, %cst_95 {dimension_numbers = #tpu.dot_dimension_numbers<[1], [0], [0], [1], [0, 0, 1, 1], [], []>} : vector<8x16xf32>, vector<16x32xf32>, vector<8x32xf32> -> vector<8x32xf32>
    %213 = vector.extract_strided_slice %7 {offsets = [0, 192], sizes = [8, 16], strides = [1, 1]} : vector<8x256xf32> to vector<8x16xf32>
    %cst_96 = arith.constant dense<0.000000e+00> : vector<8x32xf32>
    %214 = tpu.matmul %213, %17, %cst_96 {dimension_numbers = #tpu.dot_dimension_numbers<[1], [0], [0], [1], [0, 0, 1, 1], [], []>} : vector<8x16xf32>, vector<16x32xf32>, vector<8x32xf32> -> vector<8x32xf32>
    %215 = arith.addf %212, %214 : vector<8x32xf32>
    %216 = vector.extract_strided_slice %10 {offsets = [0, 192], sizes = [8, 16], strides = [1, 1]} : vector<8x256xf32> to vector<8x16xf32>
    %cst_97 = arith.constant dense<0.000000e+00> : vector<8x32xf32>
    %217 = tpu.matmul %216, %15, %cst_97 {dimension_numbers = #tpu.dot_dimension_numbers<[1], [0], [0], [1], [0, 0, 1, 1], [], []>} : vector<8x16xf32>, vector<16x32xf32>, vector<8x32xf32> -> vector<8x32xf32>
    %218 = vector.extract_strided_slice %13 {offsets = [0, 192], sizes = [8, 16], strides = [1, 1]} : vector<8x256xf32> to vector<8x16xf32>
    %cst_98 = arith.constant dense<0.000000e+00> : vector<8x32xf32>
    %219 = tpu.matmul %218, %17, %cst_98 {dimension_numbers = #tpu.dot_dimension_numbers<[1], [0], [0], [1], [0, 0, 1, 1], [], []>} : vector<8x16xf32>, vector<16x32xf32>, vector<8x32xf32> -> vector<8x32xf32>
    %220 = arith.addf %217, %219 : vector<8x32xf32>
    %221 = tpu.concatenate %215, %220 in 1 : vector<8x32xf32>, vector<8x32xf32> -> vector<8x64xf32>
    %222 = vector.broadcast %18 : vector<8x1xf32> to vector<8x64xf32>
    %223 = arith.addf %221, %222 : vector<8x64xf32>
    %c0_99 = arith.constant 0 : index
    %c0_100 = arith.constant 0 : index
    %c768 = arith.constant 768 : index
    %224 = vector.load %arg6[%c0_99, %c0_100, %c768] : memref<1x8x1024xf32, #tpu.memory_space<vmem>>, vector<1x8x64xf32>
    %225 = vector.shape_cast %224 : vector<1x8x64xf32> to vector<8x64xf32>
    %226 = vector.shape_cast %223 : vector<8x64xf32> to vector<1x8x64xf32>
    tpu.vector_store %arg6[%c0_99, %c0_100, %c768], %226 {strides = array<i32>} : memref<1x8x1024xf32, #tpu.memory_space<vmem>>, vector<1x8x64xf32>,
    %227 = vector.extract_strided_slice %4 {offsets = [0, 208], sizes = [8, 16], strides = [1, 1]} : vector<8x256xf32> to vector<8x16xf32>
    %cst_101 = arith.constant dense<0.000000e+00> : vector<8x32xf32>
    %228 = tpu.matmul %227, %15, %cst_101 {dimension_numbers = #tpu.dot_dimension_numbers<[1], [0], [0], [1], [0, 0, 1, 1], [], []>} : vector<8x16xf32>, vector<16x32xf32>, vector<8x32xf32> -> vector<8x32xf32>
    %229 = vector.extract_strided_slice %7 {offsets = [0, 208], sizes = [8, 16], strides = [1, 1]} : vector<8x256xf32> to vector<8x16xf32>
    %cst_102 = arith.constant dense<0.000000e+00> : vector<8x32xf32>
    %230 = tpu.matmul %229, %17, %cst_102 {dimension_numbers = #tpu.dot_dimension_numbers<[1], [0], [0], [1], [0, 0, 1, 1], [], []>} : vector<8x16xf32>, vector<16x32xf32>, vector<8x32xf32> -> vector<8x32xf32>
    %231 = arith.addf %228, %230 : vector<8x32xf32>
    %232 = vector.extract_strided_slice %10 {offsets = [0, 208], sizes = [8, 16], strides = [1, 1]} : vector<8x256xf32> to vector<8x16xf32>
    %cst_103 = arith.constant dense<0.000000e+00> : vector<8x32xf32>
    %233 = tpu.matmul %232, %15, %cst_103 {dimension_numbers = #tpu.dot_dimension_numbers<[1], [0], [0], [1], [0, 0, 1, 1], [], []>} : vector<8x16xf32>, vector<16x32xf32>, vector<8x32xf32> -> vector<8x32xf32>
    %234 = vector.extract_strided_slice %13 {offsets = [0, 208], sizes = [8, 16], strides = [1, 1]} : vector<8x256xf32> to vector<8x16xf32>
    %cst_104 = arith.constant dense<0.000000e+00> : vector<8x32xf32>
    %235 = tpu.matmul %234, %17, %cst_104 {dimension_numbers = #tpu.dot_dimension_numbers<[1], [0], [0], [1], [0, 0, 1, 1], [], []>} : vector<8x16xf32>, vector<16x32xf32>, vector<8x32xf32> -> vector<8x32xf32>
    %236 = arith.addf %233, %235 : vector<8x32xf32>
    %237 = tpu.concatenate %231, %236 in 1 : vector<8x32xf32>, vector<8x32xf32> -> vector<8x64xf32>
    %238 = vector.broadcast %18 : vector<8x1xf32> to vector<8x64xf32>
    %239 = arith.addf %237, %238 : vector<8x64xf32>
    %c0_105 = arith.constant 0 : index
    %c0_106 = arith.constant 0 : index
    %c832 = arith.constant 832 : index
    %240 = vector.load %arg6[%c0_105, %c0_106, %c832] : memref<1x8x1024xf32, #tpu.memory_space<vmem>>, vector<1x8x64xf32>
    %241 = vector.shape_cast %240 : vector<1x8x64xf32> to vector<8x64xf32>
    %242 = vector.shape_cast %239 : vector<8x64xf32> to vector<1x8x64xf32>
    tpu.vector_store %arg6[%c0_105, %c0_106, %c832], %242 {strides = array<i32>} : memref<1x8x1024xf32, #tpu.memory_space<vmem>>, vector<1x8x64xf32>,
    %243 = vector.extract_strided_slice %4 {offsets = [0, 224], sizes = [8, 16], strides = [1, 1]} : vector<8x256xf32> to vector<8x16xf32>
    %cst_107 = arith.constant dense<0.000000e+00> : vector<8x32xf32>
    %244 = tpu.matmul %243, %15, %cst_107 {dimension_numbers = #tpu.dot_dimension_numbers<[1], [0], [0], [1], [0, 0, 1, 1], [], []>} : vector<8x16xf32>, vector<16x32xf32>, vector<8x32xf32> -> vector<8x32xf32>
    %245 = vector.extract_strided_slice %7 {offsets = [0, 224], sizes = [8, 16], strides = [1, 1]} : vector<8x256xf32> to vector<8x16xf32>
    %cst_108 = arith.constant dense<0.000000e+00> : vector<8x32xf32>
    %246 = tpu.matmul %245, %17, %cst_108 {dimension_numbers = #tpu.dot_dimension_numbers<[1], [0], [0], [1], [0, 0, 1, 1], [], []>} : vector<8x16xf32>, vector<16x32xf32>, vector<8x32xf32> -> vector<8x32xf32>
    %247 = arith.addf %244, %246 : vector<8x32xf32>
    %248 = vector.extract_strided_slice %10 {offsets = [0, 224], sizes = [8, 16], strides = [1, 1]} : vector<8x256xf32> to vector<8x16xf32>
    %cst_109 = arith.constant dense<0.000000e+00> : vector<8x32xf32>
    %249 = tpu.matmul %248, %15, %cst_109 {dimension_numbers = #tpu.dot_dimension_numbers<[1], [0], [0], [1], [0, 0, 1, 1], [], []>} : vector<8x16xf32>, vector<16x32xf32>, vector<8x32xf32> -> vector<8x32xf32>
    %250 = vector.extract_strided_slice %13 {offsets = [0, 224], sizes = [8, 16], strides = [1, 1]} : vector<8x256xf32> to vector<8x16xf32>
    %cst_110 = arith.constant dense<0.000000e+00> : vector<8x32xf32>
    %251 = tpu.matmul %250, %17, %cst_110 {dimension_numbers = #tpu.dot_dimension_numbers<[1], [0], [0], [1], [0, 0, 1, 1], [], []>} : vector<8x16xf32>, vector<16x32xf32>, vector<8x32xf32> -> vector<8x32xf32>
    %252 = arith.addf %249, %251 : vector<8x32xf32>
    %253 = tpu.concatenate %247, %252 in 1 : vector<8x32xf32>, vector<8x32xf32> -> vector<8x64xf32>
    %254 = vector.broadcast %18 : vector<8x1xf32> to vector<8x64xf32>
    %255 = arith.addf %253, %254 : vector<8x64xf32>
    %c0_111 = arith.constant 0 : index
    %c0_112 = arith.constant 0 : index
    %c896 = arith.constant 896 : index
    %256 = vector.load %arg6[%c0_111, %c0_112, %c896] : memref<1x8x1024xf32, #tpu.memory_space<vmem>>, vector<1x8x64xf32>
    %257 = vector.shape_cast %256 : vector<1x8x64xf32> to vector<8x64xf32>
    %258 = vector.shape_cast %255 : vector<8x64xf32> to vector<1x8x64xf32>
    tpu.vector_store %arg6[%c0_111, %c0_112, %c896], %258 {strides = array<i32>} : memref<1x8x1024xf32, #tpu.memory_space<vmem>>, vector<1x8x64xf32>,
    %259 = vector.extract_strided_slice %4 {offsets = [0, 240], sizes = [8, 16], strides = [1, 1]} : vector<8x256xf32> to vector<8x16xf32>
    %cst_113 = arith.constant dense<0.000000e+00> : vector<8x32xf32>
    %260 = tpu.matmul %259, %15, %cst_113 {dimension_numbers = #tpu.dot_dimension_numbers<[1], [0], [0], [1], [0, 0, 1, 1], [], []>} : vector<8x16xf32>, vector<16x32xf32>, vector<8x32xf32> -> vector<8x32xf32>
    %261 = vector.extract_strided_slice %7 {offsets = [0, 240], sizes = [8, 16], strides = [1, 1]} : vector<8x256xf32> to vector<8x16xf32>
    %cst_114 = arith.constant dense<0.000000e+00> : vector<8x32xf32>
    %262 = tpu.matmul %261, %17, %cst_114 {dimension_numbers = #tpu.dot_dimension_numbers<[1], [0], [0], [1], [0, 0, 1, 1], [], []>} : vector<8x16xf32>, vector<16x32xf32>, vector<8x32xf32> -> vector<8x32xf32>
    %263 = arith.addf %260, %262 : vector<8x32xf32>
    %264 = vector.extract_strided_slice %10 {offsets = [0, 240], sizes = [8, 16], strides = [1, 1]} : vector<8x256xf32> to vector<8x16xf32>
    %cst_115 = arith.constant dense<0.000000e+00> : vector<8x32xf32>
    %265 = tpu.matmul %264, %15, %cst_115 {dimension_numbers = #tpu.dot_dimension_numbers<[1], [0], [0], [1], [0, 0, 1, 1], [], []>} : vector<8x16xf32>, vector<16x32xf32>, vector<8x32xf32> -> vector<8x32xf32>
    %266 = vector.extract_strided_slice %13 {offsets = [0, 240], sizes = [8, 16], strides = [1, 1]} : vector<8x256xf32> to vector<8x16xf32>
    %cst_116 = arith.constant dense<0.000000e+00> : vector<8x32xf32>
    %267 = tpu.matmul %266, %17, %cst_116 {dimension_numbers = #tpu.dot_dimension_numbers<[1], [0], [0], [1], [0, 0, 1, 1], [], []>} : vector<8x16xf32>, vector<16x32xf32>, vector<8x32xf32> -> vector<8x32xf32>
    %268 = arith.addf %265, %267 : vector<8x32xf32>
    %269 = tpu.concatenate %263, %268 in 1 : vector<8x32xf32>, vector<8x32xf32> -> vector<8x64xf32>
    %270 = vector.broadcast %18 : vector<8x1xf32> to vector<8x64xf32>
    %271 = arith.addf %269, %270 : vector<8x64xf32>
    %c0_117 = arith.constant 0 : index
    %c0_118 = arith.constant 0 : index
    %c960 = arith.constant 960 : index
    %272 = vector.load %arg6[%c0_117, %c0_118, %c960] : memref<1x8x1024xf32, #tpu.memory_space<vmem>>, vector<1x8x64xf32>
    %273 = vector.shape_cast %272 : vector<1x8x64xf32> to vector<8x64xf32>
    %274 = vector.shape_cast %271 : vector<8x64xf32> to vector<1x8x64xf32>
    tpu.vector_store %arg6[%c0_117, %c0_118, %c960], %274 {strides = array<i32>} : memref<1x8x1024xf32, #tpu.memory_space<vmem>>, vector<1x8x64xf32>,
    return
  }
  func.func @transform_0(%arg0: i32, %arg1: i32) -> (i32, i32, i32) {
    %c0_i32 = arith.constant 0 : i32
    %c0_i32_0 = arith.constant 0 : i32
    return %arg0, %c0_i32, %arg1 : i32, i32, i32
  }
  func.func @transform_1(%arg0: i32, %arg1: i32) -> (i32, i32, i32) {
    %c0_i32 = arith.constant 0 : i32
    %c0_i32_0 = arith.constant 0 : i32
    %c0_i32_1 = arith.constant 0 : i32
    %c0_i32_2 = arith.constant 0 : i32
    return %c0_i32, %c0_i32_0, %c0_i32_1 : i32, i32, i32
  }
  func.func @transform_2(%arg0: i32, %arg1: i32) -> (i32, i32) {
    %c0_i32 = arith.constant 0 : i32
    %c0_i32_0 = arith.constant 0 : i32
    %c0_i32_1 = arith.constant 0 : i32
    return %c0_i32, %c0_i32_0 : i32, i32
  }
  func.func @transform_3(%arg0: i32, %arg1: i32) -> (i32, i32, i32) {
    %c0_i32 = arith.constant 0 : i32
    %c0_i32_0 = arith.constant 0 : i32
    %c0_i32_1 = arith.constant 0 : i32
    %c0_i32_2 = arith.constant 0 : i32
    return %c0_i32, %c0_i32_0, %c0_i32_1 : i32, i32, i32
  }
  func.func @transform_4(%arg0: i32, %arg1: i32) -> (i32, i32, i32) {
    %c0_i32 = arith.constant 0 : i32
    %c0_i32_0 = arith.constant 0 : i32
    return %arg0, %c0_i32, %arg1 : i32, i32, i32
  }
}

</mosaic_0001>

<llo_original>
// kernel: tpu_custom_call.1
$region0: #{tpu_custom_call.1}
  #allocation0 [shape = 'u32[]', space=smem, size = 0x4, offset = 0x4, fixed_abs, tag = 'smem constant byte address 0x4 - core index']
  #allocation1 [shape = 'u32[144,128]{1,0:T(1,128)}', space=vmem, size = 0x12000, scoped, tag = 'internal scratch']
  %s0 = inlined_call_operand.vmem [shape: f32[2,4,256], index: 0, kind: input, shape index: {}]
  %s1 = inlined_call_operand.vmem [shape: f32[4,8,4], index: 1, kind: input, shape index: {}]
  %s2 = inlined_call_operand.vmem [shape: f32[8,1], index: 2, kind: input, shape index: {}]
  %s3 = inlined_call_operand.vmem [shape: f32[2,16,32], index: 3, kind: input, shape index: {}]
  %s4 = inlined_call_operand.hbm [shape: f32[2,8,1024], index: 4, kind: output, shape index: {}]
  %s5 = sld [smem:[#allocation0]]
  $region49: #{tpu_custom_call.1} parent=0
    _
  %s7 = ssub.s32 1, %s5
  %s8 = scalar_select 0, %s7, %s5
  $region1: #{tpu_custom_call.1} parent=0
    #allocation2 [shape = 'u8[65536]{0}', space=vmem, size = 0x10000, scoped, tag = 'output window, operand 0']
    #allocation3 [shape = 's32[2]{0}', space=sflag, size = 0x8, scoped, tag = 'scoped memory for tpu_custom_call.1']
    %9 = vsyncpa [#allocation3], 0
    %s10 = scalar_lea.sflag [#allocation3], 1
    %11 = vsyncpa %s10, 0
    loop: start=0, step=1, limit=4
    $region2: #{tpu_custom_call.1} parent=1 // loop_pre_header
      _
    $region3: #{tpu_custom_call.1} parent=1 // loop_header
      %s13 = sphi 0, %s17
      %p14 = scmp.ge.s32.totalorder %s13, 4
      %s20 = sphi 0, %s32
      %s21 = sphi 0, %s28
      %s22 = sphi 0, %s20
      %s23 = sphi 0, %s21
      %s24 = sphi 0, %s22
      %s25 = sphi 0, %s23
      %s37 = sphi 0, %s39
      %s40 = sphi 0, %s37
      %s41 = sphi 0, %s40
      %s57 = sphi 0, %s41
      %s61 = sphi 0, %s61
      %s63 = sphi 0, %s61
      %s64 = sphi 0, %s63
      %s78 = sphi 0, %s64
      %s82 = sphi 0, %s82
      %s84 = sphi 0, %s82
      %s85 = sphi 0, %s84
      %s99 = sphi 0, %s85
      %s103 = sphi 0, %s103
      %s105 = sphi 0, %s103
      %s106 = sphi 0, %s105
      %s120 = sphi 0, %s106
      %s128 = sphi 0, %s130
      %s131 = sphi 0, %s128
      %s132 = sphi 0, %s131
      %s148 = sphi 0, %s132
    $region4: #{tpu_custom_call.1} parent=1 // loop_header_branch
      %16 = sbr.rel (%p14) target = $region8
    $region5: #{tpu_custom_call.1} parent=1 // loop_body
      %s18 = ssub.s32 %s13, 1
      %s19 = ssub.s32 %s13, 2
      %s26 = sadd.s32 1, %s21
      %p27 = scmp.ge.s32.totalorder %s26, 1
      %s28 = scalar_select %p27, 0, %s26
      %s29 = sadd.s32 1, %s20
      %s30 = scalar_select %p27, %s29, %s20
      %p31 = scmp.ge.s32.totalorder %s30, 2
      %s32 = scalar_select %p31, 0, %s30
      %s33 = ssub.s32 %s20, %s32
      %s34 = ssub.s32 %s21, %s28
      %s35 = sor.u32 %s33, %s34
      %p36 = scmp.eq.s32.totalorder %s35, 0
      %s38 = sadd.s32 %s37, 1
      %s39 = scalar_select %p36, %s37, %s38
      %p42 = pneg %p36
      %p43 = scmp.eq.s32.totalorder %s13, 1
      %p44 = por %p42, %p43
      %p45 = scmp.ne.s32.totalorder %s37, %s40
      %p46 = scmp.eq.s32.totalorder %s13, 0
      %p47 = por %p45, %p46
      %p48 = scmp.ne.s32.totalorder %s37, %s40
      %p49 = scmp.eq.s32.totalorder %s18, 1
      %p50 = por %p48, %p49
      %p51 = scmp.ne.s32.totalorder %s40, %s41
      %p52 = scmp.eq.s32.totalorder %s18, 0
      %p53 = por %p51, %p52
      %p54 = scmp.ne.s32.totalorder %s40, %s41
      %p55 = scmp.eq.s32.totalorder %s19, 1
      %p56 = por %p54, %p55
      %p58 = scmp.ne.s32.totalorder %s41, %s57
      %p59 = scmp.eq.s32.totalorder %s19, 0
      %p60 = por %p58, %p59
      %s62 = sadd.s32 %s61, 1
      %p65 = scmp.eq.s32.totalorder %s13, 1
      %p66 = scmp.ne.s32.totalorder %s61, %s63
      %p67 = scmp.eq.s32.totalorder %s13, 0
      %p68 = por %p66, %p67
      %p69 = scmp.ne.s32.totalorder %s61, %s63
      %p70 = scmp.eq.s32.totalorder %s18, 1
      %p71 = por %p69, %p70
      %p72 = scmp.ne.s32.totalorder %s63, %s64
      %p73 = scmp.eq.s32.totalorder %s18, 0
      %p74 = por %p72, %p73
      %p75 = scmp.ne.s32.totalorder %s63, %s64
      %p76 = scmp.eq.s32.totalorder %s19, 1
      %p77 = por %p75, %p76
      %p79 = scmp.ne.s32.totalorder %s64, %s78
      %p80 = scmp.eq.s32.totalorder %s19, 0
      %p81 = por %p79, %p80
      %s83 = sadd.s32 %s82, 1
      %p86 = scmp.eq.s32.totalorder %s13, 1
      %p87 = scmp.ne.s32.totalorder %s82, %s84
      %p88 = scmp.eq.s32.totalorder %s13, 0
      %p89 = por %p87, %p88
      %p90 = scmp.ne.s32.totalorder %s82, %s84
      %p91 = scmp.eq.s32.totalorder %s18, 1
      %p92 = por %p90, %p91
      %p93 = scmp.ne.s32.totalorder %s84, %s85
      %p94 = scmp.eq.s32.totalorder %s18, 0
      %p95 = por %p93, %p94
      %p96 = scmp.ne.s32.totalorder %s84, %s85
      %p97 = scmp.eq.s32.totalorder %s19, 1
      %p98 = por %p96, %p97
      %p100 = scmp.ne.s32.totalorder %s85, %s99
      %p101 = scmp.eq.s32.totalorder %s19, 0
      %p102 = por %p100, %p101
      %s104 = sadd.s32 %s103, 1
      %p107 = scmp.eq.s32.totalorder %s13, 1
      %p108 = scmp.ne.s32.totalorder %s103, %s105
      %p109 = scmp.eq.s32.totalorder %s13, 0
      %p110 = por %p108, %p109
      %p111 = scmp.ne.s32.totalorder %s103, %s105
      %p112 = scmp.eq.s32.totalorder %s18, 1
      %p113 = por %p111, %p112
      %p114 = scmp.ne.s32.totalorder %s105, %s106
      %p115 = scmp.eq.s32.totalorder %s18, 0
      %p116 = por %p114, %p115
      %p117 = scmp.ne.s32.totalorder %s105, %s106
      %p118 = scmp.eq.s32.totalorder %s19, 1
      %p119 = por %p117, %p118
      %p121 = scmp.ne.s32.totalorder %s106, %s120
      %p122 = scmp.eq.s32.totalorder %s19, 0
      %p123 = por %p121, %p122
      %s124 = ssub.s32 %s20, %s32
      %s125 = ssub.s32 %s21, %s28
      %s126 = sor.u32 %s124, %s125
      %p127 = scmp.eq.s32.totalorder %s126, 0
      %s129 = sadd.s32 %s128, 1
      %s130 = scalar_select %p127, %s128, %s129
      %p133 = pneg %p127
      %p134 = scmp.eq.s32.totalorder %s13, 1
      %p135 = por %p133, %p134
      %p136 = scmp.ne.s32.totalorder %s128, %s131
      %p137 = scmp.eq.s32.totalorder %s13, 0
      %p138 = por %p136, %p137
      %p139 = scmp.ne.s32.totalorder %s128, %s131
      %p140 = scmp.eq.s32.totalorder %s18, 1
      %p141 = por %p139, %p140
      %p142 = scmp.ne.s32.totalorder %s131, %s132
      %p143 = scmp.eq.s32.totalorder %s18, 0
      %p144 = por %p142, %p143
      %p145 = scmp.ne.s32.totalorder %s131, %s132
      %p146 = scmp.eq.s32.totalorder %s19, 1
      %p147 = por %p145, %p146
      %p149 = scmp.ne.s32.totalorder %s132, %s148
      %p150 = scmp.eq.s32.totalorder %s19, 0
      %p151 = por %p149, %p150
      %p152 = scmp.le.s32.totalorder 1, %s13
      %p153 = scmp.lt.s32.totalorder %s13, 3
      %p154 = pnand %p152, %p153
      %p155 = pneg %p154
      // Predicated region
      $region9: #{tpu_custom_call.1} parent=5 // pred_check
        _
      $region10: #{tpu_custom_call.1} parent=5 // pred_check_branch
        %157 = sbr.rel (%p154) target = $region12
      $region11: #{tpu_custom_call.1} parent=5 // pred_region
        %s158 = ssub.s32 %s13, 1
        // Predicated region
        $region13: #{tpu_custom_call.1} parent=11 // pred_check
          %p159 = pneg %p74
        $region14: #{tpu_custom_call.1} parent=11 // pred_check_branch
          %161 = sbr.rel (%p159) target = $region16
        $region15: #{tpu_custom_call.1} parent=11 // pred_region
          _
        $region16: #{tpu_custom_call.1} parent=11 // pred_fallthru
          _
        // Predicated region
        $region17: #{tpu_custom_call.1} parent=11 // pred_check
          %p162 = pneg %p95
        $region18: #{tpu_custom_call.1} parent=11 // pred_check_branch
          %164 = sbr.rel (%p162) target = $region20
        $region19: #{tpu_custom_call.1} parent=11 // pred_region
          _
        $region20: #{tpu_custom_call.1} parent=11 // pred_fallthru
          _
        // Predicated region
        $region21: #{tpu_custom_call.1} parent=11 // pred_check
          %p165 = pneg %p116
        $region22: #{tpu_custom_call.1} parent=11 // pred_check_branch
          %167 = sbr.rel (%p165) target = $region24
        $region23: #{tpu_custom_call.1} parent=11 // pred_region
          _
        $region24: #{tpu_custom_call.1} parent=11 // pred_fallthru
          _
      $region12: #{tpu_custom_call.1} parent=5 // pred_fallthru
        _
      %p168 = scmp.lt.s32.totalorder %s13, 2
      // Predicated region
      $region25: #{tpu_custom_call.1} parent=5 // pred_check
        %p169 = pneg %p168
      $region26: #{tpu_custom_call.1} parent=5 // pred_check_branch
        %171 = sbr.rel (%p169) target = $region28
      $region27: #{tpu_custom_call.1} parent=5 // pred_region
        // Predicated region
        $region29: #{tpu_custom_call.1} parent=27 // pred_check
          %p172 = pneg %p47
        $region30: #{tpu_custom_call.1} parent=27 // pred_check_branch
          %174 = sbr.rel (%p172) target = $region32
        $region31: #{tpu_custom_call.1} parent=27 // pred_region
          %s175 = smul.u32 2, %s21
          %p176 = scmp.lt.s32.totalorder %s20, 1
          %s177 = scalar_select %p176, %s20, 1
          %p178 = scmp.lt.s32.totalorder %s175, 1
          %s179 = scalar_select %p178, %s175, 1
          %s180 = smul.addr %s177, 2
          %s181 = sadd.s32 %s179, %s180
          %s182 = smul.addr %s181, 4
          %s183 = scalar_lea.vmem %s0, %s182
          %s184 = smul.u32 2, %s21
        $region32: #{tpu_custom_call.1} parent=27 // pred_fallthru
          _
      $region28: #{tpu_custom_call.1} parent=5 // pred_fallthru
        _
      %p185 = scmp.le.s32.totalorder 1, %s13
      %p186 = scmp.lt.s32.totalorder %s13, 3
      %p187 = pnand %p185, %p186
      %p188 = pneg %p187
      // Predicated region
      $region33: #{tpu_custom_call.1} parent=5 // pred_check
        _
      $region34: #{tpu_custom_call.1} parent=5 // pred_check_branch
        %190 = sbr.rel (%p187) target = $region36
      $region35: #{tpu_custom_call.1} parent=5 // pred_region
        %s191 = ssub.s32 %s13, 1
        %s192 = smul.u32 2, %s23
        %p193 = scmp.lt.s32.totalorder %s22, 1
        %s194 = scalar_select %p193, %s22, 1
        %p195 = scmp.lt.s32.totalorder %s192, 1
        %s196 = scalar_select %p195, %s192, 1
        %s197 = smul.addr %s194, 2
        %s198 = sadd.s32 %s196, %s197
        %s199 = smul.addr %s198, 4
        %s200 = scalar_lea.vmem %s0, %s199
        %p201 = pneg %p53
        %p202 = pneg %p50
        %p203 = pneg %p74
        %p204 = pneg %p71
        %p205 = pneg %p95
        %p206 = pneg %p92
        %p207 = pneg %p116
        %p208 = pneg %p113
        %p209 = pneg %p144
        %p210 = pneg %p141
        %s211 = sand.u32 %s131, 1
        %s212 = scalar_lea.sflag [#allocation3], %s211
        %s213 = sand.u32 %s131, 1
        %s214 = smul.addr %s213, 64
        %s215 = scalar_lea.vmem [#allocation2], %s214
        %s216 = smul.u32 2, %s23
        %p217 = scmp.lt.s32.totalorder %s22, 1
        %s218 = scalar_select %p217, %s22, 1
        %p219 = scmp.lt.s32.totalorder %s216, 1
        %s220 = scalar_select %p219, %s216, 1
        %s221 = smul.addr %s218, 2
        %s222 = sadd.s32 %s220, %s221
        %s223 = smul.addr %s222, 4
        %s224 = scalar_lea.vmem %s0, %s223
        %s225 = smul.u32 2, %s23
        %s226 = smul.u32 8, %s23
        %v227 = vld [vmem:[%s224] sm:$0xff]
        %v228 = vld [vmem:[%s1] sm:$0xff]
        %v230 = vcombine.high %v227, %v227
        %vm231 = vcmask 31744
        %v233 = vsel %vm231, %v228, 0
        %vm235 = vcmask 1043456
        %v236 = vsel %vm235, %v227, 0
        %v238 = vsel %vm235, %v230, 0
        %240 = vmatprep.subr.mxu0 0.0
        %241 = vmatpush1.msra.mxu0 0.0
        %242 = vmatprep.subr.mxu0 0.0
        %243 = vmatpush1.msra.mxu0 0.0
        %244 = vmatprep.subr.mxu0 0.0
        %245 = vmatpush1.msra.mxu0 0.0
        %246 = vmatprep.subr.mxu0 0.0
        %247 = vmatpush1.msra.mxu0 0.0
        %248 = vmatprep.subr.mxu0 0.0
        %249 = vmatpush1.msra.mxu0 0.0
        %250 = vmatprep.subr.mxu0 0.0
        %251 = vmatpush1.msra.mxu0 0.0
        %252 = vmatprep.subr.mxu0 0.0
        %253 = vmatpush1.msra.mxu0 0.0
        %254 = vmatprep.subr.mxu0 0.0
        %255 = vmatpush1.msra.mxu0 0.0
        %256 = vmatprep.subr.mxu0 0.0
        %257 = vmatpush1.msra.mxu0 0.0
        %258 = vmatprep.subr.mxu0 0.0
        %259 = vmatpush1.msra.mxu0 0.0
        %260 = vmatprep.subr.mxu0 0.0
        %261 = vmatpush1.msra.mxu0 0.0
        %262 = vmatprep.subr.mxu0 0.0
        %263 = vmatpush1.msra.mxu0 0.0
        %264 = vmatprep.subr.mxu0 0.0
        %265 = vmatpush1.msra.mxu0 0.0
        %266 = vmatprep.subr.mxu0 0.0
        %267 = vmatpush1.msra.mxu0 0.0
        %268 = vmatprep.subr.mxu0 0.0
        %269 = vmatpush1.msra.mxu0 0.0
        %270 = vmatprep.subr.mxu0 %v238
        %271 = vmatpush1.msra.mxu0 %v236
        %272 = vmatprep.subr.mxu0 0.0
        %273 = vmatpush2.msra.mxu0 0.0
        %274 = vmatprep.subr.mxu0 0.0
        %275 = vmatpush2.msra.mxu0 0.0
        %276 = vmatprep.subr.mxu0 0.0
        %277 = vmatpush2.msra.mxu0 0.0
        %278 = vmatprep.subr.mxu0 0.0
        %279 = vmatpush2.msra.mxu0 0.0
        %280 = vmatprep.subr.mxu0 0.0
        %281 = vmatpush2.msra.mxu0 0.0
        %282 = vmatprep.subr.mxu0 0.0
        %283 = vmatpush2.msra.mxu0 0.0
        %284 = vmatprep.subr.mxu0 0.0
        %285 = vmatpush2.msra.mxu0 0.0
        %286 = vmatprep.subr.mxu0 0.0
        %287 = vmatpush2.msra.mxu0 0.0
        %288 = vmatprep.subr.mxu0 0.0
        %289 = vmatpush2.msra.mxu0 0.0
        %290 = vmatprep.subr.mxu0 0.0
        %291 = vmatpush2.msra.mxu0 0.0
        %292 = vmatprep.subr.mxu0 0.0
        %293 = vmatpush2.msra.mxu0 0.0
        %294 = vmatprep.subr.mxu0 0.0
        %295 = vmatpush2.msra.mxu0 0.0
        %296 = vmatprep.subr.mxu0 0.0
        %297 = vmatpush2.msra.mxu0 0.0
        %298 = vmatprep.subr.mxu0 0.0
        %299 = vmatpush2.msra.mxu0 0.0
        %300 = vmatprep.subr.mxu0 0.0
        %301 = vmatpush2.msra.mxu0 0.0
        %302 = vmatprep.subr.mxu0 0.0
        %303 = vmatpush2.msra.mxu0 0.0
        %304 = vmatprep.mubr.f32.mxu0 0.0
        %305 = vmatmul.mubr.f32.gmra.mxu0 %v233
        %v306 = vpop.f32.mrf.mxu0
        %v307 = vadd.f32 0.0, %v306
        %v308 = vpop.f32.mrf.mxu0
        %v309 = vadd.f32 0.0, %v308
        %310 = vdwg.mxu0
        %s311 = scalar_lea.vmem %s1, 8
        %v312 = vld [vmem:[%s311] sm:$0xff]
        %v314 = vsel %vm231, %v312, 0
        %316 = vmatprep.subr.mxu0 0.0
        %317 = vmatpush1.msra.mxu0 0.0
        %318 = vmatprep.subr.mxu0 0.0
        %319 = vmatpush1.msra.mxu0 0.0
        %320 = vmatprep.subr.mxu0 0.0
        %321 = vmatpush1.msra.mxu0 0.0
        %322 = vmatprep.subr.mxu0 0.0
        %323 = vmatpush1.msra.mxu0 0.0
        %324 = vmatprep.subr.mxu0 0.0
        %325 = vmatpush1.msra.mxu0 0.0
        %326 = vmatprep.subr.mxu0 0.0
        %327 = vmatpush1.msra.mxu0 0.0
        %328 = vmatprep.subr.mxu0 0.0
        %329 = vmatpush1.msra.mxu0 0.0
        %330 = vmatprep.subr.mxu0 0.0
        %331 = vmatpush1.msra.mxu0 0.0
        %332 = vmatprep.subr.mxu0 0.0
        %333 = vmatpush1.msra.mxu0 0.0
        %334 = vmatprep.subr.mxu0 0.0
        %335 = vmatpush1.msra.mxu0 0.0
        %336 = vmatprep.subr.mxu0 0.0
        %337 = vmatpush1.msra.mxu0 0.0
        %338 = vmatprep.subr.mxu0 0.0
        %339 = vmatpush1.msra.mxu0 0.0
        %340 = vmatprep.subr.mxu0 0.0
        %341 = vmatpush1.msra.mxu0 0.0
        %342 = vmatprep.subr.mxu0 0.0
        %343 = vmatpush1.msra.mxu0 0.0
        %344 = vmatprep.subr.mxu0 0.0
        %345 = vmatpush1.msra.mxu0 0.0
        %346 = vmatprep.subr.mxu0 %v238
        %347 = vmatpush1.msra.mxu0 %v236
        %348 = vmatprep.subr.mxu0 0.0
        %349 = vmatpush2.msra.mxu0 0.0
        %350 = vmatprep.subr.mxu0 0.0
        %351 = vmatpush2.msra.mxu0 0.0
        %352 = vmatprep.subr.mxu0 0.0
        %353 = vmatpush2.msra.mxu0 0.0
        %354 = vmatprep.subr.mxu0 0.0
        %355 = vmatpush2.msra.mxu0 0.0
        %356 = vmatprep.subr.mxu0 0.0
        %357 = vmatpush2.msra.mxu0 0.0
        %358 = vmatprep.subr.mxu0 0.0
        %359 = vmatpush2.msra.mxu0 0.0
        %360 = vmatprep.subr.mxu0 0.0
        %361 = vmatpush2.msra.mxu0 0.0
        %362 = vmatprep.subr.mxu0 0.0
        %363 = vmatpush2.msra.mxu0 0.0
        %364 = vmatprep.subr.mxu0 0.0
        %365 = vmatpush2.msra.mxu0 0.0
        %366 = vmatprep.subr.mxu0 0.0
        %367 = vmatpush2.msra.mxu0 0.0
        %368 = vmatprep.subr.mxu0 0.0
        %369 = vmatpush2.msra.mxu0 0.0
        %370 = vmatprep.subr.mxu0 0.0
        %371 = vmatpush2.msra.mxu0 0.0
        %372 = vmatprep.subr.mxu0 0.0
        %373 = vmatpush2.msra.mxu0 0.0
        %374 = vmatprep.subr.mxu0 0.0
        %375 = vmatpush2.msra.mxu0 0.0
        %376 = vmatprep.subr.mxu0 0.0
        %377 = vmatpush2.msra.mxu0 0.0
        %378 = vmatprep.subr.mxu0 0.0
        %379 = vmatpush2.msra.mxu0 0.0
        %380 = vmatprep.mubr.f32.mxu0 0.0
        %381 = vmatmul.mubr.f32.gmra.mxu0 %v314
        %v382 = vpop.f32.mrf.mxu0
        %v383 = vadd.f32 0.0, %v382
        %v384 = vpop.f32.mrf.mxu0
        %v385 = vadd.f32 0.0, %v384
        %386 = vdwg.mxu0
        %s387 = scalar_lea.vmem %s1, 16
        %v388 = vld [vmem:[%s387] sm:$0xff]
        %v390 = vsel %vm231, %v388, 0
        %392 = vmatprep.subr.mxu0 0.0
        %393 = vmatpush1.msra.mxu0 0.0
        %394 = vmatprep.subr.mxu0 0.0
        %395 = vmatpush1.msra.mxu0 0.0
        %396 = vmatprep.subr.mxu0 0.0
        %397 = vmatpush1.msra.mxu0 0.0
        %398 = vmatprep.subr.mxu0 0.0
        %399 = vmatpush1.msra.mxu0 0.0
        %400 = vmatprep.subr.mxu0 0.0
        %401 = vmatpush1.msra.mxu0 0.0
        %402 = vmatprep.subr.mxu0 0.0
        %403 = vmatpush1.msra.mxu0 0.0
        %404 = vmatprep.subr.mxu0 0.0
        %405 = vmatpush1.msra.mxu0 0.0
        %406 = vmatprep.subr.mxu0 0.0
        %407 = vmatpush1.msra.mxu0 0.0
        %408 = vmatprep.subr.mxu0 0.0
        %409 = vmatpush1.msra.mxu0 0.0
        %410 = vmatprep.subr.mxu0 0.0
        %411 = vmatpush1.msra.mxu0 0.0
        %412 = vmatprep.subr.mxu0 0.0
        %413 = vmatpush1.msra.mxu0 0.0
        %414 = vmatprep.subr.mxu0 0.0
        %415 = vmatpush1.msra.mxu0 0.0
        %416 = vmatprep.subr.mxu0 0.0
        %417 = vmatpush1.msra.mxu0 0.0
        %418 = vmatprep.subr.mxu0 0.0
        %419 = vmatpush1.msra.mxu0 0.0
        %420 = vmatprep.subr.mxu0 0.0
        %421 = vmatpush1.msra.mxu0 0.0
        %422 = vmatprep.subr.mxu0 %v238
        %423 = vmatpush1.msra.mxu0 %v236
        %424 = vmatprep.subr.mxu0 0.0
        %425 = vmatpush2.msra.mxu0 0.0
        %426 = vmatprep.subr.mxu0 0.0
        %427 = vmatpush2.msra.mxu0 0.0
        %428 = vmatprep.subr.mxu0 0.0
        %429 = vmatpush2.msra.mxu0 0.0
        %430 = vmatprep.subr.mxu0 0.0
        %431 = vmatpush2.msra.mxu0 0.0
        %432 = vmatprep.subr.mxu0 0.0
        %433 = vmatpush2.msra.mxu0 0.0
        %434 = vmatprep.subr.mxu0 0.0
        %435 = vmatpush2.msra.mxu0 0.0
        %436 = vmatprep.subr.mxu0 0.0
        %437 = vmatpush2.msra.mxu0 0.0
        %438 = vmatprep.subr.mxu0 0.0
        %439 = vmatpush2.msra.mxu0 0.0
        %440 = vmatprep.subr.mxu0 0.0
        %441 = vmatpush2.msra.mxu0 0.0
        %442 = vmatprep.subr.mxu0 0.0
        %443 = vmatpush2.msra.mxu0 0.0
        %444 = vmatprep.subr.mxu0 0.0
        %445 = vmatpush2.msra.mxu0 0.0
        %446 = vmatprep.subr.mxu0 0.0
        %447 = vmatpush2.msra.mxu0 0.0
        %448 = vmatprep.subr.mxu0 0.0
        %449 = vmatpush2.msra.mxu0 0.0
        %450 = vmatprep.subr.mxu0 0.0
        %451 = vmatpush2.msra.mxu0 0.0
        %452 = vmatprep.subr.mxu0 0.0
        %453 = vmatpush2.msra.mxu0 0.0
        %454 = vmatprep.subr.mxu0 0.0
        %455 = vmatpush2.msra.mxu0 0.0
        %456 = vmatprep.mubr.f32.mxu0 0.0
        %457 = vmatmul.mubr.f32.gmra.mxu0 %v390
        %v458 = vpop.f32.mrf.mxu0
        %v459 = vadd.f32 0.0, %v458
        %v460 = vpop.f32.mrf.mxu0
        %v461 = vadd.f32 0.0, %v460
        %462 = vdwg.mxu0
        %s463 = scalar_lea.vmem %s1, 24
        %v464 = vld [vmem:[%s463] sm:$0xff]
        %v466 = vsel %vm231, %v464, 0
        %468 = vmatprep.subr.mxu0 0.0
        %469 = vmatpush1.msra.mxu0 0.0
        %470 = vmatprep.subr.mxu0 0.0
        %471 = vmatpush1.msra.mxu0 0.0
        %472 = vmatprep.subr.mxu0 0.0
        %473 = vmatpush1.msra.mxu0 0.0
        %474 = vmatprep.subr.mxu0 0.0
        %475 = vmatpush1.msra.mxu0 0.0
        %476 = vmatprep.subr.mxu0 0.0
        %477 = vmatpush1.msra.mxu0 0.0
        %478 = vmatprep.subr.mxu0 0.0
        %479 = vmatpush1.msra.mxu0 0.0
        %480 = vmatprep.subr.mxu0 0.0
        %481 = vmatpush1.msra.mxu0 0.0
        %482 = vmatprep.subr.mxu0 0.0
        %483 = vmatpush1.msra.mxu0 0.0
        %484 = vmatprep.subr.mxu0 0.0
        %485 = vmatpush1.msra.mxu0 0.0
        %486 = vmatprep.subr.mxu0 0.0
        %487 = vmatpush1.msra.mxu0 0.0
        %488 = vmatprep.subr.mxu0 0.0
        %489 = vmatpush1.msra.mxu0 0.0
        %490 = vmatprep.subr.mxu0 0.0
        %491 = vmatpush1.msra.mxu0 0.0
        %492 = vmatprep.subr.mxu0 0.0
        %493 = vmatpush1.msra.mxu0 0.0
        %494 = vmatprep.subr.mxu0 0.0
        %495 = vmatpush1.msra.mxu0 0.0
        %496 = vmatprep.subr.mxu0 0.0
        %497 = vmatpush1.msra.mxu0 0.0
        %498 = vmatprep.subr.mxu0 %v238
        %499 = vmatpush1.msra.mxu0 %v236
        %500 = vmatprep.subr.mxu0 0.0
        %501 = vmatpush2.msra.mxu0 0.0
        %502 = vmatprep.subr.mxu0 0.0
        %503 = vmatpush2.msra.mxu0 0.0
        %504 = vmatprep.subr.mxu0 0.0
        %505 = vmatpush2.msra.mxu0 0.0
        %506 = vmatprep.subr.mxu0 0.0
        %507 = vmatpush2.msra.mxu0 0.0
        %508 = vmatprep.subr.mxu0 0.0
        %509 = vmatpush2.msra.mxu0 0.0
        %510 = vmatprep.subr.mxu0 0.0
        %511 = vmatpush2.msra.mxu0 0.0
        %512 = vmatprep.subr.mxu0 0.0
        %513 = vmatpush2.msra.mxu0 0.0
        %514 = vmatprep.subr.mxu0 0.0
        %515 = vmatpush2.msra.mxu0 0.0
        %516 = vmatprep.subr.mxu0 0.0
        %517 = vmatpush2.msra.mxu0 0.0
        %518 = vmatprep.subr.mxu0 0.0
        %519 = vmatpush2.msra.mxu0 0.0
        %520 = vmatprep.subr.mxu0 0.0
        %521 = vmatpush2.msra.mxu0 0.0
        %522 = vmatprep.subr.mxu0 0.0
        %523 = vmatpush2.msra.mxu0 0.0
        %524 = vmatprep.subr.mxu0 0.0
        %525 = vmatpush2.msra.mxu0 0.0
        %526 = vmatprep.subr.mxu0 0.0
        %527 = vmatpush2.msra.mxu0 0.0
        %528 = vmatprep.subr.mxu0 0.0
        %529 = vmatpush2.msra.mxu0 0.0
        %530 = vmatprep.subr.mxu0 0.0
        %531 = vmatpush2.msra.mxu0 0.0
        %532 = vmatprep.mubr.f32.mxu0 0.0
        %533 = vmatmul.mubr.f32.gmra.mxu0 %v466
        %v534 = vpop.f32.mrf.mxu0
        %v535 = vadd.f32 0.0, %v534
        %v536 = vpop.f32.mrf.mxu0
        %v537 = vadd.f32 0.0, %v536
        %538 = vdwg.mxu0
        %v539 = vld [vmem:[%s3] sm:$0xff]
        %v540 = vld [vmem:[%s3 + $0x8] sm:$0xff]
        %s541 = scalar_lea.vmem %s3, 16
        %v542 = vld [vmem:[%s541] sm:$0xff]
        %v543 = vld [vmem:[%s541 + $0x8] sm:$0xff]
        %v544 = vld [vmem:[%s2] sm:$0xff]
        %vm545 = vcmask 130048
        %v547 = vsel %vm545, %v383, 0
        %549 = vmatprep.subr.mxu0 0.0
        %550 = vmatpush1.msra.mxu0 0.0
        %551 = vmatprep.subr.mxu0 0.0
        %552 = vmatpush1.msra.mxu0 0.0
        %553 = vmatprep.subr.mxu0 0.0
        %554 = vmatpush1.msra.mxu0 0.0
        %555 = vmatprep.subr.mxu0 0.0
        %556 = vmatpush1.msra.mxu0 0.0
        %557 = vmatprep.subr.mxu0 0.0
        %558 = vmatpush1.msra.mxu0 0.0
        %559 = vmatprep.subr.mxu0 0.0
        %560 = vmatpush1.msra.mxu0 0.0
        %561 = vmatprep.subr.mxu0 0.0
        %562 = vmatpush1.msra.mxu0 0.0
        %563 = vmatprep.subr.mxu0 0.0
        %564 = vmatpush1.msra.mxu0 0.0
        %565 = vmatprep.subr.mxu0 0.0
        %566 = vmatpush1.msra.mxu0 0.0
        %567 = vmatprep.subr.mxu0 0.0
        %568 = vmatpush1.msra.mxu0 0.0
        %569 = vmatprep.subr.mxu0 0.0
        %570 = vmatpush1.msra.mxu0 0.0
        %571 = vmatprep.subr.mxu0 0.0
        %572 = vmatpush1.msra.mxu0 0.0
        %573 = vmatprep.subr.mxu0 0.0
        %574 = vmatpush1.msra.mxu0 0.0
        %575 = vmatprep.subr.mxu0 0.0
        %576 = vmatpush1.msra.mxu0 0.0
        %577 = vmatprep.subr.mxu0 0.0
        %578 = vmatpush1.msra.mxu0 %v543
        %579 = vmatprep.subr.mxu0 0.0
        %580 = vmatpush1.msra.mxu0 %v542
        %581 = vmatprep.subr.mxu0 0.0
        %582 = vmatpush2.msra.mxu0 0.0
        %583 = vmatprep.subr.mxu0 0.0
        %584 = vmatpush2.msra.mxu0 0.0
        %585 = vmatprep.subr.mxu0 0.0
        %586 = vmatpush2.msra.mxu0 0.0
        %587 = vmatprep.subr.mxu0 0.0
        %588 = vmatpush2.msra.mxu0 0.0
        %589 = vmatprep.subr.mxu0 0.0
        %590 = vmatpush2.msra.mxu0 0.0
        %591 = vmatprep.subr.mxu0 0.0
        %592 = vmatpush2.msra.mxu0 0.0
        %593 = vmatprep.subr.mxu0 0.0
        %594 = vmatpush2.msra.mxu0 0.0
        %595 = vmatprep.subr.mxu0 0.0
        %596 = vmatpush2.msra.mxu0 0.0
        %597 = vmatprep.subr.mxu0 0.0
        %598 = vmatpush2.msra.mxu0 0.0
        %599 = vmatprep.subr.mxu0 0.0
        %600 = vmatpush2.msra.mxu0 0.0
        %601 = vmatprep.subr.mxu0 0.0
        %602 = vmatpush2.msra.mxu0 0.0
        %603 = vmatprep.subr.mxu0 0.0
        %604 = vmatpush2.msra.mxu0 0.0
        %605 = vmatprep.subr.mxu0 0.0
        %606 = vmatpush2.msra.mxu0 0.0
        %607 = vmatprep.subr.mxu0 0.0
        %608 = vmatpush2.msra.mxu0 0.0
        %609 = vmatprep.subr.mxu0 0.0
        %610 = vmatpush2.msra.mxu0 0.0
        %611 = vmatprep.subr.mxu0 0.0
        %612 = vmatpush2.msra.mxu0 0.0
        %613 = vmatprep.mubr.f32.mxu0 0.0
        %614 = vmatmul.mubr.f32.gmra.mxu0 %v547
        %v615 = vpop.f32.mrf.mxu0
        %v616 = vadd.f32 0.0, %v615
        %v617 = vpop.f32.mrf.mxu0
        %618 = vdwg.mxu0
        %v620 = vsel %vm545, %v307, 0
        %622 = vmatprep.subr.mxu0 0.0
        %623 = vmatpush1.msra.mxu0 0.0
        %624 = vmatprep.subr.mxu0 0.0
        %625 = vmatpush1.msra.mxu0 0.0
        %626 = vmatprep.subr.mxu0 0.0
        %627 = vmatpush1.msra.mxu0 0.0
        %628 = vmatprep.subr.mxu0 0.0
        %629 = vmatpush1.msra.mxu0 0.0
        %630 = vmatprep.subr.mxu0 0.0
        %631 = vmatpush1.msra.mxu0 0.0
        %632 = vmatprep.subr.mxu0 0.0
        %633 = vmatpush1.msra.mxu0 0.0
        %634 = vmatprep.subr.mxu0 0.0
        %635 = vmatpush1.msra.mxu0 0.0
        %636 = vmatprep.subr.mxu0 0.0
        %637 = vmatpush1.msra.mxu0 0.0
        %638 = vmatprep.subr.mxu0 0.0
        %639 = vmatpush1.msra.mxu0 0.0
        %640 = vmatprep.subr.mxu0 0.0
        %641 = vmatpush1.msra.mxu0 0.0
        %642 = vmatprep.subr.mxu0 0.0
        %643 = vmatpush1.msra.mxu0 0.0
        %644 = vmatprep.subr.mxu0 0.0
        %645 = vmatpush1.msra.mxu0 0.0
        %646 = vmatprep.subr.mxu0 0.0
        %647 = vmatpush1.msra.mxu0 0.0
        %648 = vmatprep.subr.mxu0 0.0
        %649 = vmatpush1.msra.mxu0 0.0
        %650 = vmatprep.subr.mxu0 0.0
        %651 = vmatpush1.msra.mxu0 %v540
        %652 = vmatprep.subr.mxu0 0.0
        %653 = vmatpush1.msra.mxu0 %v539
        %654 = vmatprep.subr.mxu0 0.0
        %655 = vmatpush2.msra.mxu0 0.0
        %656 = vmatprep.subr.mxu0 0.0
        %657 = vmatpush2.msra.mxu0 0.0
        %658 = vmatprep.subr.mxu0 0.0
        %659 = vmatpush2.msra.mxu0 0.0
        %660 = vmatprep.subr.mxu0 0.0
        %661 = vmatpush2.msra.mxu0 0.0
        %662 = vmatprep.subr.mxu0 0.0
        %663 = vmatpush2.msra.mxu0 0.0
        %664 = vmatprep.subr.mxu0 0.0
        %665 = vmatpush2.msra.mxu0 0.0
        %666 = vmatprep.subr.mxu0 0.0
        %667 = vmatpush2.msra.mxu0 0.0
        %668 = vmatprep.subr.mxu0 0.0
        %669 = vmatpush2.msra.mxu0 0.0
        %670 = vmatprep.subr.mxu0 0.0
        %671 = vmatpush2.msra.mxu0 0.0
        %672 = vmatprep.subr.mxu0 0.0
        %673 = vmatpush2.msra.mxu0 0.0
        %674 = vmatprep.subr.mxu0 0.0
        %675 = vmatpush2.msra.mxu0 0.0
        %676 = vmatprep.subr.mxu0 0.0
        %677 = vmatpush2.msra.mxu0 0.0
        %678 = vmatprep.subr.mxu0 0.0
        %679 = vmatpush2.msra.mxu0 0.0
        %680 = vmatprep.subr.mxu0 0.0
        %681 = vmatpush2.msra.mxu0 0.0
        %682 = vmatprep.subr.mxu0 0.0
        %683 = vmatpush2.msra.mxu0 0.0
        %684 = vmatprep.subr.mxu0 0.0
        %685 = vmatpush2.msra.mxu0 0.0
        %686 = vmatprep.mubr.f32.mxu0 0.0
        %687 = vmatmul.mubr.f32.gmra.mxu0 %v620
        %v688 = vpop.f32.mrf.mxu0
        %v689 = vadd.f32 %v616, %v688
        %v690 = vpop.f32.mrf.mxu0
        %691 = vdwg.mxu0
        %v693 = vsel %vm545, %v535, 0
        %695 = vmatprep.subr.mxu0 0.0
        %696 = vmatpush1.msra.mxu0 0.0
        %697 = vmatprep.subr.mxu0 0.0
        %698 = vmatpush1.msra.mxu0 0.0
        %699 = vmatprep.subr.mxu0 0.0
        %700 = vmatpush1.msra.mxu0 0.0
        %701 = vmatprep.subr.mxu0 0.0
        %702 = vmatpush1.msra.mxu0 0.0
        %703 = vmatprep.subr.mxu0 0.0
        %704 = vmatpush1.msra.mxu0 0.0
        %705 = vmatprep.subr.mxu0 0.0
        %706 = vmatpush1.msra.mxu0 0.0
        %707 = vmatprep.subr.mxu0 0.0
        %708 = vmatpush1.msra.mxu0 0.0
        %709 = vmatprep.subr.mxu0 0.0
        %710 = vmatpush1.msra.mxu0 0.0
        %711 = vmatprep.subr.mxu0 0.0
        %712 = vmatpush1.msra.mxu0 0.0
        %713 = vmatprep.subr.mxu0 0.0
        %714 = vmatpush1.msra.mxu0 0.0
        %715 = vmatprep.subr.mxu0 0.0
        %716 = vmatpush1.msra.mxu0 0.0
        %717 = vmatprep.subr.mxu0 0.0
        %718 = vmatpush1.msra.mxu0 0.0
        %719 = vmatprep.subr.mxu0 0.0
        %720 = vmatpush1.msra.mxu0 0.0
        %721 = vmatprep.subr.mxu0 0.0
        %722 = vmatpush1.msra.mxu0 0.0
        %723 = vmatprep.subr.mxu0 0.0
        %724 = vmatpush1.msra.mxu0 %v543
        %725 = vmatprep.subr.mxu0 0.0
        %726 = vmatpush1.msra.mxu0 %v542
        %727 = vmatprep.subr.mxu0 0.0
        %728 = vmatpush2.msra.mxu0 0.0
        %729 = vmatprep.subr.mxu0 0.0
        %730 = vmatpush2.msra.mxu0 0.0
        %731 = vmatprep.subr.mxu0 0.0
        %732 = vmatpush2.msra.mxu0 0.0
        %733 = vmatprep.subr.mxu0 0.0
        %734 = vmatpush2.msra.mxu0 0.0
        %735 = vmatprep.subr.mxu0 0.0
        %736 = vmatpush2.msra.mxu0 0.0
        %737 = vmatprep.subr.mxu0 0.0
        %738 = vmatpush2.msra.mxu0 0.0
        %739 = vmatprep.subr.mxu0 0.0
        %740 = vmatpush2.msra.mxu0 0.0
        %741 = vmatprep.subr.mxu0 0.0
        %742 = vmatpush2.msra.mxu0 0.0
        %743 = vmatprep.subr.mxu0 0.0
        %744 = vmatpush2.msra.mxu0 0.0
        %745 = vmatprep.subr.mxu0 0.0
        %746 = vmatpush2.msra.mxu0 0.0
        %747 = vmatprep.subr.mxu0 0.0
        %748 = vmatpush2.msra.mxu0 0.0
        %749 = vmatprep.subr.mxu0 0.0
        %750 = vmatpush2.msra.mxu0 0.0
        %751 = vmatprep.subr.mxu0 0.0
        %752 = vmatpush2.msra.mxu0 0.0
        %753 = vmatprep.subr.mxu0 0.0
        %754 = vmatpush2.msra.mxu0 0.0
        %755 = vmatprep.subr.mxu0 0.0
        %756 = vmatpush2.msra.mxu0 0.0
        %757 = vmatprep.subr.mxu0 0.0
        %758 = vmatpush2.msra.mxu0 0.0
        %759 = vmatprep.mubr.f32.mxu0 0.0
        %760 = vmatmul.mubr.f32.gmra.mxu0 %v693
        %v761 = vpop.f32.mrf.mxu0
        %v762 = vadd.f32 0.0, %v761
        %v763 = vpop.f32.mrf.mxu0
        %764 = vdwg.mxu0
        %v766 = vsel %vm545, %v459, 0
        %768 = vmatprep.subr.mxu0 0.0
        %769 = vmatpush1.msra.mxu0 0.0
        %770 = vmatprep.subr.mxu0 0.0
        %771 = vmatpush1.msra.mxu0 0.0
        %772 = vmatprep.subr.mxu0 0.0
        %773 = vmatpush1.msra.mxu0 0.0
        %774 = vmatprep.subr.mxu0 0.0
        %775 = vmatpush1.msra.mxu0 0.0
        %776 = vmatprep.subr.mxu0 0.0
        %777 = vmatpush1.msra.mxu0 0.0
        %778 = vmatprep.subr.mxu0 0.0
        %779 = vmatpush1.msra.mxu0 0.0
        %780 = vmatprep.subr.mxu0 0.0
        %781 = vmatpush1.msra.mxu0 0.0
        %782 = vmatprep.subr.mxu0 0.0
        %783 = vmatpush1.msra.mxu0 0.0
        %784 = vmatprep.subr.mxu0 0.0
        %785 = vmatpush1.msra.mxu0 0.0
        %786 = vmatprep.subr.mxu0 0.0
        %787 = vmatpush1.msra.mxu0 0.0
        %788 = vmatprep.subr.mxu0 0.0
        %789 = vmatpush1.msra.mxu0 0.0
        %790 = vmatprep.subr.mxu0 0.0
        %791 = vmatpush1.msra.mxu0 0.0
        %792 = vmatprep.subr.mxu0 0.0
        %793 = vmatpush1.msra.mxu0 0.0
        %794 = vmatprep.subr.mxu0 0.0
        %795 = vmatpush1.msra.mxu0 0.0
        %796 = vmatprep.subr.mxu0 0.0
        %797 = vmatpush1.msra.mxu0 %v540
        %798 = vmatprep.subr.mxu0 0.0
        %799 = vmatpush1.msra.mxu0 %v539
        %800 = vmatprep.subr.mxu0 0.0
        %801 = vmatpush2.msra.mxu0 0.0
        %802 = vmatprep.subr.mxu0 0.0
        %803 = vmatpush2.msra.mxu0 0.0
        %804 = vmatprep.subr.mxu0 0.0
        %805 = vmatpush2.msra.mxu0 0.0
        %806 = vmatprep.subr.mxu0 0.0
        %807 = vmatpush2.msra.mxu0 0.0
        %808 = vmatprep.subr.mxu0 0.0
        %809 = vmatpush2.msra.mxu0 0.0
        %810 = vmatprep.subr.mxu0 0.0
        %811 = vmatpush2.msra.mxu0 0.0
        %812 = vmatprep.subr.mxu0 0.0
        %813 = vmatpush2.msra.mxu0 0.0
        %814 = vmatprep.subr.mxu0 0.0
        %815 = vmatpush2.msra.mxu0 0.0
        %816 = vmatprep.subr.mxu0 0.0
        %817 = vmatpush2.msra.mxu0 0.0
        %818 = vmatprep.subr.mxu0 0.0
        %819 = vmatpush2.msra.mxu0 0.0
        %820 = vmatprep.subr.mxu0 0.0
        %821 = vmatpush2.msra.mxu0 0.0
        %822 = vmatprep.subr.mxu0 0.0
        %823 = vmatpush2.msra.mxu0 0.0
        %824 = vmatprep.subr.mxu0 0.0
        %825 = vmatpush2.msra.mxu0 0.0
        %826 = vmatprep.subr.mxu0 0.0
        %827 = vmatpush2.msra.mxu0 0.0
        %828 = vmatprep.subr.mxu0 0.0
        %829 = vmatpush2.msra.mxu0 0.0
        %830 = vmatprep.subr.mxu0 0.0
        %831 = vmatpush2.msra.mxu0 0.0
        %832 = vmatprep.mubr.f32.mxu0 0.0
        %833 = vmatmul.mubr.f32.gmra.mxu0 %v766
        %v834 = vpop.f32.mrf.mxu0
        %v835 = vadd.f32 %v762, %v834
        %v836 = vpop.f32.mrf.mxu0
        %837 = vdwg.mxu0
        %839 = vrot.lane.b32.xlu0 %v835, 32
        %v840 = vpop.permute.xlu0 %839
        %vm842 = vcmask 261120
        %v843 = vsel %vm842, %v689, %v840
        %845 = vset.pattern.permute.xlu0 0
        %846 = vperm.xlu0 %845, %v544
        %v847 = vpop.permute.xlu0 %846
        %v849 = vadd.f32 %v843, %v847
        %vm850 = vcmask 523264
        %851 = vst.msk [vmem:[%s215] sm:$0xff] %vm850, %v849
        %852 = vrot.lane.b32.xlu0 %v383, 112
        %v853 = vpop.permute.xlu0 %852
        %v854 = vsel %vm545, %v853, 0
        %856 = vmatprep.subr.mxu0 0.0
        %857 = vmatpush1.msra.mxu0 0.0
        %858 = vmatprep.subr.mxu0 0.0
        %859 = vmatpush1.msra.mxu0 0.0
        %860 = vmatprep.subr.mxu0 0.0
        %861 = vmatpush1.msra.mxu0 0.0
        %862 = vmatprep.subr.mxu0 0.0
        %863 = vmatpush1.msra.mxu0 0.0
        %864 = vmatprep.subr.mxu0 0.0
        %865 = vmatpush1.msra.mxu0 0.0
        %866 = vmatprep.subr.mxu0 0.0
        %867 = vmatpush1.msra.mxu0 0.0
        %868 = vmatprep.subr.mxu0 0.0
        %869 = vmatpush1.msra.mxu0 0.0
        %870 = vmatprep.subr.mxu0 0.0
        %871 = vmatpush1.msra.mxu0 0.0
        %872 = vmatprep.subr.mxu0 0.0
        %873 = vmatpush1.msra.mxu0 0.0
        %874 = vmatprep.subr.mxu0 0.0
        %875 = vmatpush1.msra.mxu0 0.0
        %876 = vmatprep.subr.mxu0 0.0
        %877 = vmatpush1.msra.mxu0 0.0
        %878 = vmatprep.subr.mxu0 0.0
        %879 = vmatpush1.msra.mxu0 0.0
        %880 = vmatprep.subr.mxu0 0.0
        %881 = vmatpush1.msra.mxu0 0.0
        %882 = vmatprep.subr.mxu0 0.0
        %883 = vmatpush1.msra.mxu0 0.0
        %884 = vmatprep.subr.mxu0 0.0
        %885 = vmatpush1.msra.mxu0 %v543
        %886 = vmatprep.subr.mxu0 0.0
        %887 = vmatpush1.msra.mxu0 %v542
        %888 = vmatprep.subr.mxu0 0.0
        %889 = vmatpush2.msra.mxu0 0.0
        %890 = vmatprep.subr.mxu0 0.0
        %891 = vmatpush2.msra.mxu0 0.0
        %892 = vmatprep.subr.mxu0 0.0
        %893 = vmatpush2.msra.mxu0 0.0
        %894 = vmatprep.subr.mxu0 0.0
        %895 = vmatpush2.msra.mxu0 0.0
        %896 = vmatprep.subr.mxu0 0.0
        %897 = vmatpush2.msra.mxu0 0.0
        %898 = vmatprep.subr.mxu0 0.0
        %899 = vmatpush2.msra.mxu0 0.0
        %900 = vmatprep.subr.mxu0 0.0
        %901 = vmatpush2.msra.mxu0 0.0
        %902 = vmatprep.subr.mxu0 0.0
        %903 = vmatpush2.msra.mxu0 0.0
        %904 = vmatprep.subr.mxu0 0.0
        %905 = vmatpush2.msra.mxu0 0.0
        %906 = vmatprep.subr.mxu0 0.0
        %907 = vmatpush2.msra.mxu0 0.0
        %908 = vmatprep.subr.mxu0 0.0
        %909 = vmatpush2.msra.mxu0 0.0
        %910 = vmatprep.subr.mxu0 0.0
        %911 = vmatpush2.msra.mxu0 0.0
        %912 = vmatprep.subr.mxu0 0.0
        %913 = vmatpush2.msra.mxu0 0.0
        %914 = vmatprep.subr.mxu0 0.0
        %915 = vmatpush2.msra.mxu0 0.0
        %916 = vmatprep.subr.mxu0 0.0
        %917 = vmatpush2.msra.mxu0 0.0
        %918 = vmatprep.subr.mxu0 0.0
        %919 = vmatpush2.msra.mxu0 0.0
        %920 = vmatprep.mubr.f32.mxu0 0.0
        %921 = vmatmul.mubr.f32.gmra.mxu0 %v854
        %v922 = vpop.f32.mrf.mxu0
        %v923 = vadd.f32 0.0, %v922
        %v924 = vpop.f32.mrf.mxu0
        %925 = vdwg.mxu0
        %926 = vrot.lane.b32.xlu0 %v307, 112
        %v927 = vpop.permute.xlu0 %926
        %v928 = vsel %vm545, %v927, 0
        %930 = vmatprep.subr.mxu0 0.0
        %931 = vmatpush1.msra.mxu0 0.0
        %932 = vmatprep.subr.mxu0 0.0
        %933 = vmatpush1.msra.mxu0 0.0
        %934 = vmatprep.subr.mxu0 0.0
        %935 = vmatpush1.msra.mxu0 0.0
        %936 = vmatprep.subr.mxu0 0.0
        %937 = vmatpush1.msra.mxu0 0.0
        %938 = vmatprep.subr.mxu0 0.0
        %939 = vmatpush1.msra.mxu0 0.0
        %940 = vmatprep.subr.mxu0 0.0
        %941 = vmatpush1.msra.mxu0 0.0
        %942 = vmatprep.subr.mxu0 0.0
        %943 = vmatpush1.msra.mxu0 0.0
        %944 = vmatprep.subr.mxu0 0.0
        %945 = vmatpush1.msra.mxu0 0.0
        %946 = vmatprep.subr.mxu0 0.0
        %947 = vmatpush1.msra.mxu0 0.0
        %948 = vmatprep.subr.mxu0 0.0
        %949 = vmatpush1.msra.mxu0 0.0
        %950 = vmatprep.subr.mxu0 0.0
        %951 = vmatpush1.msra.mxu0 0.0
        %952 = vmatprep.subr.mxu0 0.0
        %953 = vmatpush1.msra.mxu0 0.0
        %954 = vmatprep.subr.mxu0 0.0
        %955 = vmatpush1.msra.mxu0 0.0
        %956 = vmatprep.subr.mxu0 0.0
        %957 = vmatpush1.msra.mxu0 0.0
        %958 = vmatprep.subr.mxu0 0.0
        %959 = vmatpush1.msra.mxu0 %v540
        %960 = vmatprep.subr.mxu0 0.0
        %961 = vmatpush1.msra.mxu0 %v539
        %962 = vmatprep.subr.mxu0 0.0
        %963 = vmatpush2.msra.mxu0 0.0
        %964 = vmatprep.subr.mxu0 0.0
        %965 = vmatpush2.msra.mxu0 0.0
        %966 = vmatprep.subr.mxu0 0.0
        %967 = vmatpush2.msra.mxu0 0.0
        %968 = vmatprep.subr.mxu0 0.0
        %969 = vmatpush2.msra.mxu0 0.0
        %970 = vmatprep.subr.mxu0 0.0
        %971 = vmatpush2.msra.mxu0 0.0
        %972 = vmatprep.subr.mxu0 0.0
        %973 = vmatpush2.msra.mxu0 0.0
        %974 = vmatprep.subr.mxu0 0.0
        %975 = vmatpush2.msra.mxu0 0.0
        %976 = vmatprep.subr.mxu0 0.0
        %977 = vmatpush2.msra.mxu0 0.0
        %978 = vmatprep.subr.mxu0 0.0
        %979 = vmatpush2.msra.mxu0 0.0
        %980 = vmatprep.subr.mxu0 0.0
        %981 = vmatpush2.msra.mxu0 0.0
        %982 = vmatprep.subr.mxu0 0.0
        %983 = vmatpush2.msra.mxu0 0.0
        %984 = vmatprep.subr.mxu0 0.0
        %985 = vmatpush2.msra.mxu0 0.0
        %986 = vmatprep.subr.mxu0 0.0
        %987 = vmatpush2.msra.mxu0 0.0
        %988 = vmatprep.subr.mxu0 0.0
        %989 = vmatpush2.msra.mxu0 0.0
        %990 = vmatprep.subr.mxu0 0.0
        %991 = vmatpush2.msra.mxu0 0.0
        %992 = vmatprep.subr.mxu0 0.0
        %993 = vmatpush2.msra.mxu0 0.0
        %994 = vmatprep.mubr.f32.mxu0 0.0
        %995 = vmatmul.mubr.f32.gmra.mxu0 %v928
        %v996 = vpop.f32.mrf.mxu0
        %v997 = vadd.f32 %v923, %v996
        %v998 = vpop.f32.mrf.mxu0
        %999 = vdwg.mxu0
        %1000 = vrot.lane.b32.xlu0 %v535, 112
        %v1001 = vpop.permute.xlu0 %1000
        %v1002 = vsel %vm545, %v1001, 0
        %1004 = vmatprep.subr.mxu0 0.0
        %1005 = vmatpush1.msra.mxu0 0.0
        %1006 = vmatprep.subr.mxu0 0.0
        %1007 = vmatpush1.msra.mxu0 0.0
        %1008 = vmatprep.subr.mxu0 0.0
        %1009 = vmatpush1.msra.mxu0 0.0
        %1010 = vmatprep.subr.mxu0 0.0
        %1011 = vmatpush1.msra.mxu0 0.0
        %1012 = vmatprep.subr.mxu0 0.0
        %1013 = vmatpush1.msra.mxu0 0.0
        %1014 = vmatprep.subr.mxu0 0.0
        %1015 = vmatpush1.msra.mxu0 0.0
        %1016 = vmatprep.subr.mxu0 0.0
        %1017 = vmatpush1.msra.mxu0 0.0
        %1018 = vmatprep.subr.mxu0 0.0
        %1019 = vmatpush1.msra.mxu0 0.0
        %1020 = vmatprep.subr.mxu0 0.0
        %1021 = vmatpush1.msra.mxu0 0.0
        %1022 = vmatprep.subr.mxu0 0.0
        %1023 = vmatpush1.msra.mxu0 0.0
        %1024 = vmatprep.subr.mxu0 0.0
        %1025 = vmatpush1.msra.mxu0 0.0
        %1026 = vmatprep.subr.mxu0 0.0
        %1027 = vmatpush1.msra.mxu0 0.0
        %1028 = vmatprep.subr.mxu0 0.0
        %1029 = vmatpush1.msra.mxu0 0.0
        %1030 = vmatprep.subr.mxu0 0.0
        %1031 = vmatpush1.msra.mxu0 0.0
        %1032 = vmatprep.subr.mxu0 0.0
        %1033 = vmatpush1.msra.mxu0 %v543
        %1034 = vmatprep.subr.mxu0 0.0
        %1035 = vmatpush1.msra.mxu0 %v542
        %1036 = vmatprep.subr.mxu0 0.0
        %1037 = vmatpush2.msra.mxu0 0.0
        %1038 = vmatprep.subr.mxu0 0.0
        %1039 = vmatpush2.msra.mxu0 0.0
        %1040 = vmatprep.subr.mxu0 0.0
        %1041 = vmatpush2.msra.mxu0 0.0
        %1042 = vmatprep.subr.mxu0 0.0
        %1043 = vmatpush2.msra.mxu0 0.0
        %1044 = vmatprep.subr.mxu0 0.0
        %1045 = vmatpush2.msra.mxu0 0.0
        %1046 = vmatprep.subr.mxu0 0.0
        %1047 = vmatpush2.msra.mxu0 0.0
        %1048 = vmatprep.subr.mxu0 0.0
        %1049 = vmatpush2.msra.mxu0 0.0
        %1050 = vmatprep.subr.mxu0 0.0
        %1051 = vmatpush2.msra.mxu0 0.0
        %1052 = vmatprep.subr.mxu0 0.0
        %1053 = vmatpush2.msra.mxu0 0.0
        %1054 = vmatprep.subr.mxu0 0.0
        %1055 = vmatpush2.msra.mxu0 0.0
        %1056 = vmatprep.subr.mxu0 0.0
        %1057 = vmatpush2.msra.mxu0 0.0
        %1058 = vmatprep.subr.mxu0 0.0
        %1059 = vmatpush2.msra.mxu0 0.0
        %1060 = vmatprep.subr.mxu0 0.0
        %1061 = vmatpush2.msra.mxu0 0.0
        %1062 = vmatprep.subr.mxu0 0.0
        %1063 = vmatpush2.msra.mxu0 0.0
        %1064 = vmatprep.subr.mxu0 0.0
        %1065 = vmatpush2.msra.mxu0 0.0
        %1066 = vmatprep.subr.mxu0 0.0
        %1067 = vmatpush2.msra.mxu0 0.0
        %1068 = vmatprep.mubr.f32.mxu0 0.0
        %1069 = vmatmul.mubr.f32.gmra.mxu0 %v1002
        %v1070 = vpop.f32.mrf.mxu0
        %v1071 = vadd.f32 0.0, %v1070
        %v1072 = vpop.f32.mrf.mxu0
        %1073 = vdwg.mxu0
        %1074 = vrot.lane.b32.xlu0 %v459, 112
        %v1075 = vpop.permute.xlu0 %1074
        %v1076 = vsel %vm545, %v1075, 0
        %1078 = vmatprep.subr.mxu0 0.0
        %1079 = vmatpush1.msra.mxu0 0.0
        %1080 = vmatprep.subr.mxu0 0.0
        %1081 = vmatpush1.msra.mxu0 0.0
        %1082 = vmatprep.subr.mxu0 0.0
        %1083 = vmatpush1.msra.mxu0 0.0
        %1084 = vmatprep.subr.mxu0 0.0
        %1085 = vmatpush1.msra.mxu0 0.0
        %1086 = vmatprep.subr.mxu0 0.0
        %1087 = vmatpush1.msra.mxu0 0.0
        %1088 = vmatprep.subr.mxu0 0.0
        %1089 = vmatpush1.msra.mxu0 0.0
        %1090 = vmatprep.subr.mxu0 0.0
        %1091 = vmatpush1.msra.mxu0 0.0
        %1092 = vmatprep.subr.mxu0 0.0
        %1093 = vmatpush1.msra.mxu0 0.0
        %1094 = vmatprep.subr.mxu0 0.0
        %1095 = vmatpush1.msra.mxu0 0.0
        %1096 = vmatprep.subr.mxu0 0.0
        %1097 = vmatpush1.msra.mxu0 0.0
        %1098 = vmatprep.subr.mxu0 0.0
        %1099 = vmatpush1.msra.mxu0 0.0
        %1100 = vmatprep.subr.mxu0 0.0
        %1101 = vmatpush1.msra.mxu0 0.0
        %1102 = vmatprep.subr.mxu0 0.0
        %1103 = vmatpush1.msra.mxu0 0.0
        %1104 = vmatprep.subr.mxu0 0.0
        %1105 = vmatpush1.msra.mxu0 0.0
        %1106 = vmatprep.subr.mxu0 0.0
        %1107 = vmatpush1.msra.mxu0 %v540
        %1108 = vmatprep.subr.mxu0 0.0
        %1109 = vmatpush1.msra.mxu0 %v539
        %1110 = vmatprep.subr.mxu0 0.0
        %1111 = vmatpush2.msra.mxu0 0.0
        %1112 = vmatprep.subr.mxu0 0.0
        %1113 = vmatpush2.msra.mxu0 0.0
        %1114 = vmatprep.subr.mxu0 0.0
        %1115 = vmatpush2.msra.mxu0 0.0
        %1116 = vmatprep.subr.mxu0 0.0
        %1117 = vmatpush2.msra.mxu0 0.0
        %1118 = vmatprep.subr.mxu0 0.0
        %1119 = vmatpush2.msra.mxu0 0.0
        %1120 = vmatprep.subr.mxu0 0.0
        %1121 = vmatpush2.msra.mxu0 0.0
        %1122 = vmatprep.subr.mxu0 0.0
        %1123 = vmatpush2.msra.mxu0 0.0
        %1124 = vmatprep.subr.mxu0 0.0
        %1125 = vmatpush2.msra.mxu0 0.0
        %1126 = vmatprep.subr.mxu0 0.0
        %1127 = vmatpush2.msra.mxu0 0.0
        %1128 = vmatprep.subr.mxu0 0.0
        %1129 = vmatpush2.msra.mxu0 0.0
        %1130 = vmatprep.subr.mxu0 0.0
        %1131 = vmatpush2.msra.mxu0 0.0
        %1132 = vmatprep.subr.mxu0 0.0
        %1133 = vmatpush2.msra.mxu0 0.0
        %1134 = vmatprep.subr.mxu0 0.0
        %1135 = vmatpush2.msra.mxu0 0.0
        %1136 = vmatprep.subr.mxu0 0.0
        %1137 = vmatpush2.msra.mxu0 0.0
        %1138 = vmatprep.subr.mxu0 0.0
        %1139 = vmatpush2.msra.mxu0 0.0
        %1140 = vmatprep.subr.mxu0 0.0
        %1141 = vmatpush2.msra.mxu0 0.0
        %1142 = vmatprep.mubr.f32.mxu0 0.0
        %1143 = vmatmul.mubr.f32.gmra.mxu0 %v1076
        %v1144 = vpop.f32.mrf.mxu0
        %v1145 = vadd.f32 %v1071, %v1144
        %v1146 = vpop.f32.mrf.mxu0
        %1147 = vdwg.mxu0
        %1149 = vrot.lane.b32.xlu0 %v1145, 32
        %v1150 = vpop.permute.xlu0 %1149
        %v1152 = vsel %vm842, %v997, %v1150
        %v1153 = vadd.f32 %v1152, %v847
        %1155 = vrot.lane.b32.xlu0 %v1153, 64
        %v1156 = vpop.permute.xlu0 %1155
        %vm1158 = vcmask 1048064
        %1159 = vst.msk [vmem:[%s215] sm:$0xff] %vm1158, %v1156
        %1160 = vrot.lane.b32.xlu0 %v383, 96
        %v1161 = vpop.permute.xlu0 %1160
        %v1162 = vsel %vm545, %v1161, 0
        %1164 = vmatprep.subr.mxu0 0.0
        %1165 = vmatpush1.msra.mxu0 0.0
        %1166 = vmatprep.subr.mxu0 0.0
        %1167 = vmatpush1.msra.mxu0 0.0
        %1168 = vmatprep.subr.mxu0 0.0
        %1169 = vmatpush1.msra.mxu0 0.0
        %1170 = vmatprep.subr.mxu0 0.0
        %1171 = vmatpush1.msra.mxu0 0.0
        %1172 = vmatprep.subr.mxu0 0.0
        %1173 = vmatpush1.msra.mxu0 0.0
        %1174 = vmatprep.subr.mxu0 0.0
        %1175 = vmatpush1.msra.mxu0 0.0
        %1176 = vmatprep.subr.mxu0 0.0
        %1177 = vmatpush1.msra.mxu0 0.0
        %1178 = vmatprep.subr.mxu0 0.0
        %1179 = vmatpush1.msra.mxu0 0.0
        %1180 = vmatprep.subr.mxu0 0.0
        %1181 = vmatpush1.msra.mxu0 0.0
        %1182 = vmatprep.subr.mxu0 0.0
        %1183 = vmatpush1.msra.mxu0 0.0
        %1184 = vmatprep.subr.mxu0 0.0
        %1185 = vmatpush1.msra.mxu0 0.0
        %1186 = vmatprep.subr.mxu0 0.0
        %1187 = vmatpush1.msra.mxu0 0.0
        %1188 = vmatprep.subr.mxu0 0.0
        %1189 = vmatpush1.msra.mxu0 0.0
        %1190 = vmatprep.subr.mxu0 0.0
        %1191 = vmatpush1.msra.mxu0 0.0
        %1192 = vmatprep.subr.mxu0 0.0
        %1193 = vmatpush1.msra.mxu0 %v543
        %1194 = vmatprep.subr.mxu0 0.0
        %1195 = vmatpush1.msra.mxu0 %v542
        %1196 = vmatprep.subr.mxu0 0.0
        %1197 = vmatpush2.msra.mxu0 0.0
        %1198 = vmatprep.subr.mxu0 0.0
        %1199 = vmatpush2.msra.mxu0 0.0
        %1200 = vmatprep.subr.mxu0 0.0
        %1201 = vmatpush2.msra.mxu0 0.0
        %1202 = vmatprep.subr.mxu0 0.0
        %1203 = vmatpush2.msra.mxu0 0.0
        %1204 = vmatprep.subr.mxu0 0.0
        %1205 = vmatpush2.msra.mxu0 0.0
        %1206 = vmatprep.subr.mxu0 0.0
        %1207 = vmatpush2.msra.mxu0 0.0
        %1208 = vmatprep.subr.mxu0 0.0
        %1209 = vmatpush2.msra.mxu0 0.0
        %1210 = vmatprep.subr.mxu0 0.0
        %1211 = vmatpush2.msra.mxu0 0.0
        %1212 = vmatprep.subr.mxu0 0.0
        %1213 = vmatpush2.msra.mxu0 0.0
        %1214 = vmatprep.subr.mxu0 0.0
        %1215 = vmatpush2.msra.mxu0 0.0
        %1216 = vmatprep.subr.mxu0 0.0
        %1217 = vmatpush2.msra.mxu0 0.0
        %1218 = vmatprep.subr.mxu0 0.0
        %1219 = vmatpush2.msra.mxu0 0.0
        %1220 = vmatprep.subr.mxu0 0.0
        %1221 = vmatpush2.msra.mxu0 0.0
        %1222 = vmatprep.subr.mxu0 0.0
        %1223 = vmatpush2.msra.mxu0 0.0
        %1224 = vmatprep.subr.mxu0 0.0
        %1225 = vmatpush2.msra.mxu0 0.0
        %1226 = vmatprep.subr.mxu0 0.0
        %1227 = vmatpush2.msra.mxu0 0.0
        %1228 = vmatprep.mubr.f32.mxu0 0.0
        %1229 = vmatmul.mubr.f32.gmra.mxu0 %v1162
        %v1230 = vpop.f32.mrf.mxu0
        %v1231 = vadd.f32 0.0, %v1230
        %v1232 = vpop.f32.mrf.mxu0
        %1233 = vdwg.mxu0
        %1234 = vrot.lane.b32.xlu0 %v307, 96
        %v1235 = vpop.permute.xlu0 %1234
        %v1236 = vsel %vm545, %v1235, 0
        %1238 = vmatprep.subr.mxu0 0.0
        %1239 = vmatpush1.msra.mxu0 0.0
        %1240 = vmatprep.subr.mxu0 0.0
        %1241 = vmatpush1.msra.mxu0 0.0
        %1242 = vmatprep.subr.mxu0 0.0
        %1243 = vmatpush1.msra.mxu0 0.0
        %1244 = vmatprep.subr.mxu0 0.0
        %1245 = vmatpush1.msra.mxu0 0.0
        %1246 = vmatprep.subr.mxu0 0.0
        %1247 = vmatpush1.msra.mxu0 0.0
        %1248 = vmatprep.subr.mxu0 0.0
        %1249 = vmatpush1.msra.mxu0 0.0
        %1250 = vmatprep.subr.mxu0 0.0
        %1251 = vmatpush1.msra.mxu0 0.0
        %1252 = vmatprep.subr.mxu0 0.0
        %1253 = vmatpush1.msra.mxu0 0.0
        %1254 = vmatprep.subr.mxu0 0.0
        %1255 = vmatpush1.msra.mxu0 0.0
        %1256 = vmatprep.subr.mxu0 0.0
        %1257 = vmatpush1.msra.mxu0 0.0
        %1258 = vmatprep.subr.mxu0 0.0
        %1259 = vmatpush1.msra.mxu0 0.0
        %1260 = vmatprep.subr.mxu0 0.0
        %1261 = vmatpush1.msra.mxu0 0.0
        %1262 = vmatprep.subr.mxu0 0.0
        %1263 = vmatpush1.msra.mxu0 0.0
        %1264 = vmatprep.subr.mxu0 0.0
        %1265 = vmatpush1.msra.mxu0 0.0
        %1266 = vmatprep.subr.mxu0 0.0
        %1267 = vmatpush1.msra.mxu0 %v540
        %1268 = vmatprep.subr.mxu0 0.0
        %1269 = vmatpush1.msra.mxu0 %v539
        %1270 = vmatprep.subr.mxu0 0.0
        %1271 = vmatpush2.msra.mxu0 0.0
        %1272 = vmatprep.subr.mxu0 0.0
        %1273 = vmatpush2.msra.mxu0 0.0
        %1274 = vmatprep.subr.mxu0 0.0
        %1275 = vmatpush2.msra.mxu0 0.0
        %1276 = vmatprep.subr.mxu0 0.0
        %1277 = vmatpush2.msra.mxu0 0.0
        %1278 = vmatprep.subr.mxu0 0.0
        %1279 = vmatpush2.msra.mxu0 0.0
        %1280 = vmatprep.subr.mxu0 0.0
        %1281 = vmatpush2.msra.mxu0 0.0
        %1282 = vmatprep.subr.mxu0 0.0
        %1283 = vmatpush2.msra.mxu0 0.0
        %1284 = vmatprep.subr.mxu0 0.0
        %1285 = vmatpush2.msra.mxu0 0.0
        %1286 = vmatprep.subr.mxu0 0.0
        %1287 = vmatpush2.msra.mxu0 0.0
        %1288 = vmatprep.subr.mxu0 0.0
        %1289 = vmatpush2.msra.mxu0 0.0
        %1290 = vmatprep.subr.mxu0 0.0
        %1291 = vmatpush2.msra.mxu0 0.0
        %1292 = vmatprep.subr.mxu0 0.0
        %1293 = vmatpush2.msra.mxu0 0.0
        %1294 = vmatprep.subr.mxu0 0.0
        %1295 = vmatpush2.msra.mxu0 0.0
        %1296 = vmatprep.subr.mxu0 0.0
        %1297 = vmatpush2.msra.mxu0 0.0
        %1298 = vmatprep.subr.mxu0 0.0
        %1299 = vmatpush2.msra.mxu0 0.0
        %1300 = vmatprep.subr.mxu0 0.0
        %1301 = vmatpush2.msra.mxu0 0.0
        %1302 = vmatprep.mubr.f32.mxu0 0.0
        %1303 = vmatmul.mubr.f32.gmra.mxu0 %v1236
        %v1304 = vpop.f32.mrf.mxu0
        %v1305 = vadd.f32 %v1231, %v1304
        %v1306 = vpop.f32.mrf.mxu0
        %1307 = vdwg.mxu0
        %1308 = vrot.lane.b32.xlu0 %v535, 96
        %v1309 = vpop.permute.xlu0 %1308
        %v1310 = vsel %vm545, %v1309, 0
        %1312 = vmatprep.subr.mxu0 0.0
        %1313 = vmatpush1.msra.mxu0 0.0
        %1314 = vmatprep.subr.mxu0 0.0
        %1315 = vmatpush1.msra.mxu0 0.0
        %1316 = vmatprep.subr.mxu0 0.0
        %1317 = vmatpush1.msra.mxu0 0.0
        %1318 = vmatprep.subr.mxu0 0.0
        %1319 = vmatpush1.msra.mxu0 0.0
        %1320 = vmatprep.subr.mxu0 0.0
        %1321 = vmatpush1.msra.mxu0 0.0
        %1322 = vmatprep.subr.mxu0 0.0
        %1323 = vmatpush1.msra.mxu0 0.0
        %1324 = vmatprep.subr.mxu0 0.0
        %1325 = vmatpush1.msra.mxu0 0.0
        %1326 = vmatprep.subr.mxu0 0.0
        %1327 = vmatpush1.msra.mxu0 0.0
        %1328 = vmatprep.subr.mxu0 0.0
        %1329 = vmatpush1.msra.mxu0 0.0
        %1330 = vmatprep.subr.mxu0 0.0
        %1331 = vmatpush1.msra.mxu0 0.0
        %1332 = vmatprep.subr.mxu0 0.0
        %1333 = vmatpush1.msra.mxu0 0.0
        %1334 = vmatprep.subr.mxu0 0.0
        %1335 = vmatpush1.msra.mxu0 0.0
        %1336 = vmatprep.subr.mxu0 0.0
        %1337 = vmatpush1.msra.mxu0 0.0
        %1338 = vmatprep.subr.mxu0 0.0
        %1339 = vmatpush1.msra.mxu0 0.0
        %1340 = vmatprep.subr.mxu0 0.0
        %1341 = vmatpush1.msra.mxu0 %v543
        %1342 = vmatprep.subr.mxu0 0.0
        %1343 = vmatpush1.msra.mxu0 %v542
        %1344 = vmatprep.subr.mxu0 0.0
        %1345 = vmatpush2.msra.mxu0 0.0
        %1346 = vmatprep.subr.mxu0 0.0
        %1347 = vmatpush2.msra.mxu0 0.0
        %1348 = vmatprep.subr.mxu0 0.0
        %1349 = vmatpush2.msra.mxu0 0.0
        %1350 = vmatprep.subr.mxu0 0.0
        %1351 = vmatpush2.msra.mxu0 0.0
        %1352 = vmatprep.subr.mxu0 0.0
        %1353 = vmatpush2.msra.mxu0 0.0
        %1354 = vmatprep.subr.mxu0 0.0
        %1355 = vmatpush2.msra.mxu0 0.0
        %1356 = vmatprep.subr.mxu0 0.0
        %1357 = vmatpush2.msra.mxu0 0.0
        %1358 = vmatprep.subr.mxu0 0.0
        %1359 = vmatpush2.msra.mxu0 0.0
        %1360 = vmatprep.subr.mxu0 0.0
        %1361 = vmatpush2.msra.mxu0 0.0
        %1362 = vmatprep.subr.mxu0 0.0
        %1363 = vmatpush2.msra.mxu0 0.0
        %1364 = vmatprep.subr.mxu0 0.0
        %1365 = vmatpush2.msra.mxu0 0.0
        %1366 = vmatprep.subr.mxu0 0.0
        %1367 = vmatpush2.msra.mxu0 0.0
        %1368 = vmatprep.subr.mxu0 0.0
        %1369 = vmatpush2.msra.mxu0 0.0
        %1370 = vmatprep.subr.mxu0 0.0
        %1371 = vmatpush2.msra.mxu0 0.0
        %1372 = vmatprep.subr.mxu0 0.0
        %1373 = vmatpush2.msra.mxu0 0.0
        %1374 = vmatprep.subr.mxu0 0.0
        %1375 = vmatpush2.msra.mxu0 0.0
        %1376 = vmatprep.mubr.f32.mxu0 0.0
        %1377 = vmatmul.mubr.f32.gmra.mxu0 %v1310
        %v1378 = vpop.f32.mrf.mxu0
        %v1379 = vadd.f32 0.0, %v1378
        %v1380 = vpop.f32.mrf.mxu0
        %1381 = vdwg.mxu0
        %1382 = vrot.lane.b32.xlu0 %v459, 96
        %v1383 = vpop.permute.xlu0 %1382
        %v1384 = vsel %vm545, %v1383, 0
        %1386 = vmatprep.subr.mxu0 0.0
        %1387 = vmatpush1.msra.mxu0 0.0
        %1388 = vmatprep.subr.mxu0 0.0
        %1389 = vmatpush1.msra.mxu0 0.0
        %1390 = vmatprep.subr.mxu0 0.0
        %1391 = vmatpush1.msra.mxu0 0.0
        %1392 = vmatprep.subr.mxu0 0.0
        %1393 = vmatpush1.msra.mxu0 0.0
        %1394 = vmatprep.subr.mxu0 0.0
        %1395 = vmatpush1.msra.mxu0 0.0
        %1396 = vmatprep.subr.mxu0 0.0
        %1397 = vmatpush1.msra.mxu0 0.0
        %1398 = vmatprep.subr.mxu0 0.0
        %1399 = vmatpush1.msra.mxu0 0.0
        %1400 = vmatprep.subr.mxu0 0.0
        %1401 = vmatpush1.msra.mxu0 0.0
        %1402 = vmatprep.subr.mxu0 0.0
        %1403 = vmatpush1.msra.mxu0 0.0
        %1404 = vmatprep.subr.mxu0 0.0
        %1405 = vmatpush1.msra.mxu0 0.0
        %1406 = vmatprep.subr.mxu0 0.0
        %1407 = vmatpush1.msra.mxu0 0.0
        %1408 = vmatprep.subr.mxu0 0.0
        %1409 = vmatpush1.msra.mxu0 0.0
        %1410 = vmatprep.subr.mxu0 0.0
        %1411 = vmatpush1.msra.mxu0 0.0
        %1412 = vmatprep.subr.mxu0 0.0
        %1413 = vmatpush1.msra.mxu0 0.0
        %1414 = vmatprep.subr.mxu0 0.0
        %1415 = vmatpush1.msra.mxu0 %v540
        %1416 = vmatprep.subr.mxu0 0.0
        %1417 = vmatpush1.msra.mxu0 %v539
        %1418 = vmatprep.subr.mxu0 0.0
        %1419 = vmatpush2.msra.mxu0 0.0
        %1420 = vmatprep.subr.mxu0 0.0
        %1421 = vmatpush2.msra.mxu0 0.0
        %1422 = vmatprep.subr.mxu0 0.0
        %1423 = vmatpush2.msra.mxu0 0.0
        %1424 = vmatprep.subr.mxu0 0.0
        %1425 = vmatpush2.msra.mxu0 0.0
        %1426 = vmatprep.subr.mxu0 0.0
        %1427 = vmatpush2.msra.mxu0 0.0
        %1428 = vmatprep.subr.mxu0 0.0
        %1429 = vmatpush2.msra.mxu0 0.0
        %1430 = vmatprep.subr.mxu0 0.0
        %1431 = vmatpush2.msra.mxu0 0.0
        %1432 = vmatprep.subr.mxu0 0.0
        %1433 = vmatpush2.msra.mxu0 0.0
        %1434 = vmatprep.subr.mxu0 0.0
        %1435 = vmatpush2.msra.mxu0 0.0
        %1436 = vmatprep.subr.mxu0 0.0
        %1437 = vmatpush2.msra.mxu0 0.0
        %1438 = vmatprep.subr.mxu0 0.0
        %1439 = vmatpush2.msra.mxu0 0.0
        %1440 = vmatprep.subr.mxu0 0.0
        %1441 = vmatpush2.msra.mxu0 0.0
        %1442 = vmatprep.subr.mxu0 0.0
        %1443 = vmatpush2.msra.mxu0 0.0
        %1444 = vmatprep.subr.mxu0 0.0
        %1445 = vmatpush2.msra.mxu0 0.0
        %1446 = vmatprep.subr.mxu0 0.0
        %1447 = vmatpush2.msra.mxu0 0.0
        %1448 = vmatprep.subr.mxu0 0.0
        %1449 = vmatpush2.msra.mxu0 0.0
        %1450 = vmatprep.mubr.f32.mxu0 0.0
        %1451 = vmatmul.mubr.f32.gmra.mxu0 %v1384
        %v1452 = vpop.f32.mrf.mxu0
        %v1453 = vadd.f32 %v1379, %v1452
        %v1454 = vpop.f32.mrf.mxu0
        %1455 = vdwg.mxu0
        %1457 = vrot.lane.b32.xlu0 %v1453, 32
        %v1458 = vpop.permute.xlu0 %1457
        %v1460 = vsel %vm842, %v1305, %v1458
        %v1461 = vadd.f32 %v1460, %v847
        %1462 = vst.msk [vmem:[%s215 + $0x8] sm:$0xff] %vm850, %v1461
        %1463 = vrot.lane.b32.xlu0 %v383, 80
        %v1464 = vpop.permute.xlu0 %1463
        %v1465 = vsel %vm545, %v1464, 0
        %1467 = vmatprep.subr.mxu0 0.0
        %1468 = vmatpush1.msra.mxu0 0.0
        %1469 = vmatprep.subr.mxu0 0.0
        %1470 = vmatpush1.msra.mxu0 0.0
        %1471 = vmatprep.subr.mxu0 0.0
        %1472 = vmatpush1.msra.mxu0 0.0
        %1473 = vmatprep.subr.mxu0 0.0
        %1474 = vmatpush1.msra.mxu0 0.0
        %1475 = vmatprep.subr.mxu0 0.0
        %1476 = vmatpush1.msra.mxu0 0.0
        %1477 = vmatprep.subr.mxu0 0.0
        %1478 = vmatpush1.msra.mxu0 0.0
        %1479 = vmatprep.subr.mxu0 0.0
        %1480 = vmatpush1.msra.mxu0 0.0
        %1481 = vmatprep.subr.mxu0 0.0
        %1482 = vmatpush1.msra.mxu0 0.0
        %1483 = vmatprep.subr.mxu0 0.0
        %1484 = vmatpush1.msra.mxu0 0.0
        %1485 = vmatprep.subr.mxu0 0.0
        %1486 = vmatpush1.msra.mxu0 0.0
        %1487 = vmatprep.subr.mxu0 0.0
        %1488 = vmatpush1.msra.mxu0 0.0
        %1489 = vmatprep.subr.mxu0 0.0
        %1490 = vmatpush1.msra.mxu0 0.0
        %1491 = vmatprep.subr.mxu0 0.0
        %1492 = vmatpush1.msra.mxu0 0.0
        %1493 = vmatprep.subr.mxu0 0.0
        %1494 = vmatpush1.msra.mxu0 0.0
        %1495 = vmatprep.subr.mxu0 0.0
        %1496 = vmatpush1.msra.mxu0 %v543
        %1497 = vmatprep.subr.mxu0 0.0
        %1498 = vmatpush1.msra.mxu0 %v542
        %1499 = vmatprep.subr.mxu0 0.0
        %1500 = vmatpush2.msra.mxu0 0.0
        %1501 = vmatprep.subr.mxu0 0.0
        %1502 = vmatpush2.msra.mxu0 0.0
        %1503 = vmatprep.subr.mxu0 0.0
        %1504 = vmatpush2.msra.mxu0 0.0
        %1505 = vmatprep.subr.mxu0 0.0
        %1506 = vmatpush2.msra.mxu0 0.0
        %1507 = vmatprep.subr.mxu0 0.0
        %1508 = vmatpush2.msra.mxu0 0.0
        %1509 = vmatprep.subr.mxu0 0.0
        %1510 = vmatpush2.msra.mxu0 0.0
        %1511 = vmatprep.subr.mxu0 0.0
        %1512 = vmatpush2.msra.mxu0 0.0
        %1513 = vmatprep.subr.mxu0 0.0
        %1514 = vmatpush2.msra.mxu0 0.0
        %1515 = vmatprep.subr.mxu0 0.0
        %1516 = vmatpush2.msra.mxu0 0.0
        %1517 = vmatprep.subr.mxu0 0.0
        %1518 = vmatpush2.msra.mxu0 0.0
        %1519 = vmatprep.subr.mxu0 0.0
        %1520 = vmatpush2.msra.mxu0 0.0
        %1521 = vmatprep.subr.mxu0 0.0
        %1522 = vmatpush2.msra.mxu0 0.0
        %1523 = vmatprep.subr.mxu0 0.0
        %1524 = vmatpush2.msra.mxu0 0.0
        %1525 = vmatprep.subr.mxu0 0.0
        %1526 = vmatpush2.msra.mxu0 0.0
        %1527 = vmatprep.subr.mxu0 0.0
        %1528 = vmatpush2.msra.mxu0 0.0
        %1529 = vmatprep.subr.mxu0 0.0
        %1530 = vmatpush2.msra.mxu0 0.0
        %1531 = vmatprep.mubr.f32.mxu0 0.0
        %1532 = vmatmul.mubr.f32.gmra.mxu0 %v1465
        %v1533 = vpop.f32.mrf.mxu0
        %v1534 = vadd.f32 0.0, %v1533
        %v1535 = vpop.f32.mrf.mxu0
        %1536 = vdwg.mxu0
        %1537 = vrot.lane.b32.xlu0 %v307, 80
        %v1538 = vpop.permute.xlu0 %1537
        %v1539 = vsel %vm545, %v1538, 0
        %1541 = vmatprep.subr.mxu0 0.0
        %1542 = vmatpush1.msra.mxu0 0.0
        %1543 = vmatprep.subr.mxu0 0.0
        %1544 = vmatpush1.msra.mxu0 0.0
        %1545 = vmatprep.subr.mxu0 0.0
        %1546 = vmatpush1.msra.mxu0 0.0
        %1547 = vmatprep.subr.mxu0 0.0
        %1548 = vmatpush1.msra.mxu0 0.0
        %1549 = vmatprep.subr.mxu0 0.0
        %1550 = vmatpush1.msra.mxu0 0.0
        %1551 = vmatprep.subr.mxu0 0.0
        %1552 = vmatpush1.msra.mxu0 0.0
        %1553 = vmatprep.subr.mxu0 0.0
        %1554 = vmatpush1.msra.mxu0 0.0
        %1555 = vmatprep.subr.mxu0 0.0
        %1556 = vmatpush1.msra.mxu0 0.0
        %1557 = vmatprep.subr.mxu0 0.0
        %1558 = vmatpush1.msra.mxu0 0.0
        %1559 = vmatprep.subr.mxu0 0.0
        %1560 = vmatpush1.msra.mxu0 0.0
        %1561 = vmatprep.subr.mxu0 0.0
        %1562 = vmatpush1.msra.mxu0 0.0
        %1563 = vmatprep.subr.mxu0 0.0
        %1564 = vmatpush1.msra.mxu0 0.0
        %1565 = vmatprep.subr.mxu0 0.0
        %1566 = vmatpush1.msra.mxu0 0.0
        %1567 = vmatprep.subr.mxu0 0.0
        %1568 = vmatpush1.msra.mxu0 0.0
        %1569 = vmatprep.subr.mxu0 0.0
        %1570 = vmatpush1.msra.mxu0 %v540
        %1571 = vmatprep.subr.mxu0 0.0
        %1572 = vmatpush1.msra.mxu0 %v539
        %1573 = vmatprep.subr.mxu0 0.0
        %1574 = vmatpush2.msra.mxu0 0.0
        %1575 = vmatprep.subr.mxu0 0.0
        %1576 = vmatpush2.msra.mxu0 0.0
        %1577 = vmatprep.subr.mxu0 0.0
        %1578 = vmatpush2.msra.mxu0 0.0
        %1579 = vmatprep.subr.mxu0 0.0
        %1580 = vmatpush2.msra.mxu0 0.0
        %1581 = vmatprep.subr.mxu0 0.0
        %1582 = vmatpush2.msra.mxu0 0.0
        %1583 = vmatprep.subr.mxu0 0.0
        %1584 = vmatpush2.msra.mxu0 0.0
        %1585 = vmatprep.subr.mxu0 0.0
        %1586 = vmatpush2.msra.mxu0 0.0
        %1587 = vmatprep.subr.mxu0 0.0
        %1588 = vmatpush2.msra.mxu0 0.0
        %1589 = vmatprep.subr.mxu0 0.0
        %1590 = vmatpush2.msra.mxu0 0.0
        %1591 = vmatprep.subr.mxu0 0.0
        %1592 = vmatpush2.msra.mxu0 0.0
        %1593 = vmatprep.subr.mxu0 0.0
        %1594 = vmatpush2.msra.mxu0 0.0
        %1595 = vmatprep.subr.mxu0 0.0
        %1596 = vmatpush2.msra.mxu0 0.0
        %1597 = vmatprep.subr.mxu0 0.0
        %1598 = vmatpush2.msra.mxu0 0.0
        %1599 = vmatprep.subr.mxu0 0.0
        %1600 = vmatpush2.msra.mxu0 0.0
        %1601 = vmatprep.subr.mxu0 0.0
        %1602 = vmatpush2.msra.mxu0 0.0
        %1603 = vmatprep.subr.mxu0 0.0
        %1604 = vmatpush2.msra.mxu0 0.0
        %1605 = vmatprep.mubr.f32.mxu0 0.0
        %1606 = vmatmul.mubr.f32.gmra.mxu0 %v1539
        %v1607 = vpop.f32.mrf.mxu0
        %v1608 = vadd.f32 %v1534, %v1607
        %v1609 = vpop.f32.mrf.mxu0
        %1610 = vdwg.mxu0
        %1611 = vrot.lane.b32.xlu0 %v535, 80
        %v1612 = vpop.permute.xlu0 %1611
        %v1613 = vsel %vm545, %v1612, 0
        %1615 = vmatprep.subr.mxu0 0.0
        %1616 = vmatpush1.msra.mxu0 0.0
        %1617 = vmatprep.subr.mxu0 0.0
        %1618 = vmatpush1.msra.mxu0 0.0
        %1619 = vmatprep.subr.mxu0 0.0
        %1620 = vmatpush1.msra.mxu0 0.0
        %1621 = vmatprep.subr.mxu0 0.0
        %1622 = vmatpush1.msra.mxu0 0.0
        %1623 = vmatprep.subr.mxu0 0.0
        %1624 = vmatpush1.msra.mxu0 0.0
        %1625 = vmatprep.subr.mxu0 0.0
        %1626 = vmatpush1.msra.mxu0 0.0
        %1627 = vmatprep.subr.mxu0 0.0
        %1628 = vmatpush1.msra.mxu0 0.0
        %1629 = vmatprep.subr.mxu0 0.0
        %1630 = vmatpush1.msra.mxu0 0.0
        %1631 = vmatprep.subr.mxu0 0.0
        %1632 = vmatpush1.msra.mxu0 0.0
        %1633 = vmatprep.subr.mxu0 0.0
        %1634 = vmatpush1.msra.mxu0 0.0
        %1635 = vmatprep.subr.mxu0 0.0
        %1636 = vmatpush1.msra.mxu0 0.0
        %1637 = vmatprep.subr.mxu0 0.0
        %1638 = vmatpush1.msra.mxu0 0.0
        %1639 = vmatprep.subr.mxu0 0.0
        %1640 = vmatpush1.msra.mxu0 0.0
        %1641 = vmatprep.subr.mxu0 0.0
        %1642 = vmatpush1.msra.mxu0 0.0
        %1643 = vmatprep.subr.mxu0 0.0
        %1644 = vmatpush1.msra.mxu0 %v543
        %1645 = vmatprep.subr.mxu0 0.0
        %1646 = vmatpush1.msra.mxu0 %v542
        %1647 = vmatprep.subr.mxu0 0.0
        %1648 = vmatpush2.msra.mxu0 0.0
        %1649 = vmatprep.subr.mxu0 0.0
        %1650 = vmatpush2.msra.mxu0 0.0
        %1651 = vmatprep.subr.mxu0 0.0
        %1652 = vmatpush2.msra.mxu0 0.0
        %1653 = vmatprep.subr.mxu0 0.0
        %1654 = vmatpush2.msra.mxu0 0.0
        %1655 = vmatprep.subr.mxu0 0.0
        %1656 = vmatpush2.msra.mxu0 0.0
        %1657 = vmatprep.subr.mxu0 0.0
        %1658 = vmatpush2.msra.mxu0 0.0
        %1659 = vmatprep.subr.mxu0 0.0
        %1660 = vmatpush2.msra.mxu0 0.0
        %1661 = vmatprep.subr.mxu0 0.0
        %1662 = vmatpush2.msra.mxu0 0.0
        %1663 = vmatprep.subr.mxu0 0.0
        %1664 = vmatpush2.msra.mxu0 0.0
        %1665 = vmatprep.subr.mxu0 0.0
        %1666 = vmatpush2.msra.mxu0 0.0
        %1667 = vmatprep.subr.mxu0 0.0
        %1668 = vmatpush2.msra.mxu0 0.0
        %1669 = vmatprep.subr.mxu0 0.0
        %1670 = vmatpush2.msra.mxu0 0.0
        %1671 = vmatprep.subr.mxu0 0.0
        %1672 = vmatpush2.msra.mxu0 0.0
        %1673 = vmatprep.subr.mxu0 0.0
        %1674 = vmatpush2.msra.mxu0 0.0
        %1675 = vmatprep.subr.mxu0 0.0
        %1676 = vmatpush2.msra.mxu0 0.0
        %1677 = vmatprep.subr.mxu0 0.0
        %1678 = vmatpush2.msra.mxu0 0.0
        %1679 = vmatprep.mubr.f32.mxu0 0.0
        %1680 = vmatmul.mubr.f32.gmra.mxu0 %v1613
        %v1681 = vpop.f32.mrf.mxu0
        %v1682 = vadd.f32 0.0, %v1681
        %v1683 = vpop.f32.mrf.mxu0
        %1684 = vdwg.mxu0
        %1685 = vrot.lane.b32.xlu0 %v459, 80
        %v1686 = vpop.permute.xlu0 %1685
        %v1687 = vsel %vm545, %v1686, 0
        %1689 = vmatprep.subr.mxu0 0.0
        %1690 = vmatpush1.msra.mxu0 0.0
        %1691 = vmatprep.subr.mxu0 0.0
        %1692 = vmatpush1.msra.mxu0 0.0
        %1693 = vmatprep.subr.mxu0 0.0
        %1694 = vmatpush1.msra.mxu0 0.0
        %1695 = vmatprep.subr.mxu0 0.0
        %1696 = vmatpush1.msra.mxu0 0.0
        %1697 = vmatprep.subr.mxu0 0.0
        %1698 = vmatpush1.msra.mxu0 0.0
        %1699 = vmatprep.subr.mxu0 0.0
        %1700 = vmatpush1.msra.mxu0 0.0
        %1701 = vmatprep.subr.mxu0 0.0
        %1702 = vmatpush1.msra.mxu0 0.0
        %1703 = vmatprep.subr.mxu0 0.0
        %1704 = vmatpush1.msra.mxu0 0.0
        %1705 = vmatprep.subr.mxu0 0.0
        %1706 = vmatpush1.msra.mxu0 0.0
        %1707 = vmatprep.subr.mxu0 0.0
        %1708 = vmatpush1.msra.mxu0 0.0
        %1709 = vmatprep.subr.mxu0 0.0
        %1710 = vmatpush1.msra.mxu0 0.0
        %1711 = vmatprep.subr.mxu0 0.0
        %1712 = vmatpush1.msra.mxu0 0.0
        %1713 = vmatprep.subr.mxu0 0.0
        %1714 = vmatpush1.msra.mxu0 0.0
        %1715 = vmatprep.subr.mxu0 0.0
        %1716 = vmatpush1.msra.mxu0 0.0
        %1717 = vmatprep.subr.mxu0 0.0
        %1718 = vmatpush1.msra.mxu0 %v540
        %1719 = vmatprep.subr.mxu0 0.0
        %1720 = vmatpush1.msra.mxu0 %v539
        %1721 = vmatprep.subr.mxu0 0.0
        %1722 = vmatpush2.msra.mxu0 0.0
        %1723 = vmatprep.subr.mxu0 0.0
        %1724 = vmatpush2.msra.mxu0 0.0
        %1725 = vmatprep.subr.mxu0 0.0
        %1726 = vmatpush2.msra.mxu0 0.0
        %1727 = vmatprep.subr.mxu0 0.0
        %1728 = vmatpush2.msra.mxu0 0.0
        %1729 = vmatprep.subr.mxu0 0.0
        %1730 = vmatpush2.msra.mxu0 0.0
        %1731 = vmatprep.subr.mxu0 0.0
        %1732 = vmatpush2.msra.mxu0 0.0
        %1733 = vmatprep.subr.mxu0 0.0
        %1734 = vmatpush2.msra.mxu0 0.0
        %1735 = vmatprep.subr.mxu0 0.0
        %1736 = vmatpush2.msra.mxu0 0.0
        %1737 = vmatprep.subr.mxu0 0.0
        %1738 = vmatpush2.msra.mxu0 0.0
        %1739 = vmatprep.subr.mxu0 0.0
        %1740 = vmatpush2.msra.mxu0 0.0
        %1741 = vmatprep.subr.mxu0 0.0
        %1742 = vmatpush2.msra.mxu0 0.0
        %1743 = vmatprep.subr.mxu0 0.0
        %1744 = vmatpush2.msra.mxu0 0.0
        %1745 = vmatprep.subr.mxu0 0.0
        %1746 = vmatpush2.msra.mxu0 0.0
        %1747 = vmatprep.subr.mxu0 0.0
        %1748 = vmatpush2.msra.mxu0 0.0
        %1749 = vmatprep.subr.mxu0 0.0
        %1750 = vmatpush2.msra.mxu0 0.0
        %1751 = vmatprep.subr.mxu0 0.0
        %1752 = vmatpush2.msra.mxu0 0.0
        %1753 = vmatprep.mubr.f32.mxu0 0.0
        %1754 = vmatmul.mubr.f32.gmra.mxu0 %v1687
        %v1755 = vpop.f32.mrf.mxu0
        %v1756 = vadd.f32 %v1682, %v1755
        %v1757 = vpop.f32.mrf.mxu0
        %1758 = vdwg.mxu0
        %1760 = vrot.lane.b32.xlu0 %v1756, 32
        %v1761 = vpop.permute.xlu0 %1760
        %v1763 = vsel %vm842, %v1608, %v1761
        %v1764 = vadd.f32 %v1763, %v847
        %1766 = vrot.lane.b32.xlu0 %v1764, 64
        %v1767 = vpop.permute.xlu0 %1766
        %1769 = vst.msk [vmem:[%s215 + $0x8] sm:$0xff] %vm1158, %v1767
        %1770 = vrot.lane.b32.xlu0 %v383, 64
        %v1771 = vpop.permute.xlu0 %1770
        %v1772 = vsel %vm545, %v1771, 0
        %1774 = vmatprep.subr.mxu0 0.0
        %1775 = vmatpush1.msra.mxu0 0.0
        %1776 = vmatprep.subr.mxu0 0.0
        %1777 = vmatpush1.msra.mxu0 0.0
        %1778 = vmatprep.subr.mxu0 0.0
        %1779 = vmatpush1.msra.mxu0 0.0
        %1780 = vmatprep.subr.mxu0 0.0
        %1781 = vmatpush1.msra.mxu0 0.0
        %1782 = vmatprep.subr.mxu0 0.0
        %1783 = vmatpush1.msra.mxu0 0.0
        %1784 = vmatprep.subr.mxu0 0.0
        %1785 = vmatpush1.msra.mxu0 0.0
        %1786 = vmatprep.subr.mxu0 0.0
        %1787 = vmatpush1.msra.mxu0 0.0
        %1788 = vmatprep.subr.mxu0 0.0
        %1789 = vmatpush1.msra.mxu0 0.0
        %1790 = vmatprep.subr.mxu0 0.0
        %1791 = vmatpush1.msra.mxu0 0.0
        %1792 = vmatprep.subr.mxu0 0.0
        %1793 = vmatpush1.msra.mxu0 0.0
        %1794 = vmatprep.subr.mxu0 0.0
        %1795 = vmatpush1.msra.mxu0 0.0
        %1796 = vmatprep.subr.mxu0 0.0
        %1797 = vmatpush1.msra.mxu0 0.0
        %1798 = vmatprep.subr.mxu0 0.0
        %1799 = vmatpush1.msra.mxu0 0.0
        %1800 = vmatprep.subr.mxu0 0.0
        %1801 = vmatpush1.msra.mxu0 0.0
        %1802 = vmatprep.subr.mxu0 0.0
        %1803 = vmatpush1.msra.mxu0 %v543
        %1804 = vmatprep.subr.mxu0 0.0
        %1805 = vmatpush1.msra.mxu0 %v542
        %1806 = vmatprep.subr.mxu0 0.0
        %1807 = vmatpush2.msra.mxu0 0.0
        %1808 = vmatprep.subr.mxu0 0.0
        %1809 = vmatpush2.msra.mxu0 0.0
        %1810 = vmatprep.subr.mxu0 0.0
        %1811 = vmatpush2.msra.mxu0 0.0
        %1812 = vmatprep.subr.mxu0 0.0
        %1813 = vmatpush2.msra.mxu0 0.0
        %1814 = vmatprep.subr.mxu0 0.0
        %1815 = vmatpush2.msra.mxu0 0.0
        %1816 = vmatprep.subr.mxu0 0.0
        %1817 = vmatpush2.msra.mxu0 0.0
        %1818 = vmatprep.subr.mxu0 0.0
        %1819 = vmatpush2.msra.mxu0 0.0
        %1820 = vmatprep.subr.mxu0 0.0
        %1821 = vmatpush2.msra.mxu0 0.0
        %1822 = vmatprep.subr.mxu0 0.0
        %1823 = vmatpush2.msra.mxu0 0.0
        %1824 = vmatprep.subr.mxu0 0.0
        %1825 = vmatpush2.msra.mxu0 0.0
        %1826 = vmatprep.subr.mxu0 0.0
        %1827 = vmatpush2.msra.mxu0 0.0
        %1828 = vmatprep.subr.mxu0 0.0
        %1829 = vmatpush2.msra.mxu0 0.0
        %1830 = vmatprep.subr.mxu0 0.0
        %1831 = vmatpush2.msra.mxu0 0.0
        %1832 = vmatprep.subr.mxu0 0.0
        %1833 = vmatpush2.msra.mxu0 0.0
        %1834 = vmatprep.subr.mxu0 0.0
        %1835 = vmatpush2.msra.mxu0 0.0
        %1836 = vmatprep.subr.mxu0 0.0
        %1837 = vmatpush2.msra.mxu0 0.0
        %1838 = vmatprep.mubr.f32.mxu0 0.0
        %1839 = vmatmul.mubr.f32.gmra.mxu0 %v1772
        %v1840 = vpop.f32.mrf.mxu0
        %v1841 = vadd.f32 0.0, %v1840
        %v1842 = vpop.f32.mrf.mxu0
        %1843 = vdwg.mxu0
        %1844 = vrot.lane.b32.xlu0 %v307, 64
        %v1845 = vpop.permute.xlu0 %1844
        %v1846 = vsel %vm545, %v1845, 0
        %1848 = vmatprep.subr.mxu0 0.0
        %1849 = vmatpush1.msra.mxu0 0.0
        %1850 = vmatprep.subr.mxu0 0.0
        %1851 = vmatpush1.msra.mxu0 0.0
        %1852 = vmatprep.subr.mxu0 0.0
        %1853 = vmatpush1.msra.mxu0 0.0
        %1854 = vmatprep.subr.mxu0 0.0
        %1855 = vmatpush1.msra.mxu0 0.0
        %1856 = vmatprep.subr.mxu0 0.0
        %1857 = vmatpush1.msra.mxu0 0.0
        %1858 = vmatprep.subr.mxu0 0.0
        %1859 = vmatpush1.msra.mxu0 0.0
        %1860 = vmatprep.subr.mxu0 0.0
        %1861 = vmatpush1.msra.mxu0 0.0
        %1862 = vmatprep.subr.mxu0 0.0
        %1863 = vmatpush1.msra.mxu0 0.0
        %1864 = vmatprep.subr.mxu0 0.0
        %1865 = vmatpush1.msra.mxu0 0.0
        %1866 = vmatprep.subr.mxu0 0.0
        %1867 = vmatpush1.msra.mxu0 0.0
        %1868 = vmatprep.subr.mxu0 0.0
        %1869 = vmatpush1.msra.mxu0 0.0
        %1870 = vmatprep.subr.mxu0 0.0
        %1871 = vmatpush1.msra.mxu0 0.0
        %1872 = vmatprep.subr.mxu0 0.0
        %1873 = vmatpush1.msra.mxu0 0.0
        %1874 = vmatprep.subr.mxu0 0.0
        %1875 = vmatpush1.msra.mxu0 0.0
        %1876 = vmatprep.subr.mxu0 0.0
        %1877 = vmatpush1.msra.mxu0 %v540
        %1878 = vmatprep.subr.mxu0 0.0
        %1879 = vmatpush1.msra.mxu0 %v539
        %1880 = vmatprep.subr.mxu0 0.0
        %1881 = vmatpush2.msra.mxu0 0.0
        %1882 = vmatprep.subr.mxu0 0.0
        %1883 = vmatpush2.msra.mxu0 0.0
        %1884 = vmatprep.subr.mxu0 0.0
        %1885 = vmatpush2.msra.mxu0 0.0
        %1886 = vmatprep.subr.mxu0 0.0
        %1887 = vmatpush2.msra.mxu0 0.0
        %1888 = vmatprep.subr.mxu0 0.0
        %1889 = vmatpush2.msra.mxu0 0.0
        %1890 = vmatprep.subr.mxu0 0.0
        %1891 = vmatpush2.msra.mxu0 0.0
        %1892 = vmatprep.subr.mxu0 0.0
        %1893 = vmatpush2.msra.mxu0 0.0
        %1894 = vmatprep.subr.mxu0 0.0
        %1895 = vmatpush2.msra.mxu0 0.0
        %1896 = vmatprep.subr.mxu0 0.0
        %1897 = vmatpush2.msra.mxu0 0.0
        %1898 = vmatprep.subr.mxu0 0.0
        %1899 = vmatpush2.msra.mxu0 0.0
        %1900 = vmatprep.subr.mxu0 0.0
        %1901 = vmatpush2.msra.mxu0 0.0
        %1902 = vmatprep.subr.mxu0 0.0
        %1903 = vmatpush2.msra.mxu0 0.0
        %1904 = vmatprep.subr.mxu0 0.0
        %1905 = vmatpush2.msra.mxu0 0.0
        %1906 = vmatprep.subr.mxu0 0.0
        %1907 = vmatpush2.msra.mxu0 0.0
        %1908 = vmatprep.subr.mxu0 0.0
        %1909 = vmatpush2.msra.mxu0 0.0
        %1910 = vmatprep.subr.mxu0 0.0
        %1911 = vmatpush2.msra.mxu0 0.0
        %1912 = vmatprep.mubr.f32.mxu0 0.0
        %1913 = vmatmul.mubr.f32.gmra.mxu0 %v1846
        %v1914 = vpop.f32.mrf.mxu0
        %v1915 = vadd.f32 %v1841, %v1914
        %v1916 = vpop.f32.mrf.mxu0
        %1917 = vdwg.mxu0
        %1918 = vrot.lane.b32.xlu0 %v535, 64
        %v1919 = vpop.permute.xlu0 %1918
        %v1920 = vsel %vm545, %v1919, 0
        %1922 = vmatprep.subr.mxu0 0.0
        %1923 = vmatpush1.msra.mxu0 0.0
        %1924 = vmatprep.subr.mxu0 0.0
        %1925 = vmatpush1.msra.mxu0 0.0
        %1926 = vmatprep.subr.mxu0 0.0
        %1927 = vmatpush1.msra.mxu0 0.0
        %1928 = vmatprep.subr.mxu0 0.0
        %1929 = vmatpush1.msra.mxu0 0.0
        %1930 = vmatprep.subr.mxu0 0.0
        %1931 = vmatpush1.msra.mxu0 0.0
        %1932 = vmatprep.subr.mxu0 0.0
        %1933 = vmatpush1.msra.mxu0 0.0
        %1934 = vmatprep.subr.mxu0 0.0
        %1935 = vmatpush1.msra.mxu0 0.0
        %1936 = vmatprep.subr.mxu0 0.0
        %1937 = vmatpush1.msra.mxu0 0.0
        %1938 = vmatprep.subr.mxu0 0.0
        %1939 = vmatpush1.msra.mxu0 0.0
        %1940 = vmatprep.subr.mxu0 0.0
        %1941 = vmatpush1.msra.mxu0 0.0
        %1942 = vmatprep.subr.mxu0 0.0
        %1943 = vmatpush1.msra.mxu0 0.0
        %1944 = vmatprep.subr.mxu0 0.0
        %1945 = vmatpush1.msra.mxu0 0.0
        %1946 = vmatprep.subr.mxu0 0.0
        %1947 = vmatpush1.msra.mxu0 0.0
        %1948 = vmatprep.subr.mxu0 0.0
        %1949 = vmatpush1.msra.mxu0 0.0
        %1950 = vmatprep.subr.mxu0 0.0
        %1951 = vmatpush1.msra.mxu0 %v543
        %1952 = vmatprep.subr.mxu0 0.0
        %1953 = vmatpush1.msra.mxu0 %v542
        %1954 = vmatprep.subr.mxu0 0.0
        %1955 = vmatpush2.msra.mxu0 0.0
        %1956 = vmatprep.subr.mxu0 0.0
        %1957 = vmatpush2.msra.mxu0 0.0
        %1958 = vmatprep.subr.mxu0 0.0
        %1959 = vmatpush2.msra.mxu0 0.0
        %1960 = vmatprep.subr.mxu0 0.0
        %1961 = vmatpush2.msra.mxu0 0.0
        %1962 = vmatprep.subr.mxu0 0.0
        %1963 = vmatpush2.msra.mxu0 0.0
        %1964 = vmatprep.subr.mxu0 0.0
        %1965 = vmatpush2.msra.mxu0 0.0
        %1966 = vmatprep.subr.mxu0 0.0
        %1967 = vmatpush2.msra.mxu0 0.0
        %1968 = vmatprep.subr.mxu0 0.0
        %1969 = vmatpush2.msra.mxu0 0.0
        %1970 = vmatprep.subr.mxu0 0.0
        %1971 = vmatpush2.msra.mxu0 0.0
        %1972 = vmatprep.subr.mxu0 0.0
        %1973 = vmatpush2.msra.mxu0 0.0
        %1974 = vmatprep.subr.mxu0 0.0
        %1975 = vmatpush2.msra.mxu0 0.0
        %1976 = vmatprep.subr.mxu0 0.0
        %1977 = vmatpush2.msra.mxu0 0.0
        %1978 = vmatprep.subr.mxu0 0.0
        %1979 = vmatpush2.msra.mxu0 0.0
        %1980 = vmatprep.subr.mxu0 0.0
        %1981 = vmatpush2.msra.mxu0 0.0
        %1982 = vmatprep.subr.mxu0 0.0
        %1983 = vmatpush2.msra.mxu0 0.0
        %1984 = vmatprep.subr.mxu0 0.0
        %1985 = vmatpush2.msra.mxu0 0.0
        %1986 = vmatprep.mubr.f32.mxu0 0.0
        %1987 = vmatmul.mubr.f32.gmra.mxu0 %v1920
        %v1988 = vpop.f32.mrf.mxu0
        %v1989 = vadd.f32 0.0, %v1988
        %v1990 = vpop.f32.mrf.mxu0
        %1991 = vdwg.mxu0
        %1992 = vrot.lane.b32.xlu0 %v459, 64
        %v1993 = vpop.permute.xlu0 %1992
        %v1994 = vsel %vm545, %v1993, 0
        %1996 = vmatprep.subr.mxu0 0.0
        %1997 = vmatpush1.msra.mxu0 0.0
        %1998 = vmatprep.subr.mxu0 0.0
        %1999 = vmatpush1.msra.mxu0 0.0
        %2000 = vmatprep.subr.mxu0 0.0
        %2001 = vmatpush1.msra.mxu0 0.0
        %2002 = vmatprep.subr.mxu0 0.0
        %2003 = vmatpush1.msra.mxu0 0.0
        %2004 = vmatprep.subr.mxu0 0.0
        %2005 = vmatpush1.msra.mxu0 0.0
        %2006 = vmatprep.subr.mxu0 0.0
        %2007 = vmatpush1.msra.mxu0 0.0
        %2008 = vmatprep.subr.mxu0 0.0
        %2009 = vmatpush1.msra.mxu0 0.0
        %2010 = vmatprep.subr.mxu0 0.0
        %2011 = vmatpush1.msra.mxu0 0.0
        %2012 = vmatprep.subr.mxu0 0.0
        %2013 = vmatpush1.msra.mxu0 0.0
        %2014 = vmatprep.subr.mxu0 0.0
        %2015 = vmatpush1.msra.mxu0 0.0
        %2016 = vmatprep.subr.mxu0 0.0
        %2017 = vmatpush1.msra.mxu0 0.0
        %2018 = vmatprep.subr.mxu0 0.0
        %2019 = vmatpush1.msra.mxu0 0.0
        %2020 = vmatprep.subr.mxu0 0.0
        %2021 = vmatpush1.msra.mxu0 0.0
        %2022 = vmatprep.subr.mxu0 0.0
        %2023 = vmatpush1.msra.mxu0 0.0
        %2024 = vmatprep.subr.mxu0 0.0
        %2025 = vmatpush1.msra.mxu0 %v540
        %2026 = vmatprep.subr.mxu0 0.0
        %2027 = vmatpush1.msra.mxu0 %v539
        %2028 = vmatprep.subr.mxu0 0.0
        %2029 = vmatpush2.msra.mxu0 0.0
        %2030 = vmatprep.subr.mxu0 0.0
        %2031 = vmatpush2.msra.mxu0 0.0
        %2032 = vmatprep.subr.mxu0 0.0
        %2033 = vmatpush2.msra.mxu0 0.0
        %2034 = vmatprep.subr.mxu0 0.0
        %2035 = vmatpush2.msra.mxu0 0.0
        %2036 = vmatprep.subr.mxu0 0.0
        %2037 = vmatpush2.msra.mxu0 0.0
        %2038 = vmatprep.subr.mxu0 0.0
        %2039 = vmatpush2.msra.mxu0 0.0
        %2040 = vmatprep.subr.mxu0 0.0
        %2041 = vmatpush2.msra.mxu0 0.0
        %2042 = vmatprep.subr.mxu0 0.0
        %2043 = vmatpush2.msra.mxu0 0.0
        %2044 = vmatprep.subr.mxu0 0.0
        %2045 = vmatpush2.msra.mxu0 0.0
        %2046 = vmatprep.subr.mxu0 0.0
        %2047 = vmatpush2.msra.mxu0 0.0
        %2048 = vmatprep.subr.mxu0 0.0
        %2049 = vmatpush2.msra.mxu0 0.0
        %2050 = vmatprep.subr.mxu0 0.0
        %2051 = vmatpush2.msra.mxu0 0.0
        %2052 = vmatprep.subr.mxu0 0.0
        %2053 = vmatpush2.msra.mxu0 0.0
        %2054 = vmatprep.subr.mxu0 0.0
        %2055 = vmatpush2.msra.mxu0 0.0
        %2056 = vmatprep.subr.mxu0 0.0
        %2057 = vmatpush2.msra.mxu0 0.0
        %2058 = vmatprep.subr.mxu0 0.0
        %2059 = vmatpush2.msra.mxu0 0.0
        %2060 = vmatprep.mubr.f32.mxu0 0.0
        %2061 = vmatmul.mubr.f32.gmra.mxu0 %v1994
        %v2062 = vpop.f32.mrf.mxu0
        %v2063 = vadd.f32 %v1989, %v2062
        %v2064 = vpop.f32.mrf.mxu0
        %2065 = vdwg.mxu0
        %2067 = vrot.lane.b32.xlu0 %v2063, 32
        %v2068 = vpop.permute.xlu0 %2067
        %v2070 = vsel %vm842, %v1915, %v2068
        %v2071 = vadd.f32 %v2070, %v847
        %2072 = vst.msk [vmem:[%s215 + $0x10] sm:$0xff] %vm850, %v2071
        %2073 = vrot.lane.b32.xlu0 %v383, 48
        %v2074 = vpop.permute.xlu0 %2073
        %v2075 = vsel %vm545, %v2074, 0
        %2077 = vmatprep.subr.mxu0 0.0
        %2078 = vmatpush1.msra.mxu0 0.0
        %2079 = vmatprep.subr.mxu0 0.0
        %2080 = vmatpush1.msra.mxu0 0.0
        %2081 = vmatprep.subr.mxu0 0.0
        %2082 = vmatpush1.msra.mxu0 0.0
        %2083 = vmatprep.subr.mxu0 0.0
        %2084 = vmatpush1.msra.mxu0 0.0
        %2085 = vmatprep.subr.mxu0 0.0
        %2086 = vmatpush1.msra.mxu0 0.0
        %2087 = vmatprep.subr.mxu0 0.0
        %2088 = vmatpush1.msra.mxu0 0.0
        %2089 = vmatprep.subr.mxu0 0.0
        %2090 = vmatpush1.msra.mxu0 0.0
        %2091 = vmatprep.subr.mxu0 0.0
        %2092 = vmatpush1.msra.mxu0 0.0
        %2093 = vmatprep.subr.mxu0 0.0
        %2094 = vmatpush1.msra.mxu0 0.0
        %2095 = vmatprep.subr.mxu0 0.0
        %2096 = vmatpush1.msra.mxu0 0.0
        %2097 = vmatprep.subr.mxu0 0.0
        %2098 = vmatpush1.msra.mxu0 0.0
        %2099 = vmatprep.subr.mxu0 0.0
        %2100 = vmatpush1.msra.mxu0 0.0
        %2101 = vmatprep.subr.mxu0 0.0
        %2102 = vmatpush1.msra.mxu0 0.0
        %2103 = vmatprep.subr.mxu0 0.0
        %2104 = vmatpush1.msra.mxu0 0.0
        %2105 = vmatprep.subr.mxu0 0.0
        %2106 = vmatpush1.msra.mxu0 %v543
        %2107 = vmatprep.subr.mxu0 0.0
        %2108 = vmatpush1.msra.mxu0 %v542
        %2109 = vmatprep.subr.mxu0 0.0
        %2110 = vmatpush2.msra.mxu0 0.0
        %2111 = vmatprep.subr.mxu0 0.0
        %2112 = vmatpush2.msra.mxu0 0.0
        %2113 = vmatprep.subr.mxu0 0.0
        %2114 = vmatpush2.msra.mxu0 0.0
        %2115 = vmatprep.subr.mxu0 0.0
        %2116 = vmatpush2.msra.mxu0 0.0
        %2117 = vmatprep.subr.mxu0 0.0
        %2118 = vmatpush2.msra.mxu0 0.0
        %2119 = vmatprep.subr.mxu0 0.0
        %2120 = vmatpush2.msra.mxu0 0.0
        %2121 = vmatprep.subr.mxu0 0.0
        %2122 = vmatpush2.msra.mxu0 0.0
        %2123 = vmatprep.subr.mxu0 0.0
        %2124 = vmatpush2.msra.mxu0 0.0
        %2125 = vmatprep.subr.mxu0 0.0
        %2126 = vmatpush2.msra.mxu0 0.0
        %2127 = vmatprep.subr.mxu0 0.0
        %2128 = vmatpush2.msra.mxu0 0.0
        %2129 = vmatprep.subr.mxu0 0.0
        %2130 = vmatpush2.msra.mxu0 0.0
        %2131 = vmatprep.subr.mxu0 0.0
        %2132 = vmatpush2.msra.mxu0 0.0
        %2133 = vmatprep.subr.mxu0 0.0
        %2134 = vmatpush2.msra.mxu0 0.0
        %2135 = vmatprep.subr.mxu0 0.0
        %2136 = vmatpush2.msra.mxu0 0.0
        %2137 = vmatprep.subr.mxu0 0.0
        %2138 = vmatpush2.msra.mxu0 0.0
        %2139 = vmatprep.subr.mxu0 0.0
        %2140 = vmatpush2.msra.mxu0 0.0
        %2141 = vmatprep.mubr.f32.mxu0 0.0
        %2142 = vmatmul.mubr.f32.gmra.mxu0 %v2075
        %v2143 = vpop.f32.mrf.mxu0
        %v2144 = vadd.f32 0.0, %v2143
        %v2145 = vpop.f32.mrf.mxu0
        %2146 = vdwg.mxu0
        %2147 = vrot.lane.b32.xlu0 %v307, 48
        %v2148 = vpop.permute.xlu0 %2147
        %v2149 = vsel %vm545, %v2148, 0
        %2151 = vmatprep.subr.mxu0 0.0
        %2152 = vmatpush1.msra.mxu0 0.0
        %2153 = vmatprep.subr.mxu0 0.0
        %2154 = vmatpush1.msra.mxu0 0.0
        %2155 = vmatprep.subr.mxu0 0.0
        %2156 = vmatpush1.msra.mxu0 0.0
        %2157 = vmatprep.subr.mxu0 0.0
        %2158 = vmatpush1.msra.mxu0 0.0
        %2159 = vmatprep.subr.mxu0 0.0
        %2160 = vmatpush1.msra.mxu0 0.0
        %2161 = vmatprep.subr.mxu0 0.0
        %2162 = vmatpush1.msra.mxu0 0.0
        %2163 = vmatprep.subr.mxu0 0.0
        %2164 = vmatpush1.msra.mxu0 0.0
        %2165 = vmatprep.subr.mxu0 0.0
        %2166 = vmatpush1.msra.mxu0 0.0
        %2167 = vmatprep.subr.mxu0 0.0
        %2168 = vmatpush1.msra.mxu0 0.0
        %2169 = vmatprep.subr.mxu0 0.0
        %2170 = vmatpush1.msra.mxu0 0.0
        %2171 = vmatprep.subr.mxu0 0.0
        %2172 = vmatpush1.msra.mxu0 0.0
        %2173 = vmatprep.subr.mxu0 0.0
        %2174 = vmatpush1.msra.mxu0 0.0
        %2175 = vmatprep.subr.mxu0 0.0
        %2176 = vmatpush1.msra.mxu0 0.0
        %2177 = vmatprep.subr.mxu0 0.0
        %2178 = vmatpush1.msra.mxu0 0.0
        %2179 = vmatprep.subr.mxu0 0.0
        %2180 = vmatpush1.msra.mxu0 %v540
        %2181 = vmatprep.subr.mxu0 0.0
        %2182 = vmatpush1.msra.mxu0 %v539
        %2183 = vmatprep.subr.mxu0 0.0
        %2184 = vmatpush2.msra.mxu0 0.0
        %2185 = vmatprep.subr.mxu0 0.0
        %2186 = vmatpush2.msra.mxu0 0.0
        %2187 = vmatprep.subr.mxu0 0.0
        %2188 = vmatpush2.msra.mxu0 0.0
        %2189 = vmatprep.subr.mxu0 0.0
        %2190 = vmatpush2.msra.mxu0 0.0
        %2191 = vmatprep.subr.mxu0 0.0
        %2192 = vmatpush2.msra.mxu0 0.0
        %2193 = vmatprep.subr.mxu0 0.0
        %2194 = vmatpush2.msra.mxu0 0.0
        %2195 = vmatprep.subr.mxu0 0.0
        %2196 = vmatpush2.msra.mxu0 0.0
        %2197 = vmatprep.subr.mxu0 0.0
        %2198 = vmatpush2.msra.mxu0 0.0
        %2199 = vmatprep.subr.mxu0 0.0
        %2200 = vmatpush2.msra.mxu0 0.0
        %2201 = vmatprep.subr.mxu0 0.0
        %2202 = vmatpush2.msra.mxu0 0.0
        %2203 = vmatprep.subr.mxu0 0.0
        %2204 = vmatpush2.msra.mxu0 0.0
        %2205 = vmatprep.subr.mxu0 0.0
        %2206 = vmatpush2.msra.mxu0 0.0
        %2207 = vmatprep.subr.mxu0 0.0
        %2208 = vmatpush2.msra.mxu0 0.0
        %2209 = vmatprep.subr.mxu0 0.0
        %2210 = vmatpush2.msra.mxu0 0.0
        %2211 = vmatprep.subr.mxu0 0.0
        %2212 = vmatpush2.msra.mxu0 0.0
        %2213 = vmatprep.subr.mxu0 0.0
        %2214 = vmatpush2.msra.mxu0 0.0
        %2215 = vmatprep.mubr.f32.mxu0 0.0
        %2216 = vmatmul.mubr.f32.gmra.mxu0 %v2149
        %v2217 = vpop.f32.mrf.mxu0
        %v2218 = vadd.f32 %v2144, %v2217
        %v2219 = vpop.f32.mrf.mxu0
        %2220 = vdwg.mxu0
        %2221 = vrot.lane.b32.xlu0 %v535, 48
        %v2222 = vpop.permute.xlu0 %2221
        %v2223 = vsel %vm545, %v2222, 0
        %2225 = vmatprep.subr.mxu0 0.0
        %2226 = vmatpush1.msra.mxu0 0.0
        %2227 = vmatprep.subr.mxu0 0.0
        %2228 = vmatpush1.msra.mxu0 0.0
        %2229 = vmatprep.subr.mxu0 0.0
        %2230 = vmatpush1.msra.mxu0 0.0
        %2231 = vmatprep.subr.mxu0 0.0
        %2232 = vmatpush1.msra.mxu0 0.0
        %2233 = vmatprep.subr.mxu0 0.0
        %2234 = vmatpush1.msra.mxu0 0.0
        %2235 = vmatprep.subr.mxu0 0.0
        %2236 = vmatpush1.msra.mxu0 0.0
        %2237 = vmatprep.subr.mxu0 0.0
        %2238 = vmatpush1.msra.mxu0 0.0
        %2239 = vmatprep.subr.mxu0 0.0
        %2240 = vmatpush1.msra.mxu0 0.0
        %2241 = vmatprep.subr.mxu0 0.0
        %2242 = vmatpush1.msra.mxu0 0.0
        %2243 = vmatprep.subr.mxu0 0.0
        %2244 = vmatpush1.msra.mxu0 0.0
        %2245 = vmatprep.subr.mxu0 0.0
        %2246 = vmatpush1.msra.mxu0 0.0
        %2247 = vmatprep.subr.mxu0 0.0
        %2248 = vmatpush1.msra.mxu0 0.0
        %2249 = vmatprep.subr.mxu0 0.0
        %2250 = vmatpush1.msra.mxu0 0.0
        %2251 = vmatprep.subr.mxu0 0.0
        %2252 = vmatpush1.msra.mxu0 0.0
        %2253 = vmatprep.subr.mxu0 0.0
        %2254 = vmatpush1.msra.mxu0 %v543
        %2255 = vmatprep.subr.mxu0 0.0
        %2256 = vmatpush1.msra.mxu0 %v542
        %2257 = vmatprep.subr.mxu0 0.0
        %2258 = vmatpush2.msra.mxu0 0.0
        %2259 = vmatprep.subr.mxu0 0.0
        %2260 = vmatpush2.msra.mxu0 0.0
        %2261 = vmatprep.subr.mxu0 0.0
        %2262 = vmatpush2.msra.mxu0 0.0
        %2263 = vmatprep.subr.mxu0 0.0
        %2264 = vmatpush2.msra.mxu0 0.0
        %2265 = vmatprep.subr.mxu0 0.0
        %2266 = vmatpush2.msra.mxu0 0.0
        %2267 = vmatprep.subr.mxu0 0.0
        %2268 = vmatpush2.msra.mxu0 0.0
        %2269 = vmatprep.subr.mxu0 0.0
        %2270 = vmatpush2.msra.mxu0 0.0
        %2271 = vmatprep.subr.mxu0 0.0
        %2272 = vmatpush2.msra.mxu0 0.0
        %2273 = vmatprep.subr.mxu0 0.0
        %2274 = vmatpush2.msra.mxu0 0.0
        %2275 = vmatprep.subr.mxu0 0.0
        %2276 = vmatpush2.msra.mxu0 0.0
        %2277 = vmatprep.subr.mxu0 0.0
        %2278 = vmatpush2.msra.mxu0 0.0
        %2279 = vmatprep.subr.mxu0 0.0
        %2280 = vmatpush2.msra.mxu0 0.0
        %2281 = vmatprep.subr.mxu0 0.0
        %2282 = vmatpush2.msra.mxu0 0.0
        %2283 = vmatprep.subr.mxu0 0.0
        %2284 = vmatpush2.msra.mxu0 0.0
        %2285 = vmatprep.subr.mxu0 0.0
        %2286 = vmatpush2.msra.mxu0 0.0
        %2287 = vmatprep.subr.mxu0 0.0
        %2288 = vmatpush2.msra.mxu0 0.0
        %2289 = vmatprep.mubr.f32.mxu0 0.0
        %2290 = vmatmul.mubr.f32.gmra.mxu0 %v2223
        %v2291 = vpop.f32.mrf.mxu0
        %v2292 = vadd.f32 0.0, %v2291
        %v2293 = vpop.f32.mrf.mxu0
        %2294 = vdwg.mxu0
        %2295 = vrot.lane.b32.xlu0 %v459, 48
        %v2296 = vpop.permute.xlu0 %2295
        %v2297 = vsel %vm545, %v2296, 0
        %2299 = vmatprep.subr.mxu0 0.0
        %2300 = vmatpush1.msra.mxu0 0.0
        %2301 = vmatprep.subr.mxu0 0.0
        %2302 = vmatpush1.msra.mxu0 0.0
        %2303 = vmatprep.subr.mxu0 0.0
        %2304 = vmatpush1.msra.mxu0 0.0
        %2305 = vmatprep.subr.mxu0 0.0
        %2306 = vmatpush1.msra.mxu0 0.0
        %2307 = vmatprep.subr.mxu0 0.0
        %2308 = vmatpush1.msra.mxu0 0.0
        %2309 = vmatprep.subr.mxu0 0.0
        %2310 = vmatpush1.msra.mxu0 0.0
        %2311 = vmatprep.subr.mxu0 0.0
        %2312 = vmatpush1.msra.mxu0 0.0
        %2313 = vmatprep.subr.mxu0 0.0
        %2314 = vmatpush1.msra.mxu0 0.0
        %2315 = vmatprep.subr.mxu0 0.0
        %2316 = vmatpush1.msra.mxu0 0.0
        %2317 = vmatprep.subr.mxu0 0.0
        %2318 = vmatpush1.msra.mxu0 0.0
        %2319 = vmatprep.subr.mxu0 0.0
        %2320 = vmatpush1.msra.mxu0 0.0
        %2321 = vmatprep.subr.mxu0 0.0
        %2322 = vmatpush1.msra.mxu0 0.0
        %2323 = vmatprep.subr.mxu0 0.0
        %2324 = vmatpush1.msra.mxu0 0.0
        %2325 = vmatprep.subr.mxu0 0.0
        %2326 = vmatpush1.msra.mxu0 0.0
        %2327 = vmatprep.subr.mxu0 0.0
        %2328 = vmatpush1.msra.mxu0 %v540
        %2329 = vmatprep.subr.mxu0 0.0
        %2330 = vmatpush1.msra.mxu0 %v539
        %2331 = vmatprep.subr.mxu0 0.0
        %2332 = vmatpush2.msra.mxu0 0.0
        %2333 = vmatprep.subr.mxu0 0.0
        %2334 = vmatpush2.msra.mxu0 0.0
        %2335 = vmatprep.subr.mxu0 0.0
        %2336 = vmatpush2.msra.mxu0 0.0
        %2337 = vmatprep.subr.mxu0 0.0
        %2338 = vmatpush2.msra.mxu0 0.0
        %2339 = vmatprep.subr.mxu0 0.0
        %2340 = vmatpush2.msra.mxu0 0.0
        %2341 = vmatprep.subr.mxu0 0.0
        %2342 = vmatpush2.msra.mxu0 0.0
        %2343 = vmatprep.subr.mxu0 0.0
        %2344 = vmatpush2.msra.mxu0 0.0
        %2345 = vmatprep.subr.mxu0 0.0
        %2346 = vmatpush2.msra.mxu0 0.0
        %2347 = vmatprep.subr.mxu0 0.0
        %2348 = vmatpush2.msra.mxu0 0.0
        %2349 = vmatprep.subr.mxu0 0.0
        %2350 = vmatpush2.msra.mxu0 0.0
        %2351 = vmatprep.subr.mxu0 0.0
        %2352 = vmatpush2.msra.mxu0 0.0
        %2353 = vmatprep.subr.mxu0 0.0
        %2354 = vmatpush2.msra.mxu0 0.0
        %2355 = vmatprep.subr.mxu0 0.0
        %2356 = vmatpush2.msra.mxu0 0.0
        %2357 = vmatprep.subr.mxu0 0.0
        %2358 = vmatpush2.msra.mxu0 0.0
        %2359 = vmatprep.subr.mxu0 0.0
        %2360 = vmatpush2.msra.mxu0 0.0
        %2361 = vmatprep.subr.mxu0 0.0
        %2362 = vmatpush2.msra.mxu0 0.0
        %2363 = vmatprep.mubr.f32.mxu0 0.0
        %2364 = vmatmul.mubr.f32.gmra.mxu0 %v2297
        %v2365 = vpop.f32.mrf.mxu0
        %v2366 = vadd.f32 %v2292, %v2365
        %v2367 = vpop.f32.mrf.mxu0
        %2368 = vdwg.mxu0
        %2370 = vrot.lane.b32.xlu0 %v2366, 32
        %v2371 = vpop.permute.xlu0 %2370
        %v2373 = vsel %vm842, %v2218, %v2371
        %v2374 = vadd.f32 %v2373, %v847
        %2376 = vrot.lane.b32.xlu0 %v2374, 64
        %v2377 = vpop.permute.xlu0 %2376
        %2379 = vst.msk [vmem:[%s215 + $0x10] sm:$0xff] %vm1158, %v2377
        %2380 = vrot.lane.b32.xlu0 %v383, 32
        %v2381 = vpop.permute.xlu0 %2380
        %v2382 = vsel %vm545, %v2381, 0
        %2384 = vmatprep.subr.mxu0 0.0
        %2385 = vmatpush1.msra.mxu0 0.0
        %2386 = vmatprep.subr.mxu0 0.0
        %2387 = vmatpush1.msra.mxu0 0.0
        %2388 = vmatprep.subr.mxu0 0.0
        %2389 = vmatpush1.msra.mxu0 0.0
        %2390 = vmatprep.subr.mxu0 0.0
        %2391 = vmatpush1.msra.mxu0 0.0
        %2392 = vmatprep.subr.mxu0 0.0
        %2393 = vmatpush1.msra.mxu0 0.0
        %2394 = vmatprep.subr.mxu0 0.0
        %2395 = vmatpush1.msra.mxu0 0.0
        %2396 = vmatprep.subr.mxu0 0.0
        %2397 = vmatpush1.msra.mxu0 0.0
        %2398 = vmatprep.subr.mxu0 0.0
        %2399 = vmatpush1.msra.mxu0 0.0
        %2400 = vmatprep.subr.mxu0 0.0
        %2401 = vmatpush1.msra.mxu0 0.0
        %2402 = vmatprep.subr.mxu0 0.0
        %2403 = vmatpush1.msra.mxu0 0.0
        %2404 = vmatprep.subr.mxu0 0.0
        %2405 = vmatpush1.msra.mxu0 0.0
        %2406 = vmatprep.subr.mxu0 0.0
        %2407 = vmatpush1.msra.mxu0 0.0
        %2408 = vmatprep.subr.mxu0 0.0
        %2409 = vmatpush1.msra.mxu0 0.0
        %2410 = vmatprep.subr.mxu0 0.0
        %2411 = vmatpush1.msra.mxu0 0.0
        %2412 = vmatprep.subr.mxu0 0.0
        %2413 = vmatpush1.msra.mxu0 %v543
        %2414 = vmatprep.subr.mxu0 0.0
        %2415 = vmatpush1.msra.mxu0 %v542
        %2416 = vmatprep.subr.mxu0 0.0
        %2417 = vmatpush2.msra.mxu0 0.0
        %2418 = vmatprep.subr.mxu0 0.0
        %2419 = vmatpush2.msra.mxu0 0.0
        %2420 = vmatprep.subr.mxu0 0.0
        %2421 = vmatpush2.msra.mxu0 0.0
        %2422 = vmatprep.subr.mxu0 0.0
        %2423 = vmatpush2.msra.mxu0 0.0
        %2424 = vmatprep.subr.mxu0 0.0
        %2425 = vmatpush2.msra.mxu0 0.0
        %2426 = vmatprep.subr.mxu0 0.0
        %2427 = vmatpush2.msra.mxu0 0.0
        %2428 = vmatprep.subr.mxu0 0.0
        %2429 = vmatpush2.msra.mxu0 0.0
        %2430 = vmatprep.subr.mxu0 0.0
        %2431 = vmatpush2.msra.mxu0 0.0
        %2432 = vmatprep.subr.mxu0 0.0
        %2433 = vmatpush2.msra.mxu0 0.0
        %2434 = vmatprep.subr.mxu0 0.0
        %2435 = vmatpush2.msra.mxu0 0.0
        %2436 = vmatprep.subr.mxu0 0.0
        %2437 = vmatpush2.msra.mxu0 0.0
        %2438 = vmatprep.subr.mxu0 0.0
        %2439 = vmatpush2.msra.mxu0 0.0
        %2440 = vmatprep.subr.mxu0 0.0
        %2441 = vmatpush2.msra.mxu0 0.0
        %2442 = vmatprep.subr.mxu0 0.0
        %2443 = vmatpush2.msra.mxu0 0.0
        %2444 = vmatprep.subr.mxu0 0.0
        %2445 = vmatpush2.msra.mxu0 0.0
        %2446 = vmatprep.subr.mxu0 0.0
        %2447 = vmatpush2.msra.mxu0 0.0
        %2448 = vmatprep.mubr.f32.mxu0 0.0
        %2449 = vmatmul.mubr.f32.gmra.mxu0 %v2382
        %v2450 = vpop.f32.mrf.mxu0
        %v2451 = vadd.f32 0.0, %v2450
        %v2452 = vpop.f32.mrf.mxu0
        %2453 = vdwg.mxu0
        %2454 = vrot.lane.b32.xlu0 %v307, 32
        %v2455 = vpop.permute.xlu0 %2454
        %v2456 = vsel %vm545, %v2455, 0
        %2458 = vmatprep.subr.mxu0 0.0
        %2459 = vmatpush1.msra.mxu0 0.0
        %2460 = vmatprep.subr.mxu0 0.0
        %2461 = vmatpush1.msra.mxu0 0.0
        %2462 = vmatprep.subr.mxu0 0.0
        %2463 = vmatpush1.msra.mxu0 0.0
        %2464 = vmatprep.subr.mxu0 0.0
        %2465 = vmatpush1.msra.mxu0 0.0
        %2466 = vmatprep.subr.mxu0 0.0
        %2467 = vmatpush1.msra.mxu0 0.0
        %2468 = vmatprep.subr.mxu0 0.0
        %2469 = vmatpush1.msra.mxu0 0.0
        %2470 = vmatprep.subr.mxu0 0.0
        %2471 = vmatpush1.msra.mxu0 0.0
        %2472 = vmatprep.subr.mxu0 0.0
        %2473 = vmatpush1.msra.mxu0 0.0
        %2474 = vmatprep.subr.mxu0 0.0
        %2475 = vmatpush1.msra.mxu0 0.0
        %2476 = vmatprep.subr.mxu0 0.0
        %2477 = vmatpush1.msra.mxu0 0.0
        %2478 = vmatprep.subr.mxu0 0.0
        %2479 = vmatpush1.msra.mxu0 0.0
        %2480 = vmatprep.subr.mxu0 0.0
        %2481 = vmatpush1.msra.mxu0 0.0
        %2482 = vmatprep.subr.mxu0 0.0
        %2483 = vmatpush1.msra.mxu0 0.0
        %2484 = vmatprep.subr.mxu0 0.0
        %2485 = vmatpush1.msra.mxu0 0.0
        %2486 = vmatprep.subr.mxu0 0.0
        %2487 = vmatpush1.msra.mxu0 %v540
        %2488 = vmatprep.subr.mxu0 0.0
        %2489 = vmatpush1.msra.mxu0 %v539
        %2490 = vmatprep.subr.mxu0 0.0
        %2491 = vmatpush2.msra.mxu0 0.0
        %2492 = vmatprep.subr.mxu0 0.0
        %2493 = vmatpush2.msra.mxu0 0.0
        %2494 = vmatprep.subr.mxu0 0.0
        %2495 = vmatpush2.msra.mxu0 0.0
        %2496 = vmatprep.subr.mxu0 0.0
        %2497 = vmatpush2.msra.mxu0 0.0
        %2498 = vmatprep.subr.mxu0 0.0
        %2499 = vmatpush2.msra.mxu0 0.0
        %2500 = vmatprep.subr.mxu0 0.0
        %2501 = vmatpush2.msra.mxu0 0.0
        %2502 = vmatprep.subr.mxu0 0.0
        %2503 = vmatpush2.msra.mxu0 0.0
        %2504 = vmatprep.subr.mxu0 0.0
        %2505 = vmatpush2.msra.mxu0 0.0
        %2506 = vmatprep.subr.mxu0 0.0
        %2507 = vmatpush2.msra.mxu0 0.0
        %2508 = vmatprep.subr.mxu0 0.0
        %2509 = vmatpush2.msra.mxu0 0.0
        %2510 = vmatprep.subr.mxu0 0.0
        %2511 = vmatpush2.msra.mxu0 0.0
        %2512 = vmatprep.subr.mxu0 0.0
        %2513 = vmatpush2.msra.mxu0 0.0
        %2514 = vmatprep.subr.mxu0 0.0
        %2515 = vmatpush2.msra.mxu0 0.0
        %2516 = vmatprep.subr.mxu0 0.0
        %2517 = vmatpush2.msra.mxu0 0.0
        %2518 = vmatprep.subr.mxu0 0.0
        %2519 = vmatpush2.msra.mxu0 0.0
        %2520 = vmatprep.subr.mxu0 0.0
        %2521 = vmatpush2.msra.mxu0 0.0
        %2522 = vmatprep.mubr.f32.mxu0 0.0
        %2523 = vmatmul.mubr.f32.gmra.mxu0 %v2456
        %v2524 = vpop.f32.mrf.mxu0
        %v2525 = vadd.f32 %v2451, %v2524
        %v2526 = vpop.f32.mrf.mxu0
        %2527 = vdwg.mxu0
        %2528 = vrot.lane.b32.xlu0 %v535, 32
        %v2529 = vpop.permute.xlu0 %2528
        %v2530 = vsel %vm545, %v2529, 0
        %2532 = vmatprep.subr.mxu0 0.0
        %2533 = vmatpush1.msra.mxu0 0.0
        %2534 = vmatprep.subr.mxu0 0.0
        %2535 = vmatpush1.msra.mxu0 0.0
        %2536 = vmatprep.subr.mxu0 0.0
        %2537 = vmatpush1.msra.mxu0 0.0
        %2538 = vmatprep.subr.mxu0 0.0
        %2539 = vmatpush1.msra.mxu0 0.0
        %2540 = vmatprep.subr.mxu0 0.0
        %2541 = vmatpush1.msra.mxu0 0.0
        %2542 = vmatprep.subr.mxu0 0.0
        %2543 = vmatpush1.msra.mxu0 0.0
        %2544 = vmatprep.subr.mxu0 0.0
        %2545 = vmatpush1.msra.mxu0 0.0
        %2546 = vmatprep.subr.mxu0 0.0
        %2547 = vmatpush1.msra.mxu0 0.0
        %2548 = vmatprep.subr.mxu0 0.0
        %2549 = vmatpush1.msra.mxu0 0.0
        %2550 = vmatprep.subr.mxu0 0.0
        %2551 = vmatpush1.msra.mxu0 0.0
        %2552 = vmatprep.subr.mxu0 0.0
        %2553 = vmatpush1.msra.mxu0 0.0
        %2554 = vmatprep.subr.mxu0 0.0
        %2555 = vmatpush1.msra.mxu0 0.0
        %2556 = vmatprep.subr.mxu0 0.0
        %2557 = vmatpush1.msra.mxu0 0.0
        %2558 = vmatprep.subr.mxu0 0.0
        %2559 = vmatpush1.msra.mxu0 0.0
        %2560 = vmatprep.subr.mxu0 0.0
        %2561 = vmatpush1.msra.mxu0 %v543
        %2562 = vmatprep.subr.mxu0 0.0
        %2563 = vmatpush1.msra.mxu0 %v542
        %2564 = vmatprep.subr.mxu0 0.0
        %2565 = vmatpush2.msra.mxu0 0.0
        %2566 = vmatprep.subr.mxu0 0.0
        %2567 = vmatpush2.msra.mxu0 0.0
        %2568 = vmatprep.subr.mxu0 0.0
        %2569 = vmatpush2.msra.mxu0 0.0
        %2570 = vmatprep.subr.mxu0 0.0
        %2571 = vmatpush2.msra.mxu0 0.0
        %2572 = vmatprep.subr.mxu0 0.0
        %2573 = vmatpush2.msra.mxu0 0.0
        %2574 = vmatprep.subr.mxu0 0.0
        %2575 = vmatpush2.msra.mxu0 0.0
        %2576 = vmatprep.subr.mxu0 0.0
        %2577 = vmatpush2.msra.mxu0 0.0
        %2578 = vmatprep.subr.mxu0 0.0
        %2579 = vmatpush2.msra.mxu0 0.0
        %2580 = vmatprep.subr.mxu0 0.0
        %2581 = vmatpush2.msra.mxu0 0.0
        %2582 = vmatprep.subr.mxu0 0.0
        %2583 = vmatpush2.msra.mxu0 0.0
        %2584 = vmatprep.subr.mxu0 0.0
        %2585 = vmatpush2.msra.mxu0 0.0
        %2586 = vmatprep.subr.mxu0 0.0
        %2587 = vmatpush2.msra.mxu0 0.0
        %2588 = vmatprep.subr.mxu0 0.0
        %2589 = vmatpush2.msra.mxu0 0.0
        %2590 = vmatprep.subr.mxu0 0.0
        %2591 = vmatpush2.msra.mxu0 0.0
        %2592 = vmatprep.subr.mxu0 0.0
        %2593 = vmatpush2.msra.mxu0 0.0
        %2594 = vmatprep.subr.mxu0 0.0
        %2595 = vmatpush2.msra.mxu0 0.0
        %2596 = vmatprep.mubr.f32.mxu0 0.0
        %2597 = vmatmul.mubr.f32.gmra.mxu0 %v2530
        %v2598 = vpop.f32.mrf.mxu0
        %v2599 = vadd.f32 0.0, %v2598
        %v2600 = vpop.f32.mrf.mxu0
        %2601 = vdwg.mxu0
        %2602 = vrot.lane.b32.xlu0 %v459, 32
        %v2603 = vpop.permute.xlu0 %2602
        %v2604 = vsel %vm545, %v2603, 0
        %2606 = vmatprep.subr.mxu0 0.0
        %2607 = vmatpush1.msra.mxu0 0.0
        %2608 = vmatprep.subr.mxu0 0.0
        %2609 = vmatpush1.msra.mxu0 0.0
        %2610 = vmatprep.subr.mxu0 0.0
        %2611 = vmatpush1.msra.mxu0 0.0
        %2612 = vmatprep.subr.mxu0 0.0
        %2613 = vmatpush1.msra.mxu0 0.0
        %2614 = vmatprep.subr.mxu0 0.0
        %2615 = vmatpush1.msra.mxu0 0.0
        %2616 = vmatprep.subr.mxu0 0.0
        %2617 = vmatpush1.msra.mxu0 0.0
        %2618 = vmatprep.subr.mxu0 0.0
        %2619 = vmatpush1.msra.mxu0 0.0
        %2620 = vmatprep.subr.mxu0 0.0
        %2621 = vmatpush1.msra.mxu0 0.0
        %2622 = vmatprep.subr.mxu0 0.0
        %2623 = vmatpush1.msra.mxu0 0.0
        %2624 = vmatprep.subr.mxu0 0.0
        %2625 = vmatpush1.msra.mxu0 0.0
        %2626 = vmatprep.subr.mxu0 0.0
        %2627 = vmatpush1.msra.mxu0 0.0
        %2628 = vmatprep.subr.mxu0 0.0
        %2629 = vmatpush1.msra.mxu0 0.0
        %2630 = vmatprep.subr.mxu0 0.0
        %2631 = vmatpush1.msra.mxu0 0.0
        %2632 = vmatprep.subr.mxu0 0.0
        %2633 = vmatpush1.msra.mxu0 0.0
        %2634 = vmatprep.subr.mxu0 0.0
        %2635 = vmatpush1.msra.mxu0 %v540
        %2636 = vmatprep.subr.mxu0 0.0
        %2637 = vmatpush1.msra.mxu0 %v539
        %2638 = vmatprep.subr.mxu0 0.0
        %2639 = vmatpush2.msra.mxu0 0.0
        %2640 = vmatprep.subr.mxu0 0.0
        %2641 = vmatpush2.msra.mxu0 0.0
        %2642 = vmatprep.subr.mxu0 0.0
        %2643 = vmatpush2.msra.mxu0 0.0
        %2644 = vmatprep.subr.mxu0 0.0
        %2645 = vmatpush2.msra.mxu0 0.0
        %2646 = vmatprep.subr.mxu0 0.0
        %2647 = vmatpush2.msra.mxu0 0.0
        %2648 = vmatprep.subr.mxu0 0.0
        %2649 = vmatpush2.msra.mxu0 0.0
        %2650 = vmatprep.subr.mxu0 0.0
        %2651 = vmatpush2.msra.mxu0 0.0
        %2652 = vmatprep.subr.mxu0 0.0
        %2653 = vmatpush2.msra.mxu0 0.0
        %2654 = vmatprep.subr.mxu0 0.0
        %2655 = vmatpush2.msra.mxu0 0.0
        %2656 = vmatprep.subr.mxu0 0.0
        %2657 = vmatpush2.msra.mxu0 0.0
        %2658 = vmatprep.subr.mxu0 0.0
        %2659 = vmatpush2.msra.mxu0 0.0
        %2660 = vmatprep.subr.mxu0 0.0
        %2661 = vmatpush2.msra.mxu0 0.0
        %2662 = vmatprep.subr.mxu0 0.0
        %2663 = vmatpush2.msra.mxu0 0.0
        %2664 = vmatprep.subr.mxu0 0.0
        %2665 = vmatpush2.msra.mxu0 0.0
        %2666 = vmatprep.subr.mxu0 0.0
        %2667 = vmatpush2.msra.mxu0 0.0
        %2668 = vmatprep.subr.mxu0 0.0
        %2669 = vmatpush2.msra.mxu0 0.0
        %2670 = vmatprep.mubr.f32.mxu0 0.0
        %2671 = vmatmul.mubr.f32.gmra.mxu0 %v2604
        %v2672 = vpop.f32.mrf.mxu0
        %v2673 = vadd.f32 %v2599, %v2672
        %v2674 = vpop.f32.mrf.mxu0
        %2675 = vdwg.mxu0
        %2677 = vrot.lane.b32.xlu0 %v2673, 32
        %v2678 = vpop.permute.xlu0 %2677
        %v2680 = vsel %vm842, %v2525, %v2678
        %v2681 = vadd.f32 %v2680, %v847
        %2682 = vst.msk [vmem:[%s215 + $0x18] sm:$0xff] %vm850, %v2681
        %2683 = vrot.lane.b32.xlu0 %v383, 16
        %v2684 = vpop.permute.xlu0 %2683
        %v2685 = vsel %vm545, %v2684, 0
        %2687 = vmatprep.subr.mxu0 0.0
        %2688 = vmatpush1.msra.mxu0 0.0
        %2689 = vmatprep.subr.mxu0 0.0
        %2690 = vmatpush1.msra.mxu0 0.0
        %2691 = vmatprep.subr.mxu0 0.0
        %2692 = vmatpush1.msra.mxu0 0.0
        %2693 = vmatprep.subr.mxu0 0.0
        %2694 = vmatpush1.msra.mxu0 0.0
        %2695 = vmatprep.subr.mxu0 0.0
        %2696 = vmatpush1.msra.mxu0 0.0
        %2697 = vmatprep.subr.mxu0 0.0
        %2698 = vmatpush1.msra.mxu0 0.0
        %2699 = vmatprep.subr.mxu0 0.0
        %2700 = vmatpush1.msra.mxu0 0.0
        %2701 = vmatprep.subr.mxu0 0.0
        %2702 = vmatpush1.msra.mxu0 0.0
        %2703 = vmatprep.subr.mxu0 0.0
        %2704 = vmatpush1.msra.mxu0 0.0
        %2705 = vmatprep.subr.mxu0 0.0
        %2706 = vmatpush1.msra.mxu0 0.0
        %2707 = vmatprep.subr.mxu0 0.0
        %2708 = vmatpush1.msra.mxu0 0.0
        %2709 = vmatprep.subr.mxu0 0.0
        %2710 = vmatpush1.msra.mxu0 0.0
        %2711 = vmatprep.subr.mxu0 0.0
        %2712 = vmatpush1.msra.mxu0 0.0
        %2713 = vmatprep.subr.mxu0 0.0
        %2714 = vmatpush1.msra.mxu0 0.0
        %2715 = vmatprep.subr.mxu0 0.0
        %2716 = vmatpush1.msra.mxu0 %v543
        %2717 = vmatprep.subr.mxu0 0.0
        %2718 = vmatpush1.msra.mxu0 %v542
        %2719 = vmatprep.subr.mxu0 0.0
        %2720 = vmatpush2.msra.mxu0 0.0
        %2721 = vmatprep.subr.mxu0 0.0
        %2722 = vmatpush2.msra.mxu0 0.0
        %2723 = vmatprep.subr.mxu0 0.0
        %2724 = vmatpush2.msra.mxu0 0.0
        %2725 = vmatprep.subr.mxu0 0.0
        %2726 = vmatpush2.msra.mxu0 0.0
        %2727 = vmatprep.subr.mxu0 0.0
        %2728 = vmatpush2.msra.mxu0 0.0
        %2729 = vmatprep.subr.mxu0 0.0
        %2730 = vmatpush2.msra.mxu0 0.0
        %2731 = vmatprep.subr.mxu0 0.0
        %2732 = vmatpush2.msra.mxu0 0.0
        %2733 = vmatprep.subr.mxu0 0.0
        %2734 = vmatpush2.msra.mxu0 0.0
        %2735 = vmatprep.subr.mxu0 0.0
        %2736 = vmatpush2.msra.mxu0 0.0
        %2737 = vmatprep.subr.mxu0 0.0
        %2738 = vmatpush2.msra.mxu0 0.0
        %2739 = vmatprep.subr.mxu0 0.0
        %2740 = vmatpush2.msra.mxu0 0.0
        %2741 = vmatprep.subr.mxu0 0.0
        %2742 = vmatpush2.msra.mxu0 0.0
        %2743 = vmatprep.subr.mxu0 0.0
        %2744 = vmatpush2.msra.mxu0 0.0
        %2745 = vmatprep.subr.mxu0 0.0
        %2746 = vmatpush2.msra.mxu0 0.0
        %2747 = vmatprep.subr.mxu0 0.0
        %2748 = vmatpush2.msra.mxu0 0.0
        %2749 = vmatprep.subr.mxu0 0.0
        %2750 = vmatpush2.msra.mxu0 0.0
        %2751 = vmatprep.mubr.f32.mxu0 0.0
        %2752 = vmatmul.mubr.f32.gmra.mxu0 %v2685
        %v2753 = vpop.f32.mrf.mxu0
        %v2754 = vadd.f32 0.0, %v2753
        %v2755 = vpop.f32.mrf.mxu0
        %2756 = vdwg.mxu0
        %2757 = vrot.lane.b32.xlu0 %v307, 16
        %v2758 = vpop.permute.xlu0 %2757
        %v2759 = vsel %vm545, %v2758, 0
        %2761 = vmatprep.subr.mxu0 0.0
        %2762 = vmatpush1.msra.mxu0 0.0
        %2763 = vmatprep.subr.mxu0 0.0
        %2764 = vmatpush1.msra.mxu0 0.0
        %2765 = vmatprep.subr.mxu0 0.0
        %2766 = vmatpush1.msra.mxu0 0.0
        %2767 = vmatprep.subr.mxu0 0.0
        %2768 = vmatpush1.msra.mxu0 0.0
        %2769 = vmatprep.subr.mxu0 0.0
        %2770 = vmatpush1.msra.mxu0 0.0
        %2771 = vmatprep.subr.mxu0 0.0
        %2772 = vmatpush1.msra.mxu0 0.0
        %2773 = vmatprep.subr.mxu0 0.0
        %2774 = vmatpush1.msra.mxu0 0.0
        %2775 = vmatprep.subr.mxu0 0.0
        %2776 = vmatpush1.msra.mxu0 0.0
        %2777 = vmatprep.subr.mxu0 0.0
        %2778 = vmatpush1.msra.mxu0 0.0
        %2779 = vmatprep.subr.mxu0 0.0
        %2780 = vmatpush1.msra.mxu0 0.0
        %2781 = vmatprep.subr.mxu0 0.0
        %2782 = vmatpush1.msra.mxu0 0.0
        %2783 = vmatprep.subr.mxu0 0.0
        %2784 = vmatpush1.msra.mxu0 0.0
        %2785 = vmatprep.subr.mxu0 0.0
        %2786 = vmatpush1.msra.mxu0 0.0
        %2787 = vmatprep.subr.mxu0 0.0
        %2788 = vmatpush1.msra.mxu0 0.0
        %2789 = vmatprep.subr.mxu0 0.0
        %2790 = vmatpush1.msra.mxu0 %v540
        %2791 = vmatprep.subr.mxu0 0.0
        %2792 = vmatpush1.msra.mxu0 %v539
        %2793 = vmatprep.subr.mxu0 0.0
        %2794 = vmatpush2.msra.mxu0 0.0
        %2795 = vmatprep.subr.mxu0 0.0
        %2796 = vmatpush2.msra.mxu0 0.0
        %2797 = vmatprep.subr.mxu0 0.0
        %2798 = vmatpush2.msra.mxu0 0.0
        %2799 = vmatprep.subr.mxu0 0.0
        %2800 = vmatpush2.msra.mxu0 0.0
        %2801 = vmatprep.subr.mxu0 0.0
        %2802 = vmatpush2.msra.mxu0 0.0
        %2803 = vmatprep.subr.mxu0 0.0
        %2804 = vmatpush2.msra.mxu0 0.0
        %2805 = vmatprep.subr.mxu0 0.0
        %2806 = vmatpush2.msra.mxu0 0.0
        %2807 = vmatprep.subr.mxu0 0.0
        %2808 = vmatpush2.msra.mxu0 0.0
        %2809 = vmatprep.subr.mxu0 0.0
        %2810 = vmatpush2.msra.mxu0 0.0
        %2811 = vmatprep.subr.mxu0 0.0
        %2812 = vmatpush2.msra.mxu0 0.0
        %2813 = vmatprep.subr.mxu0 0.0
        %2814 = vmatpush2.msra.mxu0 0.0
        %2815 = vmatprep.subr.mxu0 0.0
        %2816 = vmatpush2.msra.mxu0 0.0
        %2817 = vmatprep.subr.mxu0 0.0
        %2818 = vmatpush2.msra.mxu0 0.0
        %2819 = vmatprep.subr.mxu0 0.0
        %2820 = vmatpush2.msra.mxu0 0.0
        %2821 = vmatprep.subr.mxu0 0.0
        %2822 = vmatpush2.msra.mxu0 0.0
        %2823 = vmatprep.subr.mxu0 0.0
        %2824 = vmatpush2.msra.mxu0 0.0
        %2825 = vmatprep.mubr.f32.mxu0 0.0
        %2826 = vmatmul.mubr.f32.gmra.mxu0 %v2759
        %v2827 = vpop.f32.mrf.mxu0
        %v2828 = vadd.f32 %v2754, %v2827
        %v2829 = vpop.f32.mrf.mxu0
        %2830 = vdwg.mxu0
        %2831 = vrot.lane.b32.xlu0 %v535, 16
        %v2832 = vpop.permute.xlu0 %2831
        %v2833 = vsel %vm545, %v2832, 0
        %2835 = vmatprep.subr.mxu0 0.0
        %2836 = vmatpush1.msra.mxu0 0.0
        %2837 = vmatprep.subr.mxu0 0.0
        %2838 = vmatpush1.msra.mxu0 0.0
        %2839 = vmatprep.subr.mxu0 0.0
        %2840 = vmatpush1.msra.mxu0 0.0
        %2841 = vmatprep.subr.mxu0 0.0
        %2842 = vmatpush1.msra.mxu0 0.0
        %2843 = vmatprep.subr.mxu0 0.0
        %2844 = vmatpush1.msra.mxu0 0.0
        %2845 = vmatprep.subr.mxu0 0.0
        %2846 = vmatpush1.msra.mxu0 0.0
        %2847 = vmatprep.subr.mxu0 0.0
        %2848 = vmatpush1.msra.mxu0 0.0
        %2849 = vmatprep.subr.mxu0 0.0
        %2850 = vmatpush1.msra.mxu0 0.0
        %2851 = vmatprep.subr.mxu0 0.0
        %2852 = vmatpush1.msra.mxu0 0.0
        %2853 = vmatprep.subr.mxu0 0.0
        %2854 = vmatpush1.msra.mxu0 0.0
        %2855 = vmatprep.subr.mxu0 0.0
        %2856 = vmatpush1.msra.mxu0 0.0
        %2857 = vmatprep.subr.mxu0 0.0
        %2858 = vmatpush1.msra.mxu0 0.0
        %2859 = vmatprep.subr.mxu0 0.0
        %2860 = vmatpush1.msra.mxu0 0.0
        %2861 = vmatprep.subr.mxu0 0.0
        %2862 = vmatpush1.msra.mxu0 0.0
        %2863 = vmatprep.subr.mxu0 0.0
        %2864 = vmatpush1.msra.mxu0 %v543
        %2865 = vmatprep.subr.mxu0 0.0
        %2866 = vmatpush1.msra.mxu0 %v542
        %2867 = vmatprep.subr.mxu0 0.0
        %2868 = vmatpush2.msra.mxu0 0.0
        %2869 = vmatprep.subr.mxu0 0.0
        %2870 = vmatpush2.msra.mxu0 0.0
        %2871 = vmatprep.subr.mxu0 0.0
        %2872 = vmatpush2.msra.mxu0 0.0
        %2873 = vmatprep.subr.mxu0 0.0
        %2874 = vmatpush2.msra.mxu0 0.0
        %2875 = vmatprep.subr.mxu0 0.0
        %2876 = vmatpush2.msra.mxu0 0.0
        %2877 = vmatprep.subr.mxu0 0.0
        %2878 = vmatpush2.msra.mxu0 0.0
        %2879 = vmatprep.subr.mxu0 0.0
        %2880 = vmatpush2.msra.mxu0 0.0
        %2881 = vmatprep.subr.mxu0 0.0
        %2882 = vmatpush2.msra.mxu0 0.0
        %2883 = vmatprep.subr.mxu0 0.0
        %2884 = vmatpush2.msra.mxu0 0.0
        %2885 = vmatprep.subr.mxu0 0.0
        %2886 = vmatpush2.msra.mxu0 0.0
        %2887 = vmatprep.subr.mxu0 0.0
        %2888 = vmatpush2.msra.mxu0 0.0
        %2889 = vmatprep.subr.mxu0 0.0
        %2890 = vmatpush2.msra.mxu0 0.0
        %2891 = vmatprep.subr.mxu0 0.0
        %2892 = vmatpush2.msra.mxu0 0.0
        %2893 = vmatprep.subr.mxu0 0.0
        %2894 = vmatpush2.msra.mxu0 0.0
        %2895 = vmatprep.subr.mxu0 0.0
        %2896 = vmatpush2.msra.mxu0 0.0
        %2897 = vmatprep.subr.mxu0 0.0
        %2898 = vmatpush2.msra.mxu0 0.0
        %2899 = vmatprep.mubr.f32.mxu0 0.0
        %2900 = vmatmul.mubr.f32.gmra.mxu0 %v2833
        %v2901 = vpop.f32.mrf.mxu0
        %v2902 = vadd.f32 0.0, %v2901
        %v2903 = vpop.f32.mrf.mxu0
        %2904 = vdwg.mxu0
        %2905 = vrot.lane.b32.xlu0 %v459, 16
        %v2906 = vpop.permute.xlu0 %2905
        %v2907 = vsel %vm545, %v2906, 0
        %2909 = vmatprep.subr.mxu0 0.0
        %2910 = vmatpush1.msra.mxu0 0.0
        %2911 = vmatprep.subr.mxu0 0.0
        %2912 = vmatpush1.msra.mxu0 0.0
        %2913 = vmatprep.subr.mxu0 0.0
        %2914 = vmatpush1.msra.mxu0 0.0
        %2915 = vmatprep.subr.mxu0 0.0
        %2916 = vmatpush1.msra.mxu0 0.0
        %2917 = vmatprep.subr.mxu0 0.0
        %2918 = vmatpush1.msra.mxu0 0.0
        %2919 = vmatprep.subr.mxu0 0.0
        %2920 = vmatpush1.msra.mxu0 0.0
        %2921 = vmatprep.subr.mxu0 0.0
        %2922 = vmatpush1.msra.mxu0 0.0
        %2923 = vmatprep.subr.mxu0 0.0
        %2924 = vmatpush1.msra.mxu0 0.0
        %2925 = vmatprep.subr.mxu0 0.0
        %2926 = vmatpush1.msra.mxu0 0.0
        %2927 = vmatprep.subr.mxu0 0.0
        %2928 = vmatpush1.msra.mxu0 0.0
        %2929 = vmatprep.subr.mxu0 0.0
        %2930 = vmatpush1.msra.mxu0 0.0
        %2931 = vmatprep.subr.mxu0 0.0
        %2932 = vmatpush1.msra.mxu0 0.0
        %2933 = vmatprep.subr.mxu0 0.0
        %2934 = vmatpush1.msra.mxu0 0.0
        %2935 = vmatprep.subr.mxu0 0.0
        %2936 = vmatpush1.msra.mxu0 0.0
        %2937 = vmatprep.subr.mxu0 0.0
        %2938 = vmatpush1.msra.mxu0 %v540
        %2939 = vmatprep.subr.mxu0 0.0
        %2940 = vmatpush1.msra.mxu0 %v539
        %2941 = vmatprep.subr.mxu0 0.0
        %2942 = vmatpush2.msra.mxu0 0.0
        %2943 = vmatprep.subr.mxu0 0.0
        %2944 = vmatpush2.msra.mxu0 0.0
        %2945 = vmatprep.subr.mxu0 0.0
        %2946 = vmatpush2.msra.mxu0 0.0
        %2947 = vmatprep.subr.mxu0 0.0
        %2948 = vmatpush2.msra.mxu0 0.0
        %2949 = vmatprep.subr.mxu0 0.0
        %2950 = vmatpush2.msra.mxu0 0.0
        %2951 = vmatprep.subr.mxu0 0.0
        %2952 = vmatpush2.msra.mxu0 0.0
        %2953 = vmatprep.subr.mxu0 0.0
        %2954 = vmatpush2.msra.mxu0 0.0
        %2955 = vmatprep.subr.mxu0 0.0
        %2956 = vmatpush2.msra.mxu0 0.0
        %2957 = vmatprep.subr.mxu0 0.0
        %2958 = vmatpush2.msra.mxu0 0.0
        %2959 = vmatprep.subr.mxu0 0.0
        %2960 = vmatpush2.msra.mxu0 0.0
        %2961 = vmatprep.subr.mxu0 0.0
        %2962 = vmatpush2.msra.mxu0 0.0
        %2963 = vmatprep.subr.mxu0 0.0
        %2964 = vmatpush2.msra.mxu0 0.0
        %2965 = vmatprep.subr.mxu0 0.0
        %2966 = vmatpush2.msra.mxu0 0.0
        %2967 = vmatprep.subr.mxu0 0.0
        %2968 = vmatpush2.msra.mxu0 0.0
        %2969 = vmatprep.subr.mxu0 0.0
        %2970 = vmatpush2.msra.mxu0 0.0
        %2971 = vmatprep.subr.mxu0 0.0
        %2972 = vmatpush2.msra.mxu0 0.0
        %2973 = vmatprep.mubr.f32.mxu0 0.0
        %2974 = vmatmul.mubr.f32.gmra.mxu0 %v2907
        %v2975 = vpop.f32.mrf.mxu0
        %v2976 = vadd.f32 %v2902, %v2975
        %v2977 = vpop.f32.mrf.mxu0
        %2978 = vdwg.mxu0
        %2980 = vrot.lane.b32.xlu0 %v2976, 32
        %v2981 = vpop.permute.xlu0 %2980
        %v2983 = vsel %vm842, %v2828, %v2981
        %v2984 = vadd.f32 %v2983, %v847
        %2986 = vrot.lane.b32.xlu0 %v2984, 64
        %v2987 = vpop.permute.xlu0 %2986
        %2989 = vst.msk [vmem:[%s215 + $0x18] sm:$0xff] %vm1158, %v2987
        %v2991 = vsel %vm545, %v385, 0
        %2993 = vmatprep.subr.mxu0 0.0
        %2994 = vmatpush1.msra.mxu0 0.0
        %2995 = vmatprep.subr.mxu0 0.0
        %2996 = vmatpush1.msra.mxu0 0.0
        %2997 = vmatprep.subr.mxu0 0.0
        %2998 = vmatpush1.msra.mxu0 0.0
        %2999 = vmatprep.subr.mxu0 0.0
        %3000 = vmatpush1.msra.mxu0 0.0
        %3001 = vmatprep.subr.mxu0 0.0
        %3002 = vmatpush1.msra.mxu0 0.0
        %3003 = vmatprep.subr.mxu0 0.0
        %3004 = vmatpush1.msra.mxu0 0.0
        %3005 = vmatprep.subr.mxu0 0.0
        %3006 = vmatpush1.msra.mxu0 0.0
        %3007 = vmatprep.subr.mxu0 0.0
        %3008 = vmatpush1.msra.mxu0 0.0
        %3009 = vmatprep.subr.mxu0 0.0
        %3010 = vmatpush1.msra.mxu0 0.0
        %3011 = vmatprep.subr.mxu0 0.0
        %3012 = vmatpush1.msra.mxu0 0.0
        %3013 = vmatprep.subr.mxu0 0.0
        %3014 = vmatpush1.msra.mxu0 0.0
        %3015 = vmatprep.subr.mxu0 0.0
        %3016 = vmatpush1.msra.mxu0 0.0
        %3017 = vmatprep.subr.mxu0 0.0
        %3018 = vmatpush1.msra.mxu0 0.0
        %3019 = vmatprep.subr.mxu0 0.0
        %3020 = vmatpush1.msra.mxu0 0.0
        %3021 = vmatprep.subr.mxu0 0.0
        %3022 = vmatpush1.msra.mxu0 %v543
        %3023 = vmatprep.subr.mxu0 0.0
        %3024 = vmatpush1.msra.mxu0 %v542
        %3025 = vmatprep.subr.mxu0 0.0
        %3026 = vmatpush2.msra.mxu0 0.0
        %3027 = vmatprep.subr.mxu0 0.0
        %3028 = vmatpush2.msra.mxu0 0.0
        %3029 = vmatprep.subr.mxu0 0.0
        %3030 = vmatpush2.msra.mxu0 0.0
        %3031 = vmatprep.subr.mxu0 0.0
        %3032 = vmatpush2.msra.mxu0 0.0
        %3033 = vmatprep.subr.mxu0 0.0
        %3034 = vmatpush2.msra.mxu0 0.0
        %3035 = vmatprep.subr.mxu0 0.0
        %3036 = vmatpush2.msra.mxu0 0.0
        %3037 = vmatprep.subr.mxu0 0.0
        %3038 = vmatpush2.msra.mxu0 0.0
        %3039 = vmatprep.subr.mxu0 0.0
        %3040 = vmatpush2.msra.mxu0 0.0
        %3041 = vmatprep.subr.mxu0 0.0
        %3042 = vmatpush2.msra.mxu0 0.0
        %3043 = vmatprep.subr.mxu0 0.0
        %3044 = vmatpush2.msra.mxu0 0.0
        %3045 = vmatprep.subr.mxu0 0.0
        %3046 = vmatpush2.msra.mxu0 0.0
        %3047 = vmatprep.subr.mxu0 0.0
        %3048 = vmatpush2.msra.mxu0 0.0
        %3049 = vmatprep.subr.mxu0 0.0
        %3050 = vmatpush2.msra.mxu0 0.0
        %3051 = vmatprep.subr.mxu0 0.0
        %3052 = vmatpush2.msra.mxu0 0.0
        %3053 = vmatprep.subr.mxu0 0.0
        %3054 = vmatpush2.msra.mxu0 0.0
        %3055 = vmatprep.subr.mxu0 0.0
        %3056 = vmatpush2.msra.mxu0 0.0
        %3057 = vmatprep.mubr.f32.mxu0 0.0
        %3058 = vmatmul.mubr.f32.gmra.mxu0 %v2991
        %v3059 = vpop.f32.mrf.mxu0
        %v3060 = vadd.f32 0.0, %v3059
        %v3061 = vpop.f32.mrf.mxu0
        %3062 = vdwg.mxu0
        %v3064 = vsel %vm545, %v309, 0
        %3066 = vmatprep.subr.mxu0 0.0
        %3067 = vmatpush1.msra.mxu0 0.0
        %3068 = vmatprep.subr.mxu0 0.0
        %3069 = vmatpush1.msra.mxu0 0.0
        %3070 = vmatprep.subr.mxu0 0.0
        %3071 = vmatpush1.msra.mxu0 0.0
        %3072 = vmatprep.subr.mxu0 0.0
        %3073 = vmatpush1.msra.mxu0 0.0
        %3074 = vmatprep.subr.mxu0 0.0
        %3075 = vmatpush1.msra.mxu0 0.0
        %3076 = vmatprep.subr.mxu0 0.0
        %3077 = vmatpush1.msra.mxu0 0.0
        %3078 = vmatprep.subr.mxu0 0.0
        %3079 = vmatpush1.msra.mxu0 0.0
        %3080 = vmatprep.subr.mxu0 0.0
        %3081 = vmatpush1.msra.mxu0 0.0
        %3082 = vmatprep.subr.mxu0 0.0
        %3083 = vmatpush1.msra.mxu0 0.0
        %3084 = vmatprep.subr.mxu0 0.0
        %3085 = vmatpush1.msra.mxu0 0.0
        %3086 = vmatprep.subr.mxu0 0.0
        %3087 = vmatpush1.msra.mxu0 0.0
        %3088 = vmatprep.subr.mxu0 0.0
        %3089 = vmatpush1.msra.mxu0 0.0
        %3090 = vmatprep.subr.mxu0 0.0
        %3091 = vmatpush1.msra.mxu0 0.0
        %3092 = vmatprep.subr.mxu0 0.0
        %3093 = vmatpush1.msra.mxu0 0.0
        %3094 = vmatprep.subr.mxu0 0.0
        %3095 = vmatpush1.msra.mxu0 %v540
        %3096 = vmatprep.subr.mxu0 0.0
        %3097 = vmatpush1.msra.mxu0 %v539
        %3098 = vmatprep.subr.mxu0 0.0
        %3099 = vmatpush2.msra.mxu0 0.0
        %3100 = vmatprep.subr.mxu0 0.0
        %3101 = vmatpush2.msra.mxu0 0.0
        %3102 = vmatprep.subr.mxu0 0.0
        %3103 = vmatpush2.msra.mxu0 0.0
        %3104 = vmatprep.subr.mxu0 0.0
        %3105 = vmatpush2.msra.mxu0 0.0
        %3106 = vmatprep.subr.mxu0 0.0
        %3107 = vmatpush2.msra.mxu0 0.0
        %3108 = vmatprep.subr.mxu0 0.0
        %3109 = vmatpush2.msra.mxu0 0.0
        %3110 = vmatprep.subr.mxu0 0.0
        %3111 = vmatpush2.msra.mxu0 0.0
        %3112 = vmatprep.subr.mxu0 0.0
        %3113 = vmatpush2.msra.mxu0 0.0
        %3114 = vmatprep.subr.mxu0 0.0
        %3115 = vmatpush2.msra.mxu0 0.0
        %3116 = vmatprep.subr.mxu0 0.0
        %3117 = vmatpush2.msra.mxu0 0.0
        %3118 = vmatprep.subr.mxu0 0.0
        %3119 = vmatpush2.msra.mxu0 0.0
        %3120 = vmatprep.subr.mxu0 0.0
        %3121 = vmatpush2.msra.mxu0 0.0
        %3122 = vmatprep.subr.mxu0 0.0
        %3123 = vmatpush2.msra.mxu0 0.0
        %3124 = vmatprep.subr.mxu0 0.0
        %3125 = vmatpush2.msra.mxu0 0.0
        %3126 = vmatprep.subr.mxu0 0.0
        %3127 = vmatpush2.msra.mxu0 0.0
        %3128 = vmatprep.subr.mxu0 0.0
        %3129 = vmatpush2.msra.mxu0 0.0
        %3130 = vmatprep.mubr.f32.mxu0 0.0
        %3131 = vmatmul.mubr.f32.gmra.mxu0 %v3064
        %v3132 = vpop.f32.mrf.mxu0
        %v3133 = vadd.f32 %v3060, %v3132
        %v3134 = vpop.f32.mrf.mxu0
        %3135 = vdwg.mxu0
        %v3137 = vsel %vm545, %v537, 0
        %3139 = vmatprep.subr.mxu0 0.0
        %3140 = vmatpush1.msra.mxu0 0.0
        %3141 = vmatprep.subr.mxu0 0.0
        %3142 = vmatpush1.msra.mxu0 0.0
        %3143 = vmatprep.subr.mxu0 0.0
        %3144 = vmatpush1.msra.mxu0 0.0
        %3145 = vmatprep.subr.mxu0 0.0
        %3146 = vmatpush1.msra.mxu0 0.0
        %3147 = vmatprep.subr.mxu0 0.0
        %3148 = vmatpush1.msra.mxu0 0.0
        %3149 = vmatprep.subr.mxu0 0.0
        %3150 = vmatpush1.msra.mxu0 0.0
        %3151 = vmatprep.subr.mxu0 0.0
        %3152 = vmatpush1.msra.mxu0 0.0
        %3153 = vmatprep.subr.mxu0 0.0
        %3154 = vmatpush1.msra.mxu0 0.0
        %3155 = vmatprep.subr.mxu0 0.0
        %3156 = vmatpush1.msra.mxu0 0.0
        %3157 = vmatprep.subr.mxu0 0.0
        %3158 = vmatpush1.msra.mxu0 0.0
        %3159 = vmatprep.subr.mxu0 0.0
        %3160 = vmatpush1.msra.mxu0 0.0
        %3161 = vmatprep.subr.mxu0 0.0
        %3162 = vmatpush1.msra.mxu0 0.0
        %3163 = vmatprep.subr.mxu0 0.0
        %3164 = vmatpush1.msra.mxu0 0.0
        %3165 = vmatprep.subr.mxu0 0.0
        %3166 = vmatpush1.msra.mxu0 0.0
        %3167 = vmatprep.subr.mxu0 0.0
        %3168 = vmatpush1.msra.mxu0 %v543
        %3169 = vmatprep.subr.mxu0 0.0
        %3170 = vmatpush1.msra.mxu0 %v542
        %3171 = vmatprep.subr.mxu0 0.0
        %3172 = vmatpush2.msra.mxu0 0.0
        %3173 = vmatprep.subr.mxu0 0.0
        %3174 = vmatpush2.msra.mxu0 0.0
        %3175 = vmatprep.subr.mxu0 0.0
        %3176 = vmatpush2.msra.mxu0 0.0
        %3177 = vmatprep.subr.mxu0 0.0
        %3178 = vmatpush2.msra.mxu0 0.0
        %3179 = vmatprep.subr.mxu0 0.0
        %3180 = vmatpush2.msra.mxu0 0.0
        %3181 = vmatprep.subr.mxu0 0.0
        %3182 = vmatpush2.msra.mxu0 0.0
        %3183 = vmatprep.subr.mxu0 0.0
        %3184 = vmatpush2.msra.mxu0 0.0
        %3185 = vmatprep.subr.mxu0 0.0
        %3186 = vmatpush2.msra.mxu0 0.0
        %3187 = vmatprep.subr.mxu0 0.0
        %3188 = vmatpush2.msra.mxu0 0.0
        %3189 = vmatprep.subr.mxu0 0.0
        %3190 = vmatpush2.msra.mxu0 0.0
        %3191 = vmatprep.subr.mxu0 0.0
        %3192 = vmatpush2.msra.mxu0 0.0
        %3193 = vmatprep.subr.mxu0 0.0
        %3194 = vmatpush2.msra.mxu0 0.0
        %3195 = vmatprep.subr.mxu0 0.0
        %3196 = vmatpush2.msra.mxu0 0.0
        %3197 = vmatprep.subr.mxu0 0.0
        %3198 = vmatpush2.msra.mxu0 0.0
        %3199 = vmatprep.subr.mxu0 0.0
        %3200 = vmatpush2.msra.mxu0 0.0
        %3201 = vmatprep.subr.mxu0 0.0
        %3202 = vmatpush2.msra.mxu0 0.0
        %3203 = vmatprep.mubr.f32.mxu0 0.0
        %3204 = vmatmul.mubr.f32.gmra.mxu0 %v3137
        %v3205 = vpop.f32.mrf.mxu0
        %v3206 = vadd.f32 0.0, %v3205
        %v3207 = vpop.f32.mrf.mxu0
        %3208 = vdwg.mxu0
        %v3210 = vsel %vm545, %v461, 0
        %3212 = vmatprep.subr.mxu0 0.0
        %3213 = vmatpush1.msra.mxu0 0.0
        %3214 = vmatprep.subr.mxu0 0.0
        %3215 = vmatpush1.msra.mxu0 0.0
        %3216 = vmatprep.subr.mxu0 0.0
        %3217 = vmatpush1.msra.mxu0 0.0
        %3218 = vmatprep.subr.mxu0 0.0
        %3219 = vmatpush1.msra.mxu0 0.0
        %3220 = vmatprep.subr.mxu0 0.0
        %3221 = vmatpush1.msra.mxu0 0.0
        %3222 = vmatprep.subr.mxu0 0.0
        %3223 = vmatpush1.msra.mxu0 0.0
        %3224 = vmatprep.subr.mxu0 0.0
        %3225 = vmatpush1.msra.mxu0 0.0
        %3226 = vmatprep.subr.mxu0 0.0
        %3227 = vmatpush1.msra.mxu0 0.0
        %3228 = vmatprep.subr.mxu0 0.0
        %3229 = vmatpush1.msra.mxu0 0.0
        %3230 = vmatprep.subr.mxu0 0.0
        %3231 = vmatpush1.msra.mxu0 0.0
        %3232 = vmatprep.subr.mxu0 0.0
        %3233 = vmatpush1.msra.mxu0 0.0
        %3234 = vmatprep.subr.mxu0 0.0
        %3235 = vmatpush1.msra.mxu0 0.0
        %3236 = vmatprep.subr.mxu0 0.0
        %3237 = vmatpush1.msra.mxu0 0.0
        %3238 = vmatprep.subr.mxu0 0.0
        %3239 = vmatpush1.msra.mxu0 0.0
        %3240 = vmatprep.subr.mxu0 0.0
        %3241 = vmatpush1.msra.mxu0 %v540
        %3242 = vmatprep.subr.mxu0 0.0
        %3243 = vmatpush1.msra.mxu0 %v539
        %3244 = vmatprep.subr.mxu0 0.0
        %3245 = vmatpush2.msra.mxu0 0.0
        %3246 = vmatprep.subr.mxu0 0.0
        %3247 = vmatpush2.msra.mxu0 0.0
        %3248 = vmatprep.subr.mxu0 0.0
        %3249 = vmatpush2.msra.mxu0 0.0
        %3250 = vmatprep.subr.mxu0 0.0
        %3251 = vmatpush2.msra.mxu0 0.0
        %3252 = vmatprep.subr.mxu0 0.0
        %3253 = vmatpush2.msra.mxu0 0.0
        %3254 = vmatprep.subr.mxu0 0.0
        %3255 = vmatpush2.msra.mxu0 0.0
        %3256 = vmatprep.subr.mxu0 0.0
        %3257 = vmatpush2.msra.mxu0 0.0
        %3258 = vmatprep.subr.mxu0 0.0
        %3259 = vmatpush2.msra.mxu0 0.0
        %3260 = vmatprep.subr.mxu0 0.0
        %3261 = vmatpush2.msra.mxu0 0.0
        %3262 = vmatprep.subr.mxu0 0.0
        %3263 = vmatpush2.msra.mxu0 0.0
        %3264 = vmatprep.subr.mxu0 0.0
        %3265 = vmatpush2.msra.mxu0 0.0
        %3266 = vmatprep.subr.mxu0 0.0
        %3267 = vmatpush2.msra.mxu0 0.0
        %3268 = vmatprep.subr.mxu0 0.0
        %3269 = vmatpush2.msra.mxu0 0.0
        %3270 = vmatprep.subr.mxu0 0.0
        %3271 = vmatpush2.msra.mxu0 0.0
        %3272 = vmatprep.subr.mxu0 0.0
        %3273 = vmatpush2.msra.mxu0 0.0
        %3274 = vmatprep.subr.mxu0 0.0
        %3275 = vmatpush2.msra.mxu0 0.0
        %3276 = vmatprep.mubr.f32.mxu0 0.0
        %3277 = vmatmul.mubr.f32.gmra.mxu0 %v3210
        %v3278 = vpop.f32.mrf.mxu0
        %v3279 = vadd.f32 %v3206, %v3278
        %v3280 = vpop.f32.mrf.mxu0
        %3281 = vdwg.mxu0
        %3283 = vrot.lane.b32.xlu0 %v3279, 32
        %v3284 = vpop.permute.xlu0 %3283
        %v3286 = vsel %vm842, %v3133, %v3284
        %v3287 = vadd.f32 %v3286, %v847
        %3288 = vst.msk [vmem:[%s215 + $0x20] sm:$0xff] %vm850, %v3287
        %3289 = vrot.lane.b32.xlu0 %v385, 112
        %v3290 = vpop.permute.xlu0 %3289
        %v3291 = vsel %vm545, %v3290, 0
        %3293 = vmatprep.subr.mxu0 0.0
        %3294 = vmatpush1.msra.mxu0 0.0
        %3295 = vmatprep.subr.mxu0 0.0
        %3296 = vmatpush1.msra.mxu0 0.0
        %3297 = vmatprep.subr.mxu0 0.0
        %3298 = vmatpush1.msra.mxu0 0.0
        %3299 = vmatprep.subr.mxu0 0.0
        %3300 = vmatpush1.msra.mxu0 0.0
        %3301 = vmatprep.subr.mxu0 0.0
        %3302 = vmatpush1.msra.mxu0 0.0
        %3303 = vmatprep.subr.mxu0 0.0
        %3304 = vmatpush1.msra.mxu0 0.0
        %3305 = vmatprep.subr.mxu0 0.0
        %3306 = vmatpush1.msra.mxu0 0.0
        %3307 = vmatprep.subr.mxu0 0.0
        %3308 = vmatpush1.msra.mxu0 0.0
        %3309 = vmatprep.subr.mxu0 0.0
        %3310 = vmatpush1.msra.mxu0 0.0
        %3311 = vmatprep.subr.mxu0 0.0
        %3312 = vmatpush1.msra.mxu0 0.0
        %3313 = vmatprep.subr.mxu0 0.0
        %3314 = vmatpush1.msra.mxu0 0.0
        %3315 = vmatprep.subr.mxu0 0.0
        %3316 = vmatpush1.msra.mxu0 0.0
        %3317 = vmatprep.subr.mxu0 0.0
        %3318 = vmatpush1.msra.mxu0 0.0
        %3319 = vmatprep.subr.mxu0 0.0
        %3320 = vmatpush1.msra.mxu0 0.0
        %3321 = vmatprep.subr.mxu0 0.0
        %3322 = vmatpush1.msra.mxu0 %v543
        %3323 = vmatprep.subr.mxu0 0.0
        %3324 = vmatpush1.msra.mxu0 %v542
        %3325 = vmatprep.subr.mxu0 0.0
        %3326 = vmatpush2.msra.mxu0 0.0
        %3327 = vmatprep.subr.mxu0 0.0
        %3328 = vmatpush2.msra.mxu0 0.0
        %3329 = vmatprep.subr.mxu0 0.0
        %3330 = vmatpush2.msra.mxu0 0.0
        %3331 = vmatprep.subr.mxu0 0.0
        %3332 = vmatpush2.msra.mxu0 0.0
        %3333 = vmatprep.subr.mxu0 0.0
        %3334 = vmatpush2.msra.mxu0 0.0
        %3335 = vmatprep.subr.mxu0 0.0
        %3336 = vmatpush2.msra.mxu0 0.0
        %3337 = vmatprep.subr.mxu0 0.0
        %3338 = vmatpush2.msra.mxu0 0.0
        %3339 = vmatprep.subr.mxu0 0.0
        %3340 = vmatpush2.msra.mxu0 0.0
        %3341 = vmatprep.subr.mxu0 0.0
        %3342 = vmatpush2.msra.mxu0 0.0
        %3343 = vmatprep.subr.mxu0 0.0
        %3344 = vmatpush2.msra.mxu0 0.0
        %3345 = vmatprep.subr.mxu0 0.0
        %3346 = vmatpush2.msra.mxu0 0.0
        %3347 = vmatprep.subr.mxu0 0.0
        %3348 = vmatpush2.msra.mxu0 0.0
        %3349 = vmatprep.subr.mxu0 0.0
        %3350 = vmatpush2.msra.mxu0 0.0
        %3351 = vmatprep.subr.mxu0 0.0
        %3352 = vmatpush2.msra.mxu0 0.0
        %3353 = vmatprep.subr.mxu0 0.0
        %3354 = vmatpush2.msra.mxu0 0.0
        %3355 = vmatprep.subr.mxu0 0.0
        %3356 = vmatpush2.msra.mxu0 0.0
        %3357 = vmatprep.mubr.f32.mxu0 0.0
        %3358 = vmatmul.mubr.f32.gmra.mxu0 %v3291
        %v3359 = vpop.f32.mrf.mxu0
        %v3360 = vadd.f32 0.0, %v3359
        %v3361 = vpop.f32.mrf.mxu0
        %3362 = vdwg.mxu0
        %3363 = vrot.lane.b32.xlu0 %v309, 112
        %v3364 = vpop.permute.xlu0 %3363
        %v3365 = vsel %vm545, %v3364, 0
        %3367 = vmatprep.subr.mxu0 0.0
        %3368 = vmatpush1.msra.mxu0 0.0
        %3369 = vmatprep.subr.mxu0 0.0
        %3370 = vmatpush1.msra.mxu0 0.0
        %3371 = vmatprep.subr.mxu0 0.0
        %3372 = vmatpush1.msra.mxu0 0.0
        %3373 = vmatprep.subr.mxu0 0.0
        %3374 = vmatpush1.msra.mxu0 0.0
        %3375 = vmatprep.subr.mxu0 0.0
        %3376 = vmatpush1.msra.mxu0 0.0
        %3377 = vmatprep.subr.mxu0 0.0
        %3378 = vmatpush1.msra.mxu0 0.0
        %3379 = vmatprep.subr.mxu0 0.0
        %3380 = vmatpush1.msra.mxu0 0.0
        %3381 = vmatprep.subr.mxu0 0.0
        %3382 = vmatpush1.msra.mxu0 0.0
        %3383 = vmatprep.subr.mxu0 0.0
        %3384 = vmatpush1.msra.mxu0 0.0
        %3385 = vmatprep.subr.mxu0 0.0
        %3386 = vmatpush1.msra.mxu0 0.0
        %3387 = vmatprep.subr.mxu0 0.0
        %3388 = vmatpush1.msra.mxu0 0.0
        %3389 = vmatprep.subr.mxu0 0.0
        %3390 = vmatpush1.msra.mxu0 0.0
        %3391 = vmatprep.subr.mxu0 0.0
        %3392 = vmatpush1.msra.mxu0 0.0
        %3393 = vmatprep.subr.mxu0 0.0
        %3394 = vmatpush1.msra.mxu0 0.0
        %3395 = vmatprep.subr.mxu0 0.0
        %3396 = vmatpush1.msra.mxu0 %v540
        %3397 = vmatprep.subr.mxu0 0.0
        %3398 = vmatpush1.msra.mxu0 %v539
        %3399 = vmatprep.subr.mxu0 0.0
        %3400 = vmatpush2.msra.mxu0 0.0
        %3401 = vmatprep.subr.mxu0 0.0
        %3402 = vmatpush2.msra.mxu0 0.0
        %3403 = vmatprep.subr.mxu0 0.0
        %3404 = vmatpush2.msra.mxu0 0.0
        %3405 = vmatprep.subr.mxu0 0.0
        %3406 = vmatpush2.msra.mxu0 0.0
        %3407 = vmatprep.subr.mxu0 0.0
        %3408 = vmatpush2.msra.mxu0 0.0
        %3409 = vmatprep.subr.mxu0 0.0
        %3410 = vmatpush2.msra.mxu0 0.0
        %3411 = vmatprep.subr.mxu0 0.0
        %3412 = vmatpush2.msra.mxu0 0.0
        %3413 = vmatprep.subr.mxu0 0.0
        %3414 = vmatpush2.msra.mxu0 0.0
        %3415 = vmatprep.subr.mxu0 0.0
        %3416 = vmatpush2.msra.mxu0 0.0
        %3417 = vmatprep.subr.mxu0 0.0
        %3418 = vmatpush2.msra.mxu0 0.0
        %3419 = vmatprep.subr.mxu0 0.0
        %3420 = vmatpush2.msra.mxu0 0.0
        %3421 = vmatprep.subr.mxu0 0.0
        %3422 = vmatpush2.msra.mxu0 0.0
        %3423 = vmatprep.subr.mxu0 0.0
        %3424 = vmatpush2.msra.mxu0 0.0
        %3425 = vmatprep.subr.mxu0 0.0
        %3426 = vmatpush2.msra.mxu0 0.0
        %3427 = vmatprep.subr.mxu0 0.0
        %3428 = vmatpush2.msra.mxu0 0.0
        %3429 = vmatprep.subr.mxu0 0.0
        %3430 = vmatpush2.msra.mxu0 0.0
        %3431 = vmatprep.mubr.f32.mxu0 0.0
        %3432 = vmatmul.mubr.f32.gmra.mxu0 %v3365
        %v3433 = vpop.f32.mrf.mxu0
        %v3434 = vadd.f32 %v3360, %v3433
        %v3435 = vpop.f32.mrf.mxu0
        %3436 = vdwg.mxu0
        %3437 = vrot.lane.b32.xlu0 %v537, 112
        %v3438 = vpop.permute.xlu0 %3437
        %v3439 = vsel %vm545, %v3438, 0
        %3441 = vmatprep.subr.mxu0 0.0
        %3442 = vmatpush1.msra.mxu0 0.0
        %3443 = vmatprep.subr.mxu0 0.0
        %3444 = vmatpush1.msra.mxu0 0.0
        %3445 = vmatprep.subr.mxu0 0.0
        %3446 = vmatpush1.msra.mxu0 0.0
        %3447 = vmatprep.subr.mxu0 0.0
        %3448 = vmatpush1.msra.mxu0 0.0
        %3449 = vmatprep.subr.mxu0 0.0
        %3450 = vmatpush1.msra.mxu0 0.0
        %3451 = vmatprep.subr.mxu0 0.0
        %3452 = vmatpush1.msra.mxu0 0.0
        %3453 = vmatprep.subr.mxu0 0.0
        %3454 = vmatpush1.msra.mxu0 0.0
        %3455 = vmatprep.subr.mxu0 0.0
        %3456 = vmatpush1.msra.mxu0 0.0
        %3457 = vmatprep.subr.mxu0 0.0
        %3458 = vmatpush1.msra.mxu0 0.0
        %3459 = vmatprep.subr.mxu0 0.0
        %3460 = vmatpush1.msra.mxu0 0.0
        %3461 = vmatprep.subr.mxu0 0.0
        %3462 = vmatpush1.msra.mxu0 0.0
        %3463 = vmatprep.subr.mxu0 0.0
        %3464 = vmatpush1.msra.mxu0 0.0
        %3465 = vmatprep.subr.mxu0 0.0
        %3466 = vmatpush1.msra.mxu0 0.0
        %3467 = vmatprep.subr.mxu0 0.0
        %3468 = vmatpush1.msra.mxu0 0.0
        %3469 = vmatprep.subr.mxu0 0.0
        %3470 = vmatpush1.msra.mxu0 %v543
        %3471 = vmatprep.subr.mxu0 0.0
        %3472 = vmatpush1.msra.mxu0 %v542
        %3473 = vmatprep.subr.mxu0 0.0
        %3474 = vmatpush2.msra.mxu0 0.0
        %3475 = vmatprep.subr.mxu0 0.0
        %3476 = vmatpush2.msra.mxu0 0.0
        %3477 = vmatprep.subr.mxu0 0.0
        %3478 = vmatpush2.msra.mxu0 0.0
        %3479 = vmatprep.subr.mxu0 0.0
        %3480 = vmatpush2.msra.mxu0 0.0
        %3481 = vmatprep.subr.mxu0 0.0
        %3482 = vmatpush2.msra.mxu0 0.0
        %3483 = vmatprep.subr.mxu0 0.0
        %3484 = vmatpush2.msra.mxu0 0.0
        %3485 = vmatprep.subr.mxu0 0.0
        %3486 = vmatpush2.msra.mxu0 0.0
        %3487 = vmatprep.subr.mxu0 0.0
        %3488 = vmatpush2.msra.mxu0 0.0
        %3489 = vmatprep.subr.mxu0 0.0
        %3490 = vmatpush2.msra.mxu0 0.0
        %3491 = vmatprep.subr.mxu0 0.0
        %3492 = vmatpush2.msra.mxu0 0.0
        %3493 = vmatprep.subr.mxu0 0.0
        %3494 = vmatpush2.msra.mxu0 0.0
        %3495 = vmatprep.subr.mxu0 0.0
        %3496 = vmatpush2.msra.mxu0 0.0
        %3497 = vmatprep.subr.mxu0 0.0
        %3498 = vmatpush2.msra.mxu0 0.0
        %3499 = vmatprep.subr.mxu0 0.0
        %3500 = vmatpush2.msra.mxu0 0.0
        %3501 = vmatprep.subr.mxu0 0.0
        %3502 = vmatpush2.msra.mxu0 0.0
        %3503 = vmatprep.subr.mxu0 0.0
        %3504 = vmatpush2.msra.mxu0 0.0
        %3505 = vmatprep.mubr.f32.mxu0 0.0
        %3506 = vmatmul.mubr.f32.gmra.mxu0 %v3439
        %v3507 = vpop.f32.mrf.mxu0
        %v3508 = vadd.f32 0.0, %v3507
        %v3509 = vpop.f32.mrf.mxu0
        %3510 = vdwg.mxu0
        %3511 = vrot.lane.b32.xlu0 %v461, 112
        %v3512 = vpop.permute.xlu0 %3511
        %v3513 = vsel %vm545, %v3512, 0
        %3515 = vmatprep.subr.mxu0 0.0
        %3516 = vmatpush1.msra.mxu0 0.0
        %3517 = vmatprep.subr.mxu0 0.0
        %3518 = vmatpush1.msra.mxu0 0.0
        %3519 = vmatprep.subr.mxu0 0.0
        %3520 = vmatpush1.msra.mxu0 0.0
        %3521 = vmatprep.subr.mxu0 0.0
        %3522 = vmatpush1.msra.mxu0 0.0
        %3523 = vmatprep.subr.mxu0 0.0
        %3524 = vmatpush1.msra.mxu0 0.0
        %3525 = vmatprep.subr.mxu0 0.0
        %3526 = vmatpush1.msra.mxu0 0.0
        %3527 = vmatprep.subr.mxu0 0.0
        %3528 = vmatpush1.msra.mxu0 0.0
        %3529 = vmatprep.subr.mxu0 0.0
        %3530 = vmatpush1.msra.mxu0 0.0
        %3531 = vmatprep.subr.mxu0 0.0
        %3532 = vmatpush1.msra.mxu0 0.0
        %3533 = vmatprep.subr.mxu0 0.0
        %3534 = vmatpush1.msra.mxu0 0.0
        %3535 = vmatprep.subr.mxu0 0.0
        %3536 = vmatpush1.msra.mxu0 0.0
        %3537 = vmatprep.subr.mxu0 0.0
        %3538 = vmatpush1.msra.mxu0 0.0
        %3539 = vmatprep.subr.mxu0 0.0
        %3540 = vmatpush1.msra.mxu0 0.0
        %3541 = vmatprep.subr.mxu0 0.0
        %3542 = vmatpush1.msra.mxu0 0.0
        %3543 = vmatprep.subr.mxu0 0.0
        %3544 = vmatpush1.msra.mxu0 %v540
        %3545 = vmatprep.subr.mxu0 0.0
        %3546 = vmatpush1.msra.mxu0 %v539
        %3547 = vmatprep.subr.mxu0 0.0
        %3548 = vmatpush2.msra.mxu0 0.0
        %3549 = vmatprep.subr.mxu0 0.0
        %3550 = vmatpush2.msra.mxu0 0.0
        %3551 = vmatprep.subr.mxu0 0.0
        %3552 = vmatpush2.msra.mxu0 0.0
        %3553 = vmatprep.subr.mxu0 0.0
        %3554 = vmatpush2.msra.mxu0 0.0
        %3555 = vmatprep.subr.mxu0 0.0
        %3556 = vmatpush2.msra.mxu0 0.0
        %3557 = vmatprep.subr.mxu0 0.0
        %3558 = vmatpush2.msra.mxu0 0.0
        %3559 = vmatprep.subr.mxu0 0.0
        %3560 = vmatpush2.msra.mxu0 0.0
        %3561 = vmatprep.subr.mxu0 0.0
        %3562 = vmatpush2.msra.mxu0 0.0
        %3563 = vmatprep.subr.mxu0 0.0
        %3564 = vmatpush2.msra.mxu0 0.0
        %3565 = vmatprep.subr.mxu0 0.0
        %3566 = vmatpush2.msra.mxu0 0.0
        %3567 = vmatprep.subr.mxu0 0.0
        %3568 = vmatpush2.msra.mxu0 0.0
        %3569 = vmatprep.subr.mxu0 0.0
        %3570 = vmatpush2.msra.mxu0 0.0
        %3571 = vmatprep.subr.mxu0 0.0
        %3572 = vmatpush2.msra.mxu0 0.0
        %3573 = vmatprep.subr.mxu0 0.0
        %3574 = vmatpush2.msra.mxu0 0.0
        %3575 = vmatprep.subr.mxu0 0.0
        %3576 = vmatpush2.msra.mxu0 0.0
        %3577 = vmatprep.subr.mxu0 0.0
        %3578 = vmatpush2.msra.mxu0 0.0
        %3579 = vmatprep.mubr.f32.mxu0 0.0
        %3580 = vmatmul.mubr.f32.gmra.mxu0 %v3513
        %v3581 = vpop.f32.mrf.mxu0
        %v3582 = vadd.f32 %v3508, %v3581
        %v3583 = vpop.f32.mrf.mxu0
        %3584 = vdwg.mxu0
        %3586 = vrot.lane.b32.xlu0 %v3582, 32
        %v3587 = vpop.permute.xlu0 %3586
        %v3589 = vsel %vm842, %v3434, %v3587
        %v3590 = vadd.f32 %v3589, %v847
        %3592 = vrot.lane.b32.xlu0 %v3590, 64
        %v3593 = vpop.permute.xlu0 %3592
        %3595 = vst.msk [vmem:[%s215 + $0x20] sm:$0xff] %vm1158, %v3593
        %3596 = vrot.lane.b32.xlu0 %v385, 96
        %v3597 = vpop.permute.xlu0 %3596
        %v3598 = vsel %vm545, %v3597, 0
        %3600 = vmatprep.subr.mxu0 0.0
        %3601 = vmatpush1.msra.mxu0 0.0
        %3602 = vmatprep.subr.mxu0 0.0
        %3603 = vmatpush1.msra.mxu0 0.0
        %3604 = vmatprep.subr.mxu0 0.0
        %3605 = vmatpush1.msra.mxu0 0.0
        %3606 = vmatprep.subr.mxu0 0.0
        %3607 = vmatpush1.msra.mxu0 0.0
        %3608 = vmatprep.subr.mxu0 0.0
        %3609 = vmatpush1.msra.mxu0 0.0
        %3610 = vmatprep.subr.mxu0 0.0
        %3611 = vmatpush1.msra.mxu0 0.0
        %3612 = vmatprep.subr.mxu0 0.0
        %3613 = vmatpush1.msra.mxu0 0.0
        %3614 = vmatprep.subr.mxu0 0.0
        %3615 = vmatpush1.msra.mxu0 0.0
        %3616 = vmatprep.subr.mxu0 0.0
        %3617 = vmatpush1.msra.mxu0 0.0
        %3618 = vmatprep.subr.mxu0 0.0
        %3619 = vmatpush1.msra.mxu0 0.0
        %3620 = vmatprep.subr.mxu0 0.0
        %3621 = vmatpush1.msra.mxu0 0.0
        %3622 = vmatprep.subr.mxu0 0.0
        %3623 = vmatpush1.msra.mxu0 0.0
        %3624 = vmatprep.subr.mxu0 0.0
        %3625 = vmatpush1.msra.mxu0 0.0
        %3626 = vmatprep.subr.mxu0 0.0
        %3627 = vmatpush1.msra.mxu0 0.0
        %3628 = vmatprep.subr.mxu0 0.0
        %3629 = vmatpush1.msra.mxu0 %v543
        %3630 = vmatprep.subr.mxu0 0.0
        %3631 = vmatpush1.msra.mxu0 %v542
        %3632 = vmatprep.subr.mxu0 0.0
        %3633 = vmatpush2.msra.mxu0 0.0
        %3634 = vmatprep.subr.mxu0 0.0
        %3635 = vmatpush2.msra.mxu0 0.0
        %3636 = vmatprep.subr.mxu0 0.0
        %3637 = vmatpush2.msra.mxu0 0.0
        %3638 = vmatprep.subr.mxu0 0.0
        %3639 = vmatpush2.msra.mxu0 0.0
        %3640 = vmatprep.subr.mxu0 0.0
        %3641 = vmatpush2.msra.mxu0 0.0
        %3642 = vmatprep.subr.mxu0 0.0
        %3643 = vmatpush2.msra.mxu0 0.0
        %3644 = vmatprep.subr.mxu0 0.0
        %3645 = vmatpush2.msra.mxu0 0.0
        %3646 = vmatprep.subr.mxu0 0.0
        %3647 = vmatpush2.msra.mxu0 0.0
        %3648 = vmatprep.subr.mxu0 0.0
        %3649 = vmatpush2.msra.mxu0 0.0
        %3650 = vmatprep.subr.mxu0 0.0
        %3651 = vmatpush2.msra.mxu0 0.0
        %3652 = vmatprep.subr.mxu0 0.0
        %3653 = vmatpush2.msra.mxu0 0.0
        %3654 = vmatprep.subr.mxu0 0.0
        %3655 = vmatpush2.msra.mxu0 0.0
        %3656 = vmatprep.subr.mxu0 0.0
        %3657 = vmatpush2.msra.mxu0 0.0
        %3658 = vmatprep.subr.mxu0 0.0
        %3659 = vmatpush2.msra.mxu0 0.0
        %3660 = vmatprep.subr.mxu0 0.0
        %3661 = vmatpush2.msra.mxu0 0.0
        %3662 = vmatprep.subr.mxu0 0.0
        %3663 = vmatpush2.msra.mxu0 0.0
        %3664 = vmatprep.mubr.f32.mxu0 0.0
        %3665 = vmatmul.mubr.f32.gmra.mxu0 %v3598
        %v3666 = vpop.f32.mrf.mxu0
        %v3667 = vadd.f32 0.0, %v3666
        %v3668 = vpop.f32.mrf.mxu0
        %3669 = vdwg.mxu0
        %3670 = vrot.lane.b32.xlu0 %v309, 96
        %v3671 = vpop.permute.xlu0 %3670
        %v3672 = vsel %vm545, %v3671, 0
        %3674 = vmatprep.subr.mxu0 0.0
        %3675 = vmatpush1.msra.mxu0 0.0
        %3676 = vmatprep.subr.mxu0 0.0
        %3677 = vmatpush1.msra.mxu0 0.0
        %3678 = vmatprep.subr.mxu0 0.0
        %3679 = vmatpush1.msra.mxu0 0.0
        %3680 = vmatprep.subr.mxu0 0.0
        %3681 = vmatpush1.msra.mxu0 0.0
        %3682 = vmatprep.subr.mxu0 0.0
        %3683 = vmatpush1.msra.mxu0 0.0
        %3684 = vmatprep.subr.mxu0 0.0
        %3685 = vmatpush1.msra.mxu0 0.0
        %3686 = vmatprep.subr.mxu0 0.0
        %3687 = vmatpush1.msra.mxu0 0.0
        %3688 = vmatprep.subr.mxu0 0.0
        %3689 = vmatpush1.msra.mxu0 0.0
        %3690 = vmatprep.subr.mxu0 0.0
        %3691 = vmatpush1.msra.mxu0 0.0
        %3692 = vmatprep.subr.mxu0 0.0
        %3693 = vmatpush1.msra.mxu0 0.0
        %3694 = vmatprep.subr.mxu0 0.0
        %3695 = vmatpush1.msra.mxu0 0.0
        %3696 = vmatprep.subr.mxu0 0.0
        %3697 = vmatpush1.msra.mxu0 0.0
        %3698 = vmatprep.subr.mxu0 0.0
        %3699 = vmatpush1.msra.mxu0 0.0
        %3700 = vmatprep.subr.mxu0 0.0
        %3701 = vmatpush1.msra.mxu0 0.0
        %3702 = vmatprep.subr.mxu0 0.0
        %3703 = vmatpush1.msra.mxu0 %v540
        %3704 = vmatprep.subr.mxu0 0.0
        %3705 = vmatpush1.msra.mxu0 %v539
        %3706 = vmatprep.subr.mxu0 0.0
        %3707 = vmatpush2.msra.mxu0 0.0
        %3708 = vmatprep.subr.mxu0 0.0
        %3709 = vmatpush2.msra.mxu0 0.0
        %3710 = vmatprep.subr.mxu0 0.0
        %3711 = vmatpush2.msra.mxu0 0.0
        %3712 = vmatprep.subr.mxu0 0.0
        %3713 = vmatpush2.msra.mxu0 0.0
        %3714 = vmatprep.subr.mxu0 0.0
        %3715 = vmatpush2.msra.mxu0 0.0
        %3716 = vmatprep.subr.mxu0 0.0
        %3717 = vmatpush2.msra.mxu0 0.0
        %3718 = vmatprep.subr.mxu0 0.0
        %3719 = vmatpush2.msra.mxu0 0.0
        %3720 = vmatprep.subr.mxu0 0.0
        %3721 = vmatpush2.msra.mxu0 0.0
        %3722 = vmatprep.subr.mxu0 0.0
        %3723 = vmatpush2.msra.mxu0 0.0
        %3724 = vmatprep.subr.mxu0 0.0
        %3725 = vmatpush2.msra.mxu0 0.0
        %3726 = vmatprep.subr.mxu0 0.0
        %3727 = vmatpush2.msra.mxu0 0.0
        %3728 = vmatprep.subr.mxu0 0.0
        %3729 = vmatpush2.msra.mxu0 0.0
        %3730 = vmatprep.subr.mxu0 0.0
        %3731 = vmatpush2.msra.mxu0 0.0
        %3732 = vmatprep.subr.mxu0 0.0
        %3733 = vmatpush2.msra.mxu0 0.0
        %3734 = vmatprep.subr.mxu0 0.0
        %3735 = vmatpush2.msra.mxu0 0.0
        %3736 = vmatprep.subr.mxu0 0.0
        %3737 = vmatpush2.msra.mxu0 0.0
        %3738 = vmatprep.mubr.f32.mxu0 0.0
        %3739 = vmatmul.mubr.f32.gmra.mxu0 %v3672
        %v3740 = vpop.f32.mrf.mxu0
        %v3741 = vadd.f32 %v3667, %v3740
        %v3742 = vpop.f32.mrf.mxu0
        %3743 = vdwg.mxu0
        %3744 = vrot.lane.b32.xlu0 %v537, 96
        %v3745 = vpop.permute.xlu0 %3744
        %v3746 = vsel %vm545, %v3745, 0
        %3748 = vmatprep.subr.mxu0 0.0
        %3749 = vmatpush1.msra.mxu0 0.0
        %3750 = vmatprep.subr.mxu0 0.0
        %3751 = vmatpush1.msra.mxu0 0.0
        %3752 = vmatprep.subr.mxu0 0.0
        %3753 = vmatpush1.msra.mxu0 0.0
        %3754 = vmatprep.subr.mxu0 0.0
        %3755 = vmatpush1.msra.mxu0 0.0
        %3756 = vmatprep.subr.mxu0 0.0
        %3757 = vmatpush1.msra.mxu0 0.0
        %3758 = vmatprep.subr.mxu0 0.0
        %3759 = vmatpush1.msra.mxu0 0.0
        %3760 = vmatprep.subr.mxu0 0.0
        %3761 = vmatpush1.msra.mxu0 0.0
        %3762 = vmatprep.subr.mxu0 0.0
        %3763 = vmatpush1.msra.mxu0 0.0
        %3764 = vmatprep.subr.mxu0 0.0
        %3765 = vmatpush1.msra.mxu0 0.0
        %3766 = vmatprep.subr.mxu0 0.0
        %3767 = vmatpush1.msra.mxu0 0.0
        %3768 = vmatprep.subr.mxu0 0.0
        %3769 = vmatpush1.msra.mxu0 0.0
        %3770 = vmatprep.subr.mxu0 0.0
        %3771 = vmatpush1.msra.mxu0 0.0
        %3772 = vmatprep.subr.mxu0 0.0
        %3773 = vmatpush1.msra.mxu0 0.0
        %3774 = vmatprep.subr.mxu0 0.0
        %3775 = vmatpush1.msra.mxu0 0.0
        %3776 = vmatprep.subr.mxu0 0.0
        %3777 = vmatpush1.msra.mxu0 %v543
        %3778 = vmatprep.subr.mxu0 0.0
        %3779 = vmatpush1.msra.mxu0 %v542
        %3780 = vmatprep.subr.mxu0 0.0
        %3781 = vmatpush2.msra.mxu0 0.0
        %3782 = vmatprep.subr.mxu0 0.0
        %3783 = vmatpush2.msra.mxu0 0.0
        %3784 = vmatprep.subr.mxu0 0.0
        %3785 = vmatpush2.msra.mxu0 0.0
        %3786 = vmatprep.subr.mxu0 0.0
        %3787 = vmatpush2.msra.mxu0 0.0
        %3788 = vmatprep.subr.mxu0 0.0
        %3789 = vmatpush2.msra.mxu0 0.0
        %3790 = vmatprep.subr.mxu0 0.0
        %3791 = vmatpush2.msra.mxu0 0.0
        %3792 = vmatprep.subr.mxu0 0.0
        %3793 = vmatpush2.msra.mxu0 0.0
        %3794 = vmatprep.subr.mxu0 0.0
        %3795 = vmatpush2.msra.mxu0 0.0
        %3796 = vmatprep.subr.mxu0 0.0
        %3797 = vmatpush2.msra.mxu0 0.0
        %3798 = vmatprep.subr.mxu0 0.0
        %3799 = vmatpush2.msra.mxu0 0.0
        %3800 = vmatprep.subr.mxu0 0.0
        %3801 = vmatpush2.msra.mxu0 0.0
        %3802 = vmatprep.subr.mxu0 0.0
        %3803 = vmatpush2.msra.mxu0 0.0
        %3804 = vmatprep.subr.mxu0 0.0
        %3805 = vmatpush2.msra.mxu0 0.0
        %3806 = vmatprep.subr.mxu0 0.0
        %3807 = vmatpush2.msra.mxu0 0.0
        %3808 = vmatprep.subr.mxu0 0.0
        %3809 = vmatpush2.msra.mxu0 0.0
        %3810 = vmatprep.subr.mxu0 0.0
        %3811 = vmatpush2.msra.mxu0 0.0
        %3812 = vmatprep.mubr.f32.mxu0 0.0
        %3813 = vmatmul.mubr.f32.gmra.mxu0 %v3746
        %v3814 = vpop.f32.mrf.mxu0
        %v3815 = vadd.f32 0.0, %v3814
        %v3816 = vpop.f32.mrf.mxu0
        %3817 = vdwg.mxu0
        %3818 = vrot.lane.b32.xlu0 %v461, 96
        %v3819 = vpop.permute.xlu0 %3818
        %v3820 = vsel %vm545, %v3819, 0
        %3822 = vmatprep.subr.mxu0 0.0
        %3823 = vmatpush1.msra.mxu0 0.0
        %3824 = vmatprep.subr.mxu0 0.0
        %3825 = vmatpush1.msra.mxu0 0.0
        %3826 = vmatprep.subr.mxu0 0.0
        %3827 = vmatpush1.msra.mxu0 0.0
        %3828 = vmatprep.subr.mxu0 0.0
        %3829 = vmatpush1.msra.mxu0 0.0
        %3830 = vmatprep.subr.mxu0 0.0
        %3831 = vmatpush1.msra.mxu0 0.0
        %3832 = vmatprep.subr.mxu0 0.0
        %3833 = vmatpush1.msra.mxu0 0.0
        %3834 = vmatprep.subr.mxu0 0.0
        %3835 = vmatpush1.msra.mxu0 0.0
        %3836 = vmatprep.subr.mxu0 0.0
        %3837 = vmatpush1.msra.mxu0 0.0
        %3838 = vmatprep.subr.mxu0 0.0
        %3839 = vmatpush1.msra.mxu0 0.0
        %3840 = vmatprep.subr.mxu0 0.0
        %3841 = vmatpush1.msra.mxu0 0.0
        %3842 = vmatprep.subr.mxu0 0.0
        %3843 = vmatpush1.msra.mxu0 0.0
        %3844 = vmatprep.subr.mxu0 0.0
        %3845 = vmatpush1.msra.mxu0 0.0
        %3846 = vmatprep.subr.mxu0 0.0
        %3847 = vmatpush1.msra.mxu0 0.0
        %3848 = vmatprep.subr.mxu0 0.0
        %3849 = vmatpush1.msra.mxu0 0.0
        %3850 = vmatprep.subr.mxu0 0.0
        %3851 = vmatpush1.msra.mxu0 %v540
        %3852 = vmatprep.subr.mxu0 0.0
        %3853 = vmatpush1.msra.mxu0 %v539
        %3854 = vmatprep.subr.mxu0 0.0
        %3855 = vmatpush2.msra.mxu0 0.0
        %3856 = vmatprep.subr.mxu0 0.0
        %3857 = vmatpush2.msra.mxu0 0.0
        %3858 = vmatprep.subr.mxu0 0.0
        %3859 = vmatpush2.msra.mxu0 0.0
        %3860 = vmatprep.subr.mxu0 0.0
        %3861 = vmatpush2.msra.mxu0 0.0
        %3862 = vmatprep.subr.mxu0 0.0
        %3863 = vmatpush2.msra.mxu0 0.0
        %3864 = vmatprep.subr.mxu0 0.0
        %3865 = vmatpush2.msra.mxu0 0.0
        %3866 = vmatprep.subr.mxu0 0.0
        %3867 = vmatpush2.msra.mxu0 0.0
        %3868 = vmatprep.subr.mxu0 0.0
        %3869 = vmatpush2.msra.mxu0 0.0
        %3870 = vmatprep.subr.mxu0 0.0
        %3871 = vmatpush2.msra.mxu0 0.0
        %3872 = vmatprep.subr.mxu0 0.0
        %3873 = vmatpush2.msra.mxu0 0.0
        %3874 = vmatprep.subr.mxu0 0.0
        %3875 = vmatpush2.msra.mxu0 0.0
        %3876 = vmatprep.subr.mxu0 0.0
        %3877 = vmatpush2.msra.mxu0 0.0
        %3878 = vmatprep.subr.mxu0 0.0
        %3879 = vmatpush2.msra.mxu0 0.0
        %3880 = vmatprep.subr.mxu0 0.0
        %3881 = vmatpush2.msra.mxu0 0.0
        %3882 = vmatprep.subr.mxu0 0.0
        %3883 = vmatpush2.msra.mxu0 0.0
        %3884 = vmatprep.subr.mxu0 0.0
        %3885 = vmatpush2.msra.mxu0 0.0
        %3886 = vmatprep.mubr.f32.mxu0 0.0
        %3887 = vmatmul.mubr.f32.gmra.mxu0 %v3820
        %v3888 = vpop.f32.mrf.mxu0
        %v3889 = vadd.f32 %v3815, %v3888
        %v3890 = vpop.f32.mrf.mxu0
        %3891 = vdwg.mxu0
        %3893 = vrot.lane.b32.xlu0 %v3889, 32
        %v3894 = vpop.permute.xlu0 %3893
        %v3896 = vsel %vm842, %v3741, %v3894
        %v3897 = vadd.f32 %v3896, %v847
        %3898 = vst.msk [vmem:[%s215 + $0x28] sm:$0xff] %vm850, %v3897
        %3899 = vrot.lane.b32.xlu0 %v385, 80
        %v3900 = vpop.permute.xlu0 %3899
        %v3901 = vsel %vm545, %v3900, 0
        %3903 = vmatprep.subr.mxu0 0.0
        %3904 = vmatpush1.msra.mxu0 0.0
        %3905 = vmatprep.subr.mxu0 0.0
        %3906 = vmatpush1.msra.mxu0 0.0
        %3907 = vmatprep.subr.mxu0 0.0
        %3908 = vmatpush1.msra.mxu0 0.0
        %3909 = vmatprep.subr.mxu0 0.0
        %3910 = vmatpush1.msra.mxu0 0.0
        %3911 = vmatprep.subr.mxu0 0.0
        %3912 = vmatpush1.msra.mxu0 0.0
        %3913 = vmatprep.subr.mxu0 0.0
        %3914 = vmatpush1.msra.mxu0 0.0
        %3915 = vmatprep.subr.mxu0 0.0
        %3916 = vmatpush1.msra.mxu0 0.0
        %3917 = vmatprep.subr.mxu0 0.0
        %3918 = vmatpush1.msra.mxu0 0.0
        %3919 = vmatprep.subr.mxu0 0.0
        %3920 = vmatpush1.msra.mxu0 0.0
        %3921 = vmatprep.subr.mxu0 0.0
        %3922 = vmatpush1.msra.mxu0 0.0
        %3923 = vmatprep.subr.mxu0 0.0
        %3924 = vmatpush1.msra.mxu0 0.0
        %3925 = vmatprep.subr.mxu0 0.0
        %3926 = vmatpush1.msra.mxu0 0.0
        %3927 = vmatprep.subr.mxu0 0.0
        %3928 = vmatpush1.msra.mxu0 0.0
        %3929 = vmatprep.subr.mxu0 0.0
        %3930 = vmatpush1.msra.mxu0 0.0
        %3931 = vmatprep.subr.mxu0 0.0
        %3932 = vmatpush1.msra.mxu0 %v543
        %3933 = vmatprep.subr.mxu0 0.0
        %3934 = vmatpush1.msra.mxu0 %v542
        %3935 = vmatprep.subr.mxu0 0.0
        %3936 = vmatpush2.msra.mxu0 0.0
        %3937 = vmatprep.subr.mxu0 0.0
        %3938 = vmatpush2.msra.mxu0 0.0
        %3939 = vmatprep.subr.mxu0 0.0
        %3940 = vmatpush2.msra.mxu0 0.0
        %3941 = vmatprep.subr.mxu0 0.0
        %3942 = vmatpush2.msra.mxu0 0.0
        %3943 = vmatprep.subr.mxu0 0.0
        %3944 = vmatpush2.msra.mxu0 0.0
        %3945 = vmatprep.subr.mxu0 0.0
        %3946 = vmatpush2.msra.mxu0 0.0
        %3947 = vmatprep.subr.mxu0 0.0
        %3948 = vmatpush2.msra.mxu0 0.0
        %3949 = vmatprep.subr.mxu0 0.0
        %3950 = vmatpush2.msra.mxu0 0.0
        %3951 = vmatprep.subr.mxu0 0.0
        %3952 = vmatpush2.msra.mxu0 0.0
        %3953 = vmatprep.subr.mxu0 0.0
        %3954 = vmatpush2.msra.mxu0 0.0
        %3955 = vmatprep.subr.mxu0 0.0
        %3956 = vmatpush2.msra.mxu0 0.0
        %3957 = vmatprep.subr.mxu0 0.0
        %3958 = vmatpush2.msra.mxu0 0.0
        %3959 = vmatprep.subr.mxu0 0.0
        %3960 = vmatpush2.msra.mxu0 0.0
        %3961 = vmatprep.subr.mxu0 0.0
        %3962 = vmatpush2.msra.mxu0 0.0
        %3963 = vmatprep.subr.mxu0 0.0
        %3964 = vmatpush2.msra.mxu0 0.0
        %3965 = vmatprep.subr.mxu0 0.0
        %3966 = vmatpush2.msra.mxu0 0.0
        %3967 = vmatprep.mubr.f32.mxu0 0.0
        %3968 = vmatmul.mubr.f32.gmra.mxu0 %v3901
        %v3969 = vpop.f32.mrf.mxu0
        %v3970 = vadd.f32 0.0, %v3969
        %v3971 = vpop.f32.mrf.mxu0
        %3972 = vdwg.mxu0
        %3973 = vrot.lane.b32.xlu0 %v309, 80
        %v3974 = vpop.permute.xlu0 %3973
        %v3975 = vsel %vm545, %v3974, 0
        %3977 = vmatprep.subr.mxu0 0.0
        %3978 = vmatpush1.msra.mxu0 0.0
        %3979 = vmatprep.subr.mxu0 0.0
        %3980 = vmatpush1.msra.mxu0 0.0
        %3981 = vmatprep.subr.mxu0 0.0
        %3982 = vmatpush1.msra.mxu0 0.0
        %3983 = vmatprep.subr.mxu0 0.0
        %3984 = vmatpush1.msra.mxu0 0.0
        %3985 = vmatprep.subr.mxu0 0.0
        %3986 = vmatpush1.msra.mxu0 0.0
        %3987 = vmatprep.subr.mxu0 0.0
        %3988 = vmatpush1.msra.mxu0 0.0
        %3989 = vmatprep.subr.mxu0 0.0
        %3990 = vmatpush1.msra.mxu0 0.0
        %3991 = vmatprep.subr.mxu0 0.0
        %3992 = vmatpush1.msra.mxu0 0.0
        %3993 = vmatprep.subr.mxu0 0.0
        %3994 = vmatpush1.msra.mxu0 0.0
        %3995 = vmatprep.subr.mxu0 0.0
        %3996 = vmatpush1.msra.mxu0 0.0
        %3997 = vmatprep.subr.mxu0 0.0
        %3998 = vmatpush1.msra.mxu0 0.0
        %3999 = vmatprep.subr.mxu0 0.0
        %4000 = vmatpush1.msra.mxu0 0.0
        %4001 = vmatprep.subr.mxu0 0.0
        %4002 = vmatpush1.msra.mxu0 0.0
        %4003 = vmatprep.subr.mxu0 0.0
        %4004 = vmatpush1.msra.mxu0 0.0
        %4005 = vmatprep.subr.mxu0 0.0
        %4006 = vmatpush1.msra.mxu0 %v540
        %4007 = vmatprep.subr.mxu0 0.0
        %4008 = vmatpush1.msra.mxu0 %v539
        %4009 = vmatprep.subr.mxu0 0.0
        %4010 = vmatpush2.msra.mxu0 0.0
        %4011 = vmatprep.subr.mxu0 0.0
        %4012 = vmatpush2.msra.mxu0 0.0
        %4013 = vmatprep.subr.mxu0 0.0
        %4014 = vmatpush2.msra.mxu0 0.0
        %4015 = vmatprep.subr.mxu0 0.0
        %4016 = vmatpush2.msra.mxu0 0.0
        %4017 = vmatprep.subr.mxu0 0.0
        %4018 = vmatpush2.msra.mxu0 0.0
        %4019 = vmatprep.subr.mxu0 0.0
        %4020 = vmatpush2.msra.mxu0 0.0
        %4021 = vmatprep.subr.mxu0 0.0
        %4022 = vmatpush2.msra.mxu0 0.0
        %4023 = vmatprep.subr.mxu0 0.0
        %4024 = vmatpush2.msra.mxu0 0.0
        %4025 = vmatprep.subr.mxu0 0.0
        %4026 = vmatpush2.msra.mxu0 0.0
        %4027 = vmatprep.subr.mxu0 0.0
        %4028 = vmatpush2.msra.mxu0 0.0
        %4029 = vmatprep.subr.mxu0 0.0
        %4030 = vmatpush2.msra.mxu0 0.0
        %4031 = vmatprep.subr.mxu0 0.0
        %4032 = vmatpush2.msra.mxu0 0.0
        %4033 = vmatprep.subr.mxu0 0.0
        %4034 = vmatpush2.msra.mxu0 0.0
        %4035 = vmatprep.subr.mxu0 0.0
        %4036 = vmatpush2.msra.mxu0 0.0
        %4037 = vmatprep.subr.mxu0 0.0
        %4038 = vmatpush2.msra.mxu0 0.0
        %4039 = vmatprep.subr.mxu0 0.0
        %4040 = vmatpush2.msra.mxu0 0.0
        %4041 = vmatprep.mubr.f32.mxu0 0.0
        %4042 = vmatmul.mubr.f32.gmra.mxu0 %v3975
        %v4043 = vpop.f32.mrf.mxu0
        %v4044 = vadd.f32 %v3970, %v4043
        %v4045 = vpop.f32.mrf.mxu0
        %4046 = vdwg.mxu0
        %4047 = vrot.lane.b32.xlu0 %v537, 80
        %v4048 = vpop.permute.xlu0 %4047
        %v4049 = vsel %vm545, %v4048, 0
        %4051 = vmatprep.subr.mxu0 0.0
        %4052 = vmatpush1.msra.mxu0 0.0
        %4053 = vmatprep.subr.mxu0 0.0
        %4054 = vmatpush1.msra.mxu0 0.0
        %4055 = vmatprep.subr.mxu0 0.0
        %4056 = vmatpush1.msra.mxu0 0.0
        %4057 = vmatprep.subr.mxu0 0.0
        %4058 = vmatpush1.msra.mxu0 0.0
        %4059 = vmatprep.subr.mxu0 0.0
        %4060 = vmatpush1.msra.mxu0 0.0
        %4061 = vmatprep.subr.mxu0 0.0
        %4062 = vmatpush1.msra.mxu0 0.0
        %4063 = vmatprep.subr.mxu0 0.0
        %4064 = vmatpush1.msra.mxu0 0.0
        %4065 = vmatprep.subr.mxu0 0.0
        %4066 = vmatpush1.msra.mxu0 0.0
        %4067 = vmatprep.subr.mxu0 0.0
        %4068 = vmatpush1.msra.mxu0 0.0
        %4069 = vmatprep.subr.mxu0 0.0
        %4070 = vmatpush1.msra.mxu0 0.0
        %4071 = vmatprep.subr.mxu0 0.0
        %4072 = vmatpush1.msra.mxu0 0.0
        %4073 = vmatprep.subr.mxu0 0.0
        %4074 = vmatpush1.msra.mxu0 0.0
        %4075 = vmatprep.subr.mxu0 0.0
        %4076 = vmatpush1.msra.mxu0 0.0
        %4077 = vmatprep.subr.mxu0 0.0
        %4078 = vmatpush1.msra.mxu0 0.0
        %4079 = vmatprep.subr.mxu0 0.0
        %4080 = vmatpush1.msra.mxu0 %v543
        %4081 = vmatprep.subr.mxu0 0.0
        %4082 = vmatpush1.msra.mxu0 %v542
        %4083 = vmatprep.subr.mxu0 0.0
        %4084 = vmatpush2.msra.mxu0 0.0
        %4085 = vmatprep.subr.mxu0 0.0
        %4086 = vmatpush2.msra.mxu0 0.0
        %4087 = vmatprep.subr.mxu0 0.0
        %4088 = vmatpush2.msra.mxu0 0.0
        %4089 = vmatprep.subr.mxu0 0.0
        %4090 = vmatpush2.msra.mxu0 0.0
        %4091 = vmatprep.subr.mxu0 0.0
        %4092 = vmatpush2.msra.mxu0 0.0
        %4093 = vmatprep.subr.mxu0 0.0
        %4094 = vmatpush2.msra.mxu0 0.0
        %4095 = vmatprep.subr.mxu0 0.0
        %4096 = vmatpush2.msra.mxu0 0.0
        %4097 = vmatprep.subr.mxu0 0.0
        %4098 = vmatpush2.msra.mxu0 0.0
        %4099 = vmatprep.subr.mxu0 0.0
        %4100 = vmatpush2.msra.mxu0 0.0
        %4101 = vmatprep.subr.mxu0 0.0
        %4102 = vmatpush2.msra.mxu0 0.0
        %4103 = vmatprep.subr.mxu0 0.0
        %4104 = vmatpush2.msra.mxu0 0.0
        %4105 = vmatprep.subr.mxu0 0.0
        %4106 = vmatpush2.msra.mxu0 0.0
        %4107 = vmatprep.subr.mxu0 0.0
        %4108 = vmatpush2.msra.mxu0 0.0
        %4109 = vmatprep.subr.mxu0 0.0
        %4110 = vmatpush2.msra.mxu0 0.0
        %4111 = vmatprep.subr.mxu0 0.0
        %4112 = vmatpush2.msra.mxu0 0.0
        %4113 = vmatprep.subr.mxu0 0.0
        %4114 = vmatpush2.msra.mxu0 0.0
        %4115 = vmatprep.mubr.f32.mxu0 0.0
        %4116 = vmatmul.mubr.f32.gmra.mxu0 %v4049
        %v4117 = vpop.f32.mrf.mxu0
        %v4118 = vadd.f32 0.0, %v4117
        %v4119 = vpop.f32.mrf.mxu0
        %4120 = vdwg.mxu0
        %4121 = vrot.lane.b32.xlu0 %v461, 80
        %v4122 = vpop.permute.xlu0 %4121
        %v4123 = vsel %vm545, %v4122, 0
        %4125 = vmatprep.subr.mxu0 0.0
        %4126 = vmatpush1.msra.mxu0 0.0
        %4127 = vmatprep.subr.mxu0 0.0
        %4128 = vmatpush1.msra.mxu0 0.0
        %4129 = vmatprep.subr.mxu0 0.0
        %4130 = vmatpush1.msra.mxu0 0.0
        %4131 = vmatprep.subr.mxu0 0.0
        %4132 = vmatpush1.msra.mxu0 0.0
        %4133 = vmatprep.subr.mxu0 0.0
        %4134 = vmatpush1.msra.mxu0 0.0
        %4135 = vmatprep.subr.mxu0 0.0
        %4136 = vmatpush1.msra.mxu0 0.0
        %4137 = vmatprep.subr.mxu0 0.0
        %4138 = vmatpush1.msra.mxu0 0.0
        %4139 = vmatprep.subr.mxu0 0.0
        %4140 = vmatpush1.msra.mxu0 0.0
        %4141 = vmatprep.subr.mxu0 0.0
        %4142 = vmatpush1.msra.mxu0 0.0
        %4143 = vmatprep.subr.mxu0 0.0
        %4144 = vmatpush1.msra.mxu0 0.0
        %4145 = vmatprep.subr.mxu0 0.0
        %4146 = vmatpush1.msra.mxu0 0.0
        %4147 = vmatprep.subr.mxu0 0.0
        %4148 = vmatpush1.msra.mxu0 0.0
        %4149 = vmatprep.subr.mxu0 0.0
        %4150 = vmatpush1.msra.mxu0 0.0
        %4151 = vmatprep.subr.mxu0 0.0
        %4152 = vmatpush1.msra.mxu0 0.0
        %4153 = vmatprep.subr.mxu0 0.0
        %4154 = vmatpush1.msra.mxu0 %v540
        %4155 = vmatprep.subr.mxu0 0.0
        %4156 = vmatpush1.msra.mxu0 %v539
        %4157 = vmatprep.subr.mxu0 0.0
        %4158 = vmatpush2.msra.mxu0 0.0
        %4159 = vmatprep.subr.mxu0 0.0
        %4160 = vmatpush2.msra.mxu0 0.0
        %4161 = vmatprep.subr.mxu0 0.0
        %4162 = vmatpush2.msra.mxu0 0.0
        %4163 = vmatprep.subr.mxu0 0.0
        %4164 = vmatpush2.msra.mxu0 0.0
        %4165 = vmatprep.subr.mxu0 0.0
        %4166 = vmatpush2.msra.mxu0 0.0
        %4167 = vmatprep.subr.mxu0 0.0
        %4168 = vmatpush2.msra.mxu0 0.0
        %4169 = vmatprep.subr.mxu0 0.0
        %4170 = vmatpush2.msra.mxu0 0.0
        %4171 = vmatprep.subr.mxu0 0.0
        %4172 = vmatpush2.msra.mxu0 0.0
        %4173 = vmatprep.subr.mxu0 0.0
        %4174 = vmatpush2.msra.mxu0 0.0
        %4175 = vmatprep.subr.mxu0 0.0
        %4176 = vmatpush2.msra.mxu0 0.0
        %4177 = vmatprep.subr.mxu0 0.0
        %4178 = vmatpush2.msra.mxu0 0.0
        %4179 = vmatprep.subr.mxu0 0.0
        %4180 = vmatpush2.msra.mxu0 0.0
        %4181 = vmatprep.subr.mxu0 0.0
        %4182 = vmatpush2.msra.mxu0 0.0
        %4183 = vmatprep.subr.mxu0 0.0
        %4184 = vmatpush2.msra.mxu0 0.0
        %4185 = vmatprep.subr.mxu0 0.0
        %4186 = vmatpush2.msra.mxu0 0.0
        %4187 = vmatprep.subr.mxu0 0.0
        %4188 = vmatpush2.msra.mxu0 0.0
        %4189 = vmatprep.mubr.f32.mxu0 0.0
        %4190 = vmatmul.mubr.f32.gmra.mxu0 %v4123
        %v4191 = vpop.f32.mrf.mxu0
        %v4192 = vadd.f32 %v4118, %v4191
        %v4193 = vpop.f32.mrf.mxu0
        %4194 = vdwg.mxu0
        %4196 = vrot.lane.b32.xlu0 %v4192, 32
        %v4197 = vpop.permute.xlu0 %4196
        %v4199 = vsel %vm842, %v4044, %v4197
        %v4200 = vadd.f32 %v4199, %v847
        %4202 = vrot.lane.b32.xlu0 %v4200, 64
        %v4203 = vpop.permute.xlu0 %4202
        %4205 = vst.msk [vmem:[%s215 + $0x28] sm:$0xff] %vm1158, %v4203
        %4206 = vrot.lane.b32.xlu0 %v385, 64
        %v4207 = vpop.permute.xlu0 %4206
        %v4208 = vsel %vm545, %v4207, 0
        %4210 = vmatprep.subr.mxu0 0.0
        %4211 = vmatpush1.msra.mxu0 0.0
        %4212 = vmatprep.subr.mxu0 0.0
        %4213 = vmatpush1.msra.mxu0 0.0
        %4214 = vmatprep.subr.mxu0 0.0
        %4215 = vmatpush1.msra.mxu0 0.0
        %4216 = vmatprep.subr.mxu0 0.0
        %4217 = vmatpush1.msra.mxu0 0.0
        %4218 = vmatprep.subr.mxu0 0.0
        %4219 = vmatpush1.msra.mxu0 0.0
        %4220 = vmatprep.subr.mxu0 0.0
        %4221 = vmatpush1.msra.mxu0 0.0
        %4222 = vmatprep.subr.mxu0 0.0
        %4223 = vmatpush1.msra.mxu0 0.0
        %4224 = vmatprep.subr.mxu0 0.0
        %4225 = vmatpush1.msra.mxu0 0.0
        %4226 = vmatprep.subr.mxu0 0.0
        %4227 = vmatpush1.msra.mxu0 0.0
        %4228 = vmatprep.subr.mxu0 0.0
        %4229 = vmatpush1.msra.mxu0 0.0
        %4230 = vmatprep.subr.mxu0 0.0
        %4231 = vmatpush1.msra.mxu0 0.0
        %4232 = vmatprep.subr.mxu0 0.0
        %4233 = vmatpush1.msra.mxu0 0.0
        %4234 = vmatprep.subr.mxu0 0.0
        %4235 = vmatpush1.msra.mxu0 0.0
        %4236 = vmatprep.subr.mxu0 0.0
        %4237 = vmatpush1.msra.mxu0 0.0
        %4238 = vmatprep.subr.mxu0 0.0
        %4239 = vmatpush1.msra.mxu0 %v543
        %4240 = vmatprep.subr.mxu0 0.0
        %4241 = vmatpush1.msra.mxu0 %v542
        %4242 = vmatprep.subr.mxu0 0.0
        %4243 = vmatpush2.msra.mxu0 0.0
        %4244 = vmatprep.subr.mxu0 0.0
        %4245 = vmatpush2.msra.mxu0 0.0
        %4246 = vmatprep.subr.mxu0 0.0
        %4247 = vmatpush2.msra.mxu0 0.0
        %4248 = vmatprep.subr.mxu0 0.0
        %4249 = vmatpush2.msra.mxu0 0.0
        %4250 = vmatprep.subr.mxu0 0.0
        %4251 = vmatpush2.msra.mxu0 0.0
        %4252 = vmatprep.subr.mxu0 0.0
        %4253 = vmatpush2.msra.mxu0 0.0
        %4254 = vmatprep.subr.mxu0 0.0
        %4255 = vmatpush2.msra.mxu0 0.0
        %4256 = vmatprep.subr.mxu0 0.0
        %4257 = vmatpush2.msra.mxu0 0.0
        %4258 = vmatprep.subr.mxu0 0.0
        %4259 = vmatpush2.msra.mxu0 0.0
        %4260 = vmatprep.subr.mxu0 0.0
        %4261 = vmatpush2.msra.mxu0 0.0
        %4262 = vmatprep.subr.mxu0 0.0
        %4263 = vmatpush2.msra.mxu0 0.0
        %4264 = vmatprep.subr.mxu0 0.0
        %4265 = vmatpush2.msra.mxu0 0.0
        %4266 = vmatprep.subr.mxu0 0.0
        %4267 = vmatpush2.msra.mxu0 0.0
        %4268 = vmatprep.subr.mxu0 0.0
        %4269 = vmatpush2.msra.mxu0 0.0
        %4270 = vmatprep.subr.mxu0 0.0
        %4271 = vmatpush2.msra.mxu0 0.0
        %4272 = vmatprep.subr.mxu0 0.0
        %4273 = vmatpush2.msra.mxu0 0.0
        %4274 = vmatprep.mubr.f32.mxu0 0.0
        %4275 = vmatmul.mubr.f32.gmra.mxu0 %v4208
        %v4276 = vpop.f32.mrf.mxu0
        %v4277 = vadd.f32 0.0, %v4276
        %v4278 = vpop.f32.mrf.mxu0
        %4279 = vdwg.mxu0
        %4280 = vrot.lane.b32.xlu0 %v309, 64
        %v4281 = vpop.permute.xlu0 %4280
        %v4282 = vsel %vm545, %v4281, 0
        %4284 = vmatprep.subr.mxu0 0.0
        %4285 = vmatpush1.msra.mxu0 0.0
        %4286 = vmatprep.subr.mxu0 0.0
        %4287 = vmatpush1.msra.mxu0 0.0
        %4288 = vmatprep.subr.mxu0 0.0
        %4289 = vmatpush1.msra.mxu0 0.0
        %4290 = vmatprep.subr.mxu0 0.0
        %4291 = vmatpush1.msra.mxu0 0.0
        %4292 = vmatprep.subr.mxu0 0.0
        %4293 = vmatpush1.msra.mxu0 0.0
        %4294 = vmatprep.subr.mxu0 0.0
        %4295 = vmatpush1.msra.mxu0 0.0
        %4296 = vmatprep.subr.mxu0 0.0
        %4297 = vmatpush1.msra.mxu0 0.0
        %4298 = vmatprep.subr.mxu0 0.0
        %4299 = vmatpush1.msra.mxu0 0.0
        %4300 = vmatprep.subr.mxu0 0.0
        %4301 = vmatpush1.msra.mxu0 0.0
        %4302 = vmatprep.subr.mxu0 0.0
        %4303 = vmatpush1.msra.mxu0 0.0
        %4304 = vmatprep.subr.mxu0 0.0
        %4305 = vmatpush1.msra.mxu0 0.0
        %4306 = vmatprep.subr.mxu0 0.0
        %4307 = vmatpush1.msra.mxu0 0.0
        %4308 = vmatprep.subr.mxu0 0.0
        %4309 = vmatpush1.msra.mxu0 0.0
        %4310 = vmatprep.subr.mxu0 0.0
        %4311 = vmatpush1.msra.mxu0 0.0
        %4312 = vmatprep.subr.mxu0 0.0
        %4313 = vmatpush1.msra.mxu0 %v540
        %4314 = vmatprep.subr.mxu0 0.0
        %4315 = vmatpush1.msra.mxu0 %v539
        %4316 = vmatprep.subr.mxu0 0.0
        %4317 = vmatpush2.msra.mxu0 0.0
        %4318 = vmatprep.subr.mxu0 0.0
        %4319 = vmatpush2.msra.mxu0 0.0
        %4320 = vmatprep.subr.mxu0 0.0
        %4321 = vmatpush2.msra.mxu0 0.0
        %4322 = vmatprep.subr.mxu0 0.0
        %4323 = vmatpush2.msra.mxu0 0.0
        %4324 = vmatprep.subr.mxu0 0.0
        %4325 = vmatpush2.msra.mxu0 0.0
        %4326 = vmatprep.subr.mxu0 0.0
        %4327 = vmatpush2.msra.mxu0 0.0
        %4328 = vmatprep.subr.mxu0 0.0
        %4329 = vmatpush2.msra.mxu0 0.0
        %4330 = vmatprep.subr.mxu0 0.0
        %4331 = vmatpush2.msra.mxu0 0.0
        %4332 = vmatprep.subr.mxu0 0.0
        %4333 = vmatpush2.msra.mxu0 0.0
        %4334 = vmatprep.subr.mxu0 0.0
        %4335 = vmatpush2.msra.mxu0 0.0
        %4336 = vmatprep.subr.mxu0 0.0
        %4337 = vmatpush2.msra.mxu0 0.0
        %4338 = vmatprep.subr.mxu0 0.0
        %4339 = vmatpush2.msra.mxu0 0.0
        %4340 = vmatprep.subr.mxu0 0.0
        %4341 = vmatpush2.msra.mxu0 0.0
        %4342 = vmatprep.subr.mxu0 0.0
        %4343 = vmatpush2.msra.mxu0 0.0
        %4344 = vmatprep.subr.mxu0 0.0
        %4345 = vmatpush2.msra.mxu0 0.0
        %4346 = vmatprep.subr.mxu0 0.0
        %4347 = vmatpush2.msra.mxu0 0.0
        %4348 = vmatprep.mubr.f32.mxu0 0.0
        %4349 = vmatmul.mubr.f32.gmra.mxu0 %v4282
        %v4350 = vpop.f32.mrf.mxu0
        %v4351 = vadd.f32 %v4277, %v4350
        %v4352 = vpop.f32.mrf.mxu0
        %4353 = vdwg.mxu0
        %4354 = vrot.lane.b32.xlu0 %v537, 64
        %v4355 = vpop.permute.xlu0 %4354
        %v4356 = vsel %vm545, %v4355, 0
        %4358 = vmatprep.subr.mxu0 0.0
        %4359 = vmatpush1.msra.mxu0 0.0
        %4360 = vmatprep.subr.mxu0 0.0
        %4361 = vmatpush1.msra.mxu0 0.0
        %4362 = vmatprep.subr.mxu0 0.0
        %4363 = vmatpush1.msra.mxu0 0.0
        %4364 = vmatprep.subr.mxu0 0.0
        %4365 = vmatpush1.msra.mxu0 0.0
        %4366 = vmatprep.subr.mxu0 0.0
        %4367 = vmatpush1.msra.mxu0 0.0
        %4368 = vmatprep.subr.mxu0 0.0
        %4369 = vmatpush1.msra.mxu0 0.0
        %4370 = vmatprep.subr.mxu0 0.0
        %4371 = vmatpush1.msra.mxu0 0.0
        %4372 = vmatprep.subr.mxu0 0.0
        %4373 = vmatpush1.msra.mxu0 0.0
        %4374 = vmatprep.subr.mxu0 0.0
        %4375 = vmatpush1.msra.mxu0 0.0
        %4376 = vmatprep.subr.mxu0 0.0
        %4377 = vmatpush1.msra.mxu0 0.0
        %4378 = vmatprep.subr.mxu0 0.0
        %4379 = vmatpush1.msra.mxu0 0.0
        %4380 = vmatprep.subr.mxu0 0.0
        %4381 = vmatpush1.msra.mxu0 0.0
        %4382 = vmatprep.subr.mxu0 0.0
        %4383 = vmatpush1.msra.mxu0 0.0
        %4384 = vmatprep.subr.mxu0 0.0
        %4385 = vmatpush1.msra.mxu0 0.0
        %4386 = vmatprep.subr.mxu0 0.0
        %4387 = vmatpush1.msra.mxu0 %v543
        %4388 = vmatprep.subr.mxu0 0.0
        %4389 = vmatpush1.msra.mxu0 %v542
        %4390 = vmatprep.subr.mxu0 0.0
        %4391 = vmatpush2.msra.mxu0 0.0
        %4392 = vmatprep.subr.mxu0 0.0
        %4393 = vmatpush2.msra.mxu0 0.0
        %4394 = vmatprep.subr.mxu0 0.0
        %4395 = vmatpush2.msra.mxu0 0.0
        %4396 = vmatprep.subr.mxu0 0.0
        %4397 = vmatpush2.msra.mxu0 0.0
        %4398 = vmatprep.subr.mxu0 0.0
        %4399 = vmatpush2.msra.mxu0 0.0
        %4400 = vmatprep.subr.mxu0 0.0
        %4401 = vmatpush2.msra.mxu0 0.0
        %4402 = vmatprep.subr.mxu0 0.0
        %4403 = vmatpush2.msra.mxu0 0.0
        %4404 = vmatprep.subr.mxu0 0.0
        %4405 = vmatpush2.msra.mxu0 0.0
        %4406 = vmatprep.subr.mxu0 0.0
        %4407 = vmatpush2.msra.mxu0 0.0
        %4408 = vmatprep.subr.mxu0 0.0
        %4409 = vmatpush2.msra.mxu0 0.0
        %4410 = vmatprep.subr.mxu0 0.0
        %4411 = vmatpush2.msra.mxu0 0.0
        %4412 = vmatprep.subr.mxu0 0.0
        %4413 = vmatpush2.msra.mxu0 0.0
        %4414 = vmatprep.subr.mxu0 0.0
        %4415 = vmatpush2.msra.mxu0 0.0
        %4416 = vmatprep.subr.mxu0 0.0
        %4417 = vmatpush2.msra.mxu0 0.0
        %4418 = vmatprep.subr.mxu0 0.0
        %4419 = vmatpush2.msra.mxu0 0.0
        %4420 = vmatprep.subr.mxu0 0.0
        %4421 = vmatpush2.msra.mxu0 0.0
        %4422 = vmatprep.mubr.f32.mxu0 0.0
        %4423 = vmatmul.mubr.f32.gmra.mxu0 %v4356
        %v4424 = vpop.f32.mrf.mxu0
        %v4425 = vadd.f32 0.0, %v4424
        %v4426 = vpop.f32.mrf.mxu0
        %4427 = vdwg.mxu0
        %4428 = vrot.lane.b32.xlu0 %v461, 64
        %v4429 = vpop.permute.xlu0 %4428
        %v4430 = vsel %vm545, %v4429, 0
        %4432 = vmatprep.subr.mxu0 0.0
        %4433 = vmatpush1.msra.mxu0 0.0
        %4434 = vmatprep.subr.mxu0 0.0
        %4435 = vmatpush1.msra.mxu0 0.0
        %4436 = vmatprep.subr.mxu0 0.0
        %4437 = vmatpush1.msra.mxu0 0.0
        %4438 = vmatprep.subr.mxu0 0.0
        %4439 = vmatpush1.msra.mxu0 0.0
        %4440 = vmatprep.subr.mxu0 0.0
        %4441 = vmatpush1.msra.mxu0 0.0
        %4442 = vmatprep.subr.mxu0 0.0
        %4443 = vmatpush1.msra.mxu0 0.0
        %4444 = vmatprep.subr.mxu0 0.0
        %4445 = vmatpush1.msra.mxu0 0.0
        %4446 = vmatprep.subr.mxu0 0.0
        %4447 = vmatpush1.msra.mxu0 0.0
        %4448 = vmatprep.subr.mxu0 0.0
        %4449 = vmatpush1.msra.mxu0 0.0
        %4450 = vmatprep.subr.mxu0 0.0
        %4451 = vmatpush1.msra.mxu0 0.0
        %4452 = vmatprep.subr.mxu0 0.0
        %4453 = vmatpush1.msra.mxu0 0.0
        %4454 = vmatprep.subr.mxu0 0.0
        %4455 = vmatpush1.msra.mxu0 0.0
        %4456 = vmatprep.subr.mxu0 0.0
        %4457 = vmatpush1.msra.mxu0 0.0
        %4458 = vmatprep.subr.mxu0 0.0
        %4459 = vmatpush1.msra.mxu0 0.0
        %4460 = vmatprep.subr.mxu0 0.0
        %4461 = vmatpush1.msra.mxu0 %v540
        %4462 = vmatprep.subr.mxu0 0.0
        %4463 = vmatpush1.msra.mxu0 %v539
        %4464 = vmatprep.subr.mxu0 0.0
        %4465 = vmatpush2.msra.mxu0 0.0
        %4466 = vmatprep.subr.mxu0 0.0
        %4467 = vmatpush2.msra.mxu0 0.0
        %4468 = vmatprep.subr.mxu0 0.0
        %4469 = vmatpush2.msra.mxu0 0.0
        %4470 = vmatprep.subr.mxu0 0.0
        %4471 = vmatpush2.msra.mxu0 0.0
        %4472 = vmatprep.subr.mxu0 0.0
        %4473 = vmatpush2.msra.mxu0 0.0
        %4474 = vmatprep.subr.mxu0 0.0
        %4475 = vmatpush2.msra.mxu0 0.0
        %4476 = vmatprep.subr.mxu0 0.0
        %4477 = vmatpush2.msra.mxu0 0.0
        %4478 = vmatprep.subr.mxu0 0.0
        %4479 = vmatpush2.msra.mxu0 0.0
        %4480 = vmatprep.subr.mxu0 0.0
        %4481 = vmatpush2.msra.mxu0 0.0
        %4482 = vmatprep.subr.mxu0 0.0
        %4483 = vmatpush2.msra.mxu0 0.0
        %4484 = vmatprep.subr.mxu0 0.0
        %4485 = vmatpush2.msra.mxu0 0.0
        %4486 = vmatprep.subr.mxu0 0.0
        %4487 = vmatpush2.msra.mxu0 0.0
        %4488 = vmatprep.subr.mxu0 0.0
        %4489 = vmatpush2.msra.mxu0 0.0
        %4490 = vmatprep.subr.mxu0 0.0
        %4491 = vmatpush2.msra.mxu0 0.0
        %4492 = vmatprep.subr.mxu0 0.0
        %4493 = vmatpush2.msra.mxu0 0.0
        %4494 = vmatprep.subr.mxu0 0.0
        %4495 = vmatpush2.msra.mxu0 0.0
        %4496 = vmatprep.mubr.f32.mxu0 0.0
        %4497 = vmatmul.mubr.f32.gmra.mxu0 %v4430
        %v4498 = vpop.f32.mrf.mxu0
        %v4499 = vadd.f32 %v4425, %v4498
        %v4500 = vpop.f32.mrf.mxu0
        %4501 = vdwg.mxu0
        %4503 = vrot.lane.b32.xlu0 %v4499, 32
        %v4504 = vpop.permute.xlu0 %4503
        %v4506 = vsel %vm842, %v4351, %v4504
        %v4507 = vadd.f32 %v4506, %v847
        %4508 = vst.msk [vmem:[%s215 + $0x30] sm:$0xff] %vm850, %v4507
        %4509 = vrot.lane.b32.xlu0 %v385, 48
        %v4510 = vpop.permute.xlu0 %4509
        %v4511 = vsel %vm545, %v4510, 0
        %4513 = vmatprep.subr.mxu0 0.0
        %4514 = vmatpush1.msra.mxu0 0.0
        %4515 = vmatprep.subr.mxu0 0.0
        %4516 = vmatpush1.msra.mxu0 0.0
        %4517 = vmatprep.subr.mxu0 0.0
        %4518 = vmatpush1.msra.mxu0 0.0
        %4519 = vmatprep.subr.mxu0 0.0
        %4520 = vmatpush1.msra.mxu0 0.0
        %4521 = vmatprep.subr.mxu0 0.0
        %4522 = vmatpush1.msra.mxu0 0.0
        %4523 = vmatprep.subr.mxu0 0.0
        %4524 = vmatpush1.msra.mxu0 0.0
        %4525 = vmatprep.subr.mxu0 0.0
        %4526 = vmatpush1.msra.mxu0 0.0
        %4527 = vmatprep.subr.mxu0 0.0
        %4528 = vmatpush1.msra.mxu0 0.0
        %4529 = vmatprep.subr.mxu0 0.0
        %4530 = vmatpush1.msra.mxu0 0.0
        %4531 = vmatprep.subr.mxu0 0.0
        %4532 = vmatpush1.msra.mxu0 0.0
        %4533 = vmatprep.subr.mxu0 0.0
        %4534 = vmatpush1.msra.mxu0 0.0
        %4535 = vmatprep.subr.mxu0 0.0
        %4536 = vmatpush1.msra.mxu0 0.0
        %4537 = vmatprep.subr.mxu0 0.0
        %4538 = vmatpush1.msra.mxu0 0.0
        %4539 = vmatprep.subr.mxu0 0.0
        %4540 = vmatpush1.msra.mxu0 0.0
        %4541 = vmatprep.subr.mxu0 0.0
        %4542 = vmatpush1.msra.mxu0 %v543
        %4543 = vmatprep.subr.mxu0 0.0
        %4544 = vmatpush1.msra.mxu0 %v542
        %4545 = vmatprep.subr.mxu0 0.0
        %4546 = vmatpush2.msra.mxu0 0.0
        %4547 = vmatprep.subr.mxu0 0.0
        %4548 = vmatpush2.msra.mxu0 0.0
        %4549 = vmatprep.subr.mxu0 0.0
        %4550 = vmatpush2.msra.mxu0 0.0
        %4551 = vmatprep.subr.mxu0 0.0
        %4552 = vmatpush2.msra.mxu0 0.0
        %4553 = vmatprep.subr.mxu0 0.0
        %4554 = vmatpush2.msra.mxu0 0.0
        %4555 = vmatprep.subr.mxu0 0.0
        %4556 = vmatpush2.msra.mxu0 0.0
        %4557 = vmatprep.subr.mxu0 0.0
        %4558 = vmatpush2.msra.mxu0 0.0
        %4559 = vmatprep.subr.mxu0 0.0
        %4560 = vmatpush2.msra.mxu0 0.0
        %4561 = vmatprep.subr.mxu0 0.0
        %4562 = vmatpush2.msra.mxu0 0.0
        %4563 = vmatprep.subr.mxu0 0.0
        %4564 = vmatpush2.msra.mxu0 0.0
        %4565 = vmatprep.subr.mxu0 0.0
        %4566 = vmatpush2.msra.mxu0 0.0
        %4567 = vmatprep.subr.mxu0 0.0
        %4568 = vmatpush2.msra.mxu0 0.0
        %4569 = vmatprep.subr.mxu0 0.0
        %4570 = vmatpush2.msra.mxu0 0.0
        %4571 = vmatprep.subr.mxu0 0.0
        %4572 = vmatpush2.msra.mxu0 0.0
        %4573 = vmatprep.subr.mxu0 0.0
        %4574 = vmatpush2.msra.mxu0 0.0
        %4575 = vmatprep.subr.mxu0 0.0
        %4576 = vmatpush2.msra.mxu0 0.0
        %4577 = vmatprep.mubr.f32.mxu0 0.0
        %4578 = vmatmul.mubr.f32.gmra.mxu0 %v4511
        %v4579 = vpop.f32.mrf.mxu0
        %v4580 = vadd.f32 0.0, %v4579
        %v4581 = vpop.f32.mrf.mxu0
        %4582 = vdwg.mxu0
        %4583 = vrot.lane.b32.xlu0 %v309, 48
        %v4584 = vpop.permute.xlu0 %4583
        %v4585 = vsel %vm545, %v4584, 0
        %4587 = vmatprep.subr.mxu0 0.0
        %4588 = vmatpush1.msra.mxu0 0.0
        %4589 = vmatprep.subr.mxu0 0.0
        %4590 = vmatpush1.msra.mxu0 0.0
        %4591 = vmatprep.subr.mxu0 0.0
        %4592 = vmatpush1.msra.mxu0 0.0
        %4593 = vmatprep.subr.mxu0 0.0
        %4594 = vmatpush1.msra.mxu0 0.0
        %4595 = vmatprep.subr.mxu0 0.0
        %4596 = vmatpush1.msra.mxu0 0.0
        %4597 = vmatprep.subr.mxu0 0.0
        %4598 = vmatpush1.msra.mxu0 0.0
        %4599 = vmatprep.subr.mxu0 0.0
        %4600 = vmatpush1.msra.mxu0 0.0
        %4601 = vmatprep.subr.mxu0 0.0
        %4602 = vmatpush1.msra.mxu0 0.0
        %4603 = vmatprep.subr.mxu0 0.0
        %4604 = vmatpush1.msra.mxu0 0.0
        %4605 = vmatprep.subr.mxu0 0.0
        %4606 = vmatpush1.msra.mxu0 0.0
        %4607 = vmatprep.subr.mxu0 0.0
        %4608 = vmatpush1.msra.mxu0 0.0
        %4609 = vmatprep.subr.mxu0 0.0
        %4610 = vmatpush1.msra.mxu0 0.0
        %4611 = vmatprep.subr.mxu0 0.0
        %4612 = vmatpush1.msra.mxu0 0.0
        %4613 = vmatprep.subr.mxu0 0.0
        %4614 = vmatpush1.msra.mxu0 0.0
        %4615 = vmatprep.subr.mxu0 0.0
        %4616 = vmatpush1.msra.mxu0 %v540
        %4617 = vmatprep.subr.mxu0 0.0
        %4618 = vmatpush1.msra.mxu0 %v539
        %4619 = vmatprep.subr.mxu0 0.0
        %4620 = vmatpush2.msra.mxu0 0.0
        %4621 = vmatprep.subr.mxu0 0.0
        %4622 = vmatpush2.msra.mxu0 0.0
        %4623 = vmatprep.subr.mxu0 0.0
        %4624 = vmatpush2.msra.mxu0 0.0
        %4625 = vmatprep.subr.mxu0 0.0
        %4626 = vmatpush2.msra.mxu0 0.0
        %4627 = vmatprep.subr.mxu0 0.0
        %4628 = vmatpush2.msra.mxu0 0.0
        %4629 = vmatprep.subr.mxu0 0.0
        %4630 = vmatpush2.msra.mxu0 0.0
        %4631 = vmatprep.subr.mxu0 0.0
        %4632 = vmatpush2.msra.mxu0 0.0
        %4633 = vmatprep.subr.mxu0 0.0
        %4634 = vmatpush2.msra.mxu0 0.0
        %4635 = vmatprep.subr.mxu0 0.0
        %4636 = vmatpush2.msra.mxu0 0.0
        %4637 = vmatprep.subr.mxu0 0.0
        %4638 = vmatpush2.msra.mxu0 0.0
        %4639 = vmatprep.subr.mxu0 0.0
        %4640 = vmatpush2.msra.mxu0 0.0
        %4641 = vmatprep.subr.mxu0 0.0
        %4642 = vmatpush2.msra.mxu0 0.0
        %4643 = vmatprep.subr.mxu0 0.0
        %4644 = vmatpush2.msra.mxu0 0.0
        %4645 = vmatprep.subr.mxu0 0.0
        %4646 = vmatpush2.msra.mxu0 0.0
        %4647 = vmatprep.subr.mxu0 0.0
        %4648 = vmatpush2.msra.mxu0 0.0
        %4649 = vmatprep.subr.mxu0 0.0
        %4650 = vmatpush2.msra.mxu0 0.0
        %4651 = vmatprep.mubr.f32.mxu0 0.0
        %4652 = vmatmul.mubr.f32.gmra.mxu0 %v4585
        %v4653 = vpop.f32.mrf.mxu0
        %v4654 = vadd.f32 %v4580, %v4653
        %v4655 = vpop.f32.mrf.mxu0
        %4656 = vdwg.mxu0
        %4657 = vrot.lane.b32.xlu0 %v537, 48
        %v4658 = vpop.permute.xlu0 %4657
        %v4659 = vsel %vm545, %v4658, 0
        %4661 = vmatprep.subr.mxu0 0.0
        %4662 = vmatpush1.msra.mxu0 0.0
        %4663 = vmatprep.subr.mxu0 0.0
        %4664 = vmatpush1.msra.mxu0 0.0
        %4665 = vmatprep.subr.mxu0 0.0
        %4666 = vmatpush1.msra.mxu0 0.0
        %4667 = vmatprep.subr.mxu0 0.0
        %4668 = vmatpush1.msra.mxu0 0.0
        %4669 = vmatprep.subr.mxu0 0.0
        %4670 = vmatpush1.msra.mxu0 0.0
        %4671 = vmatprep.subr.mxu0 0.0
        %4672 = vmatpush1.msra.mxu0 0.0
        %4673 = vmatprep.subr.mxu0 0.0
        %4674 = vmatpush1.msra.mxu0 0.0
        %4675 = vmatprep.subr.mxu0 0.0
        %4676 = vmatpush1.msra.mxu0 0.0
        %4677 = vmatprep.subr.mxu0 0.0
        %4678 = vmatpush1.msra.mxu0 0.0
        %4679 = vmatprep.subr.mxu0 0.0
        %4680 = vmatpush1.msra.mxu0 0.0
        %4681 = vmatprep.subr.mxu0 0.0
        %4682 = vmatpush1.msra.mxu0 0.0
        %4683 = vmatprep.subr.mxu0 0.0
        %4684 = vmatpush1.msra.mxu0 0.0
        %4685 = vmatprep.subr.mxu0 0.0
        %4686 = vmatpush1.msra.mxu0 0.0
        %4687 = vmatprep.subr.mxu0 0.0
        %4688 = vmatpush1.msra.mxu0 0.0
        %4689 = vmatprep.subr.mxu0 0.0
        %4690 = vmatpush1.msra.mxu0 %v543
        %4691 = vmatprep.subr.mxu0 0.0
        %4692 = vmatpush1.msra.mxu0 %v542
        %4693 = vmatprep.subr.mxu0 0.0
        %4694 = vmatpush2.msra.mxu0 0.0
        %4695 = vmatprep.subr.mxu0 0.0
        %4696 = vmatpush2.msra.mxu0 0.0
        %4697 = vmatprep.subr.mxu0 0.0
        %4698 = vmatpush2.msra.mxu0 0.0
        %4699 = vmatprep.subr.mxu0 0.0
        %4700 = vmatpush2.msra.mxu0 0.0
        %4701 = vmatprep.subr.mxu0 0.0
        %4702 = vmatpush2.msra.mxu0 0.0
        %4703 = vmatprep.subr.mxu0 0.0
        %4704 = vmatpush2.msra.mxu0 0.0
        %4705 = vmatprep.subr.mxu0 0.0
        %4706 = vmatpush2.msra.mxu0 0.0
        %4707 = vmatprep.subr.mxu0 0.0
        %4708 = vmatpush2.msra.mxu0 0.0
        %4709 = vmatprep.subr.mxu0 0.0
        %4710 = vmatpush2.msra.mxu0 0.0
        %4711 = vmatprep.subr.mxu0 0.0
        %4712 = vmatpush2.msra.mxu0 0.0
        %4713 = vmatprep.subr.mxu0 0.0
        %4714 = vmatpush2.msra.mxu0 0.0
        %4715 = vmatprep.subr.mxu0 0.0
        %4716 = vmatpush2.msra.mxu0 0.0
        %4717 = vmatprep.subr.mxu0 0.0
        %4718 = vmatpush2.msra.mxu0 0.0
        %4719 = vmatprep.subr.mxu0 0.0
        %4720 = vmatpush2.msra.mxu0 0.0
        %4721 = vmatprep.subr.mxu0 0.0
        %4722 = vmatpush2.msra.mxu0 0.0
        %4723 = vmatprep.subr.mxu0 0.0
        %4724 = vmatpush2.msra.mxu0 0.0
        %4725 = vmatprep.mubr.f32.mxu0 0.0
        %4726 = vmatmul.mubr.f32.gmra.mxu0 %v4659
        %v4727 = vpop.f32.mrf.mxu0
        %v4728 = vadd.f32 0.0, %v4727
        %v4729 = vpop.f32.mrf.mxu0
        %4730 = vdwg.mxu0
        %4731 = vrot.lane.b32.xlu0 %v461, 48
        %v4732 = vpop.permute.xlu0 %4731
        %v4733 = vsel %vm545, %v4732, 0
        %4735 = vmatprep.subr.mxu0 0.0
        %4736 = vmatpush1.msra.mxu0 0.0
        %4737 = vmatprep.subr.mxu0 0.0
        %4738 = vmatpush1.msra.mxu0 0.0
        %4739 = vmatprep.subr.mxu0 0.0
        %4740 = vmatpush1.msra.mxu0 0.0
        %4741 = vmatprep.subr.mxu0 0.0
        %4742 = vmatpush1.msra.mxu0 0.0
        %4743 = vmatprep.subr.mxu0 0.0
        %4744 = vmatpush1.msra.mxu0 0.0
        %4745 = vmatprep.subr.mxu0 0.0
        %4746 = vmatpush1.msra.mxu0 0.0
        %4747 = vmatprep.subr.mxu0 0.0
        %4748 = vmatpush1.msra.mxu0 0.0
        %4749 = vmatprep.subr.mxu0 0.0
        %4750 = vmatpush1.msra.mxu0 0.0
        %4751 = vmatprep.subr.mxu0 0.0
        %4752 = vmatpush1.msra.mxu0 0.0
        %4753 = vmatprep.subr.mxu0 0.0
        %4754 = vmatpush1.msra.mxu0 0.0
        %4755 = vmatprep.subr.mxu0 0.0
        %4756 = vmatpush1.msra.mxu0 0.0
        %4757 = vmatprep.subr.mxu0 0.0
        %4758 = vmatpush1.msra.mxu0 0.0
        %4759 = vmatprep.subr.mxu0 0.0
        %4760 = vmatpush1.msra.mxu0 0.0
        %4761 = vmatprep.subr.mxu0 0.0
        %4762 = vmatpush1.msra.mxu0 0.0
        %4763 = vmatprep.subr.mxu0 0.0
        %4764 = vmatpush1.msra.mxu0 %v540
        %4765 = vmatprep.subr.mxu0 0.0
        %4766 = vmatpush1.msra.mxu0 %v539
        %4767 = vmatprep.subr.mxu0 0.0
        %4768 = vmatpush2.msra.mxu0 0.0
        %4769 = vmatprep.subr.mxu0 0.0
        %4770 = vmatpush2.msra.mxu0 0.0
        %4771 = vmatprep.subr.mxu0 0.0
        %4772 = vmatpush2.msra.mxu0 0.0
        %4773 = vmatprep.subr.mxu0 0.0
        %4774 = vmatpush2.msra.mxu0 0.0
        %4775 = vmatprep.subr.mxu0 0.0
        %4776 = vmatpush2.msra.mxu0 0.0
        %4777 = vmatprep.subr.mxu0 0.0
        %4778 = vmatpush2.msra.mxu0 0.0
        %4779 = vmatprep.subr.mxu0 0.0
        %4780 = vmatpush2.msra.mxu0 0.0
        %4781 = vmatprep.subr.mxu0 0.0
        %4782 = vmatpush2.msra.mxu0 0.0
        %4783 = vmatprep.subr.mxu0 0.0
        %4784 = vmatpush2.msra.mxu0 0.0
        %4785 = vmatprep.subr.mxu0 0.0
        %4786 = vmatpush2.msra.mxu0 0.0
        %4787 = vmatprep.subr.mxu0 0.0
        %4788 = vmatpush2.msra.mxu0 0.0
        %4789 = vmatprep.subr.mxu0 0.0
        %4790 = vmatpush2.msra.mxu0 0.0
        %4791 = vmatprep.subr.mxu0 0.0
        %4792 = vmatpush2.msra.mxu0 0.0
        %4793 = vmatprep.subr.mxu0 0.0
        %4794 = vmatpush2.msra.mxu0 0.0
        %4795 = vmatprep.subr.mxu0 0.0
        %4796 = vmatpush2.msra.mxu0 0.0
        %4797 = vmatprep.subr.mxu0 0.0
        %4798 = vmatpush2.msra.mxu0 0.0
        %4799 = vmatprep.mubr.f32.mxu0 0.0
        %4800 = vmatmul.mubr.f32.gmra.mxu0 %v4733
        %v4801 = vpop.f32.mrf.mxu0
        %v4802 = vadd.f32 %v4728, %v4801
        %v4803 = vpop.f32.mrf.mxu0
        %4804 = vdwg.mxu0
        %4806 = vrot.lane.b32.xlu0 %v4802, 32
        %v4807 = vpop.permute.xlu0 %4806
        %v4809 = vsel %vm842, %v4654, %v4807
        %v4810 = vadd.f32 %v4809, %v847
        %4812 = vrot.lane.b32.xlu0 %v4810, 64
        %v4813 = vpop.permute.xlu0 %4812
        %4815 = vst.msk [vmem:[%s215 + $0x30] sm:$0xff] %vm1158, %v4813
        %4816 = vrot.lane.b32.xlu0 %v385, 32
        %v4817 = vpop.permute.xlu0 %4816
        %v4818 = vsel %vm545, %v4817, 0
        %4820 = vmatprep.subr.mxu0 0.0
        %4821 = vmatpush1.msra.mxu0 0.0
        %4822 = vmatprep.subr.mxu0 0.0
        %4823 = vmatpush1.msra.mxu0 0.0
        %4824 = vmatprep.subr.mxu0 0.0
        %4825 = vmatpush1.msra.mxu0 0.0
        %4826 = vmatprep.subr.mxu0 0.0
        %4827 = vmatpush1.msra.mxu0 0.0
        %4828 = vmatprep.subr.mxu0 0.0
        %4829 = vmatpush1.msra.mxu0 0.0
        %4830 = vmatprep.subr.mxu0 0.0
        %4831 = vmatpush1.msra.mxu0 0.0
        %4832 = vmatprep.subr.mxu0 0.0
        %4833 = vmatpush1.msra.mxu0 0.0
        %4834 = vmatprep.subr.mxu0 0.0
        %4835 = vmatpush1.msra.mxu0 0.0
        %4836 = vmatprep.subr.mxu0 0.0
        %4837 = vmatpush1.msra.mxu0 0.0
        %4838 = vmatprep.subr.mxu0 0.0
        %4839 = vmatpush1.msra.mxu0 0.0
        %4840 = vmatprep.subr.mxu0 0.0
        %4841 = vmatpush1.msra.mxu0 0.0
        %4842 = vmatprep.subr.mxu0 0.0
        %4843 = vmatpush1.msra.mxu0 0.0
        %4844 = vmatprep.subr.mxu0 0.0
        %4845 = vmatpush1.msra.mxu0 0.0
        %4846 = vmatprep.subr.mxu0 0.0
        %4847 = vmatpush1.msra.mxu0 0.0
        %4848 = vmatprep.subr.mxu0 0.0
        %4849 = vmatpush1.msra.mxu0 %v543
        %4850 = vmatprep.subr.mxu0 0.0
        %4851 = vmatpush1.msra.mxu0 %v542
        %4852 = vmatprep.subr.mxu0 0.0
        %4853 = vmatpush2.msra.mxu0 0.0
        %4854 = vmatprep.subr.mxu0 0.0
        %4855 = vmatpush2.msra.mxu0 0.0
        %4856 = vmatprep.subr.mxu0 0.0
        %4857 = vmatpush2.msra.mxu0 0.0
        %4858 = vmatprep.subr.mxu0 0.0
        %4859 = vmatpush2.msra.mxu0 0.0
        %4860 = vmatprep.subr.mxu0 0.0
        %4861 = vmatpush2.msra.mxu0 0.0
        %4862 = vmatprep.subr.mxu0 0.0
        %4863 = vmatpush2.msra.mxu0 0.0
        %4864 = vmatprep.subr.mxu0 0.0
        %4865 = vmatpush2.msra.mxu0 0.0
        %4866 = vmatprep.subr.mxu0 0.0
        %4867 = vmatpush2.msra.mxu0 0.0
        %4868 = vmatprep.subr.mxu0 0.0
        %4869 = vmatpush2.msra.mxu0 0.0
        %4870 = vmatprep.subr.mxu0 0.0
        %4871 = vmatpush2.msra.mxu0 0.0
        %4872 = vmatprep.subr.mxu0 0.0
        %4873 = vmatpush2.msra.mxu0 0.0
        %4874 = vmatprep.subr.mxu0 0.0
        %4875 = vmatpush2.msra.mxu0 0.0
        %4876 = vmatprep.subr.mxu0 0.0
        %4877 = vmatpush2.msra.mxu0 0.0
        %4878 = vmatprep.subr.mxu0 0.0
        %4879 = vmatpush2.msra.mxu0 0.0
        %4880 = vmatprep.subr.mxu0 0.0
        %4881 = vmatpush2.msra.mxu0 0.0
        %4882 = vmatprep.subr.mxu0 0.0
        %4883 = vmatpush2.msra.mxu0 0.0
        %4884 = vmatprep.mubr.f32.mxu0 0.0
        %4885 = vmatmul.mubr.f32.gmra.mxu0 %v4818
        %v4886 = vpop.f32.mrf.mxu0
        %v4887 = vadd.f32 0.0, %v4886
        %v4888 = vpop.f32.mrf.mxu0
        %4889 = vdwg.mxu0
        %4890 = vrot.lane.b32.xlu0 %v309, 32
        %v4891 = vpop.permute.xlu0 %4890
        %v4892 = vsel %vm545, %v4891, 0
        %4894 = vmatprep.subr.mxu0 0.0
        %4895 = vmatpush1.msra.mxu0 0.0
        %4896 = vmatprep.subr.mxu0 0.0
        %4897 = vmatpush1.msra.mxu0 0.0
        %4898 = vmatprep.subr.mxu0 0.0
        %4899 = vmatpush1.msra.mxu0 0.0
        %4900 = vmatprep.subr.mxu0 0.0
        %4901 = vmatpush1.msra.mxu0 0.0
        %4902 = vmatprep.subr.mxu0 0.0
        %4903 = vmatpush1.msra.mxu0 0.0
        %4904 = vmatprep.subr.mxu0 0.0
        %4905 = vmatpush1.msra.mxu0 0.0
        %4906 = vmatprep.subr.mxu0 0.0
        %4907 = vmatpush1.msra.mxu0 0.0
        %4908 = vmatprep.subr.mxu0 0.0
        %4909 = vmatpush1.msra.mxu0 0.0
        %4910 = vmatprep.subr.mxu0 0.0
        %4911 = vmatpush1.msra.mxu0 0.0
        %4912 = vmatprep.subr.mxu0 0.0
        %4913 = vmatpush1.msra.mxu0 0.0
        %4914 = vmatprep.subr.mxu0 0.0
        %4915 = vmatpush1.msra.mxu0 0.0
        %4916 = vmatprep.subr.mxu0 0.0
        %4917 = vmatpush1.msra.mxu0 0.0
        %4918 = vmatprep.subr.mxu0 0.0
        %4919 = vmatpush1.msra.mxu0 0.0
        %4920 = vmatprep.subr.mxu0 0.0
        %4921 = vmatpush1.msra.mxu0 0.0
        %4922 = vmatprep.subr.mxu0 0.0
        %4923 = vmatpush1.msra.mxu0 %v540
        %4924 = vmatprep.subr.mxu0 0.0
        %4925 = vmatpush1.msra.mxu0 %v539
        %4926 = vmatprep.subr.mxu0 0.0
        %4927 = vmatpush2.msra.mxu0 0.0
        %4928 = vmatprep.subr.mxu0 0.0
        %4929 = vmatpush2.msra.mxu0 0.0
        %4930 = vmatprep.subr.mxu0 0.0
        %4931 = vmatpush2.msra.mxu0 0.0
        %4932 = vmatprep.subr.mxu0 0.0
        %4933 = vmatpush2.msra.mxu0 0.0
        %4934 = vmatprep.subr.mxu0 0.0
        %4935 = vmatpush2.msra.mxu0 0.0
        %4936 = vmatprep.subr.mxu0 0.0
        %4937 = vmatpush2.msra.mxu0 0.0
        %4938 = vmatprep.subr.mxu0 0.0
        %4939 = vmatpush2.msra.mxu0 0.0
        %4940 = vmatprep.subr.mxu0 0.0
        %4941 = vmatpush2.msra.mxu0 0.0
        %4942 = vmatprep.subr.mxu0 0.0
        %4943 = vmatpush2.msra.mxu0 0.0
        %4944 = vmatprep.subr.mxu0 0.0
        %4945 = vmatpush2.msra.mxu0 0.0
        %4946 = vmatprep.subr.mxu0 0.0
        %4947 = vmatpush2.msra.mxu0 0.0
        %4948 = vmatprep.subr.mxu0 0.0
        %4949 = vmatpush2.msra.mxu0 0.0
        %4950 = vmatprep.subr.mxu0 0.0
        %4951 = vmatpush2.msra.mxu0 0.0
        %4952 = vmatprep.subr.mxu0 0.0
        %4953 = vmatpush2.msra.mxu0 0.0
        %4954 = vmatprep.subr.mxu0 0.0
        %4955 = vmatpush2.msra.mxu0 0.0
        %4956 = vmatprep.subr.mxu0 0.0
        %4957 = vmatpush2.msra.mxu0 0.0
        %4958 = vmatprep.mubr.f32.mxu0 0.0
        %4959 = vmatmul.mubr.f32.gmra.mxu0 %v4892
        %v4960 = vpop.f32.mrf.mxu0
        %v4961 = vadd.f32 %v4887, %v4960
        %v4962 = vpop.f32.mrf.mxu0
        %4963 = vdwg.mxu0
        %4964 = vrot.lane.b32.xlu0 %v537, 32
        %v4965 = vpop.permute.xlu0 %4964
        %v4966 = vsel %vm545, %v4965, 0
        %4968 = vmatprep.subr.mxu0 0.0
        %4969 = vmatpush1.msra.mxu0 0.0
        %4970 = vmatprep.subr.mxu0 0.0
        %4971 = vmatpush1.msra.mxu0 0.0
        %4972 = vmatprep.subr.mxu0 0.0
        %4973 = vmatpush1.msra.mxu0 0.0
        %4974 = vmatprep.subr.mxu0 0.0
        %4975 = vmatpush1.msra.mxu0 0.0
        %4976 = vmatprep.subr.mxu0 0.0
        %4977 = vmatpush1.msra.mxu0 0.0
        %4978 = vmatprep.subr.mxu0 0.0
        %4979 = vmatpush1.msra.mxu0 0.0
        %4980 = vmatprep.subr.mxu0 0.0
        %4981 = vmatpush1.msra.mxu0 0.0
        %4982 = vmatprep.subr.mxu0 0.0
        %4983 = vmatpush1.msra.mxu0 0.0
        %4984 = vmatprep.subr.mxu0 0.0
        %4985 = vmatpush1.msra.mxu0 0.0
        %4986 = vmatprep.subr.mxu0 0.0
        %4987 = vmatpush1.msra.mxu0 0.0
        %4988 = vmatprep.subr.mxu0 0.0
        %4989 = vmatpush1.msra.mxu0 0.0
        %4990 = vmatprep.subr.mxu0 0.0
        %4991 = vmatpush1.msra.mxu0 0.0
        %4992 = vmatprep.subr.mxu0 0.0
        %4993 = vmatpush1.msra.mxu0 0.0
        %4994 = vmatprep.subr.mxu0 0.0
        %4995 = vmatpush1.msra.mxu0 0.0
        %4996 = vmatprep.subr.mxu0 0.0
        %4997 = vmatpush1.msra.mxu0 %v543
        %4998 = vmatprep.subr.mxu0 0.0
        %4999 = vmatpush1.msra.mxu0 %v542
        %5000 = vmatprep.subr.mxu0 0.0
        %5001 = vmatpush2.msra.mxu0 0.0
        %5002 = vmatprep.subr.mxu0 0.0
        %5003 = vmatpush2.msra.mxu0 0.0
        %5004 = vmatprep.subr.mxu0 0.0
        %5005 = vmatpush2.msra.mxu0 0.0
        %5006 = vmatprep.subr.mxu0 0.0
        %5007 = vmatpush2.msra.mxu0 0.0
        %5008 = vmatprep.subr.mxu0 0.0
        %5009 = vmatpush2.msra.mxu0 0.0
        %5010 = vmatprep.subr.mxu0 0.0
        %5011 = vmatpush2.msra.mxu0 0.0
        %5012 = vmatprep.subr.mxu0 0.0
        %5013 = vmatpush2.msra.mxu0 0.0
        %5014 = vmatprep.subr.mxu0 0.0
        %5015 = vmatpush2.msra.mxu0 0.0
        %5016 = vmatprep.subr.mxu0 0.0
        %5017 = vmatpush2.msra.mxu0 0.0
        %5018 = vmatprep.subr.mxu0 0.0
        %5019 = vmatpush2.msra.mxu0 0.0
        %5020 = vmatprep.subr.mxu0 0.0
        %5021 = vmatpush2.msra.mxu0 0.0
        %5022 = vmatprep.subr.mxu0 0.0
        %5023 = vmatpush2.msra.mxu0 0.0
        %5024 = vmatprep.subr.mxu0 0.0
        %5025 = vmatpush2.msra.mxu0 0.0
        %5026 = vmatprep.subr.mxu0 0.0
        %5027 = vmatpush2.msra.mxu0 0.0
        %5028 = vmatprep.subr.mxu0 0.0
        %5029 = vmatpush2.msra.mxu0 0.0
        %5030 = vmatprep.subr.mxu0 0.0
        %5031 = vmatpush2.msra.mxu0 0.0
        %5032 = vmatprep.mubr.f32.mxu0 0.0
        %5033 = vmatmul.mubr.f32.gmra.mxu0 %v4966
        %v5034 = vpop.f32.mrf.mxu0
        %v5035 = vadd.f32 0.0, %v5034
        %v5036 = vpop.f32.mrf.mxu0
        %5037 = vdwg.mxu0
        %5038 = vrot.lane.b32.xlu0 %v461, 32
        %v5039 = vpop.permute.xlu0 %5038
        %v5040 = vsel %vm545, %v5039, 0
        %5042 = vmatprep.subr.mxu0 0.0
        %5043 = vmatpush1.msra.mxu0 0.0
        %5044 = vmatprep.subr.mxu0 0.0
        %5045 = vmatpush1.msra.mxu0 0.0
        %5046 = vmatprep.subr.mxu0 0.0
        %5047 = vmatpush1.msra.mxu0 0.0
        %5048 = vmatprep.subr.mxu0 0.0
        %5049 = vmatpush1.msra.mxu0 0.0
        %5050 = vmatprep.subr.mxu0 0.0
        %5051 = vmatpush1.msra.mxu0 0.0
        %5052 = vmatprep.subr.mxu0 0.0
        %5053 = vmatpush1.msra.mxu0 0.0
        %5054 = vmatprep.subr.mxu0 0.0
        %5055 = vmatpush1.msra.mxu0 0.0
        %5056 = vmatprep.subr.mxu0 0.0
        %5057 = vmatpush1.msra.mxu0 0.0
        %5058 = vmatprep.subr.mxu0 0.0
        %5059 = vmatpush1.msra.mxu0 0.0
        %5060 = vmatprep.subr.mxu0 0.0
        %5061 = vmatpush1.msra.mxu0 0.0
        %5062 = vmatprep.subr.mxu0 0.0
        %5063 = vmatpush1.msra.mxu0 0.0
        %5064 = vmatprep.subr.mxu0 0.0
        %5065 = vmatpush1.msra.mxu0 0.0
        %5066 = vmatprep.subr.mxu0 0.0
        %5067 = vmatpush1.msra.mxu0 0.0
        %5068 = vmatprep.subr.mxu0 0.0
        %5069 = vmatpush1.msra.mxu0 0.0
        %5070 = vmatprep.subr.mxu0 0.0
        %5071 = vmatpush1.msra.mxu0 %v540
        %5072 = vmatprep.subr.mxu0 0.0
        %5073 = vmatpush1.msra.mxu0 %v539
        %5074 = vmatprep.subr.mxu0 0.0
        %5075 = vmatpush2.msra.mxu0 0.0
        %5076 = vmatprep.subr.mxu0 0.0
        %5077 = vmatpush2.msra.mxu0 0.0
        %5078 = vmatprep.subr.mxu0 0.0
        %5079 = vmatpush2.msra.mxu0 0.0
        %5080 = vmatprep.subr.mxu0 0.0
        %5081 = vmatpush2.msra.mxu0 0.0
        %5082 = vmatprep.subr.mxu0 0.0
        %5083 = vmatpush2.msra.mxu0 0.0
        %5084 = vmatprep.subr.mxu0 0.0
        %5085 = vmatpush2.msra.mxu0 0.0
        %5086 = vmatprep.subr.mxu0 0.0
        %5087 = vmatpush2.msra.mxu0 0.0
        %5088 = vmatprep.subr.mxu0 0.0
        %5089 = vmatpush2.msra.mxu0 0.0
        %5090 = vmatprep.subr.mxu0 0.0
        %5091 = vmatpush2.msra.mxu0 0.0
        %5092 = vmatprep.subr.mxu0 0.0
        %5093 = vmatpush2.msra.mxu0 0.0
        %5094 = vmatprep.subr.mxu0 0.0
        %5095 = vmatpush2.msra.mxu0 0.0
        %5096 = vmatprep.subr.mxu0 0.0
        %5097 = vmatpush2.msra.mxu0 0.0
        %5098 = vmatprep.subr.mxu0 0.0
        %5099 = vmatpush2.msra.mxu0 0.0
        %5100 = vmatprep.subr.mxu0 0.0
        %5101 = vmatpush2.msra.mxu0 0.0
        %5102 = vmatprep.subr.mxu0 0.0
        %5103 = vmatpush2.msra.mxu0 0.0
        %5104 = vmatprep.subr.mxu0 0.0
        %5105 = vmatpush2.msra.mxu0 0.0
        %5106 = vmatprep.mubr.f32.mxu0 0.0
        %5107 = vmatmul.mubr.f32.gmra.mxu0 %v5040
        %v5108 = vpop.f32.mrf.mxu0
        %v5109 = vadd.f32 %v5035, %v5108
        %v5110 = vpop.f32.mrf.mxu0
        %5111 = vdwg.mxu0
        %5113 = vrot.lane.b32.xlu0 %v5109, 32
        %v5114 = vpop.permute.xlu0 %5113
        %v5116 = vsel %vm842, %v4961, %v5114
        %v5117 = vadd.f32 %v5116, %v847
        %5118 = vst.msk [vmem:[%s215 + $0x38] sm:$0xff] %vm850, %v5117
        %5119 = vrot.lane.b32.xlu0 %v385, 16
        %v5120 = vpop.permute.xlu0 %5119
        %v5121 = vsel %vm545, %v5120, 0
        %5123 = vmatprep.subr.mxu0 0.0
        %5124 = vmatpush1.msra.mxu0 0.0
        %5125 = vmatprep.subr.mxu0 0.0
        %5126 = vmatpush1.msra.mxu0 0.0
        %5127 = vmatprep.subr.mxu0 0.0
        %5128 = vmatpush1.msra.mxu0 0.0
        %5129 = vmatprep.subr.mxu0 0.0
        %5130 = vmatpush1.msra.mxu0 0.0
        %5131 = vmatprep.subr.mxu0 0.0
        %5132 = vmatpush1.msra.mxu0 0.0
        %5133 = vmatprep.subr.mxu0 0.0
        %5134 = vmatpush1.msra.mxu0 0.0
        %5135 = vmatprep.subr.mxu0 0.0
        %5136 = vmatpush1.msra.mxu0 0.0
        %5137 = vmatprep.subr.mxu0 0.0
        %5138 = vmatpush1.msra.mxu0 0.0
        %5139 = vmatprep.subr.mxu0 0.0
        %5140 = vmatpush1.msra.mxu0 0.0
        %5141 = vmatprep.subr.mxu0 0.0
        %5142 = vmatpush1.msra.mxu0 0.0
        %5143 = vmatprep.subr.mxu0 0.0
        %5144 = vmatpush1.msra.mxu0 0.0
        %5145 = vmatprep.subr.mxu0 0.0
        %5146 = vmatpush1.msra.mxu0 0.0
        %5147 = vmatprep.subr.mxu0 0.0
        %5148 = vmatpush1.msra.mxu0 0.0
        %5149 = vmatprep.subr.mxu0 0.0
        %5150 = vmatpush1.msra.mxu0 0.0
        %5151 = vmatprep.subr.mxu0 0.0
        %5152 = vmatpush1.msra.mxu0 %v543
        %5153 = vmatprep.subr.mxu0 0.0
        %5154 = vmatpush1.msra.mxu0 %v542
        %5155 = vmatprep.subr.mxu0 0.0
        %5156 = vmatpush2.msra.mxu0 0.0
        %5157 = vmatprep.subr.mxu0 0.0
        %5158 = vmatpush2.msra.mxu0 0.0
        %5159 = vmatprep.subr.mxu0 0.0
        %5160 = vmatpush2.msra.mxu0 0.0
        %5161 = vmatprep.subr.mxu0 0.0
        %5162 = vmatpush2.msra.mxu0 0.0
        %5163 = vmatprep.subr.mxu0 0.0
        %5164 = vmatpush2.msra.mxu0 0.0
        %5165 = vmatprep.subr.mxu0 0.0
        %5166 = vmatpush2.msra.mxu0 0.0
        %5167 = vmatprep.subr.mxu0 0.0
        %5168 = vmatpush2.msra.mxu0 0.0
        %5169 = vmatprep.subr.mxu0 0.0
        %5170 = vmatpush2.msra.mxu0 0.0
        %5171 = vmatprep.subr.mxu0 0.0
        %5172 = vmatpush2.msra.mxu0 0.0
        %5173 = vmatprep.subr.mxu0 0.0
        %5174 = vmatpush2.msra.mxu0 0.0
        %5175 = vmatprep.subr.mxu0 0.0
        %5176 = vmatpush2.msra.mxu0 0.0
        %5177 = vmatprep.subr.mxu0 0.0
        %5178 = vmatpush2.msra.mxu0 0.0
        %5179 = vmatprep.subr.mxu0 0.0
        %5180 = vmatpush2.msra.mxu0 0.0
        %5181 = vmatprep.subr.mxu0 0.0
        %5182 = vmatpush2.msra.mxu0 0.0
        %5183 = vmatprep.subr.mxu0 0.0
        %5184 = vmatpush2.msra.mxu0 0.0
        %5185 = vmatprep.subr.mxu0 0.0
        %5186 = vmatpush2.msra.mxu0 0.0
        %5187 = vmatprep.mubr.f32.mxu0 0.0
        %5188 = vmatmul.mubr.f32.gmra.mxu0 %v5121
        %v5189 = vpop.f32.mrf.mxu0
        %v5190 = vadd.f32 0.0, %v5189
        %v5191 = vpop.f32.mrf.mxu0
        %5192 = vdwg.mxu0
        %5193 = vrot.lane.b32.xlu0 %v309, 16
        %v5194 = vpop.permute.xlu0 %5193
        %v5195 = vsel %vm545, %v5194, 0
        %5197 = vmatprep.subr.mxu0 0.0
        %5198 = vmatpush1.msra.mxu0 0.0
        %5199 = vmatprep.subr.mxu0 0.0
        %5200 = vmatpush1.msra.mxu0 0.0
        %5201 = vmatprep.subr.mxu0 0.0
        %5202 = vmatpush1.msra.mxu0 0.0
        %5203 = vmatprep.subr.mxu0 0.0
        %5204 = vmatpush1.msra.mxu0 0.0
        %5205 = vmatprep.subr.mxu0 0.0
        %5206 = vmatpush1.msra.mxu0 0.0
        %5207 = vmatprep.subr.mxu0 0.0
        %5208 = vmatpush1.msra.mxu0 0.0
        %5209 = vmatprep.subr.mxu0 0.0
        %5210 = vmatpush1.msra.mxu0 0.0
        %5211 = vmatprep.subr.mxu0 0.0
        %5212 = vmatpush1.msra.mxu0 0.0
        %5213 = vmatprep.subr.mxu0 0.0
        %5214 = vmatpush1.msra.mxu0 0.0
        %5215 = vmatprep.subr.mxu0 0.0
        %5216 = vmatpush1.msra.mxu0 0.0
        %5217 = vmatprep.subr.mxu0 0.0
        %5218 = vmatpush1.msra.mxu0 0.0
        %5219 = vmatprep.subr.mxu0 0.0
        %5220 = vmatpush1.msra.mxu0 0.0
        %5221 = vmatprep.subr.mxu0 0.0
        %5222 = vmatpush1.msra.mxu0 0.0
        %5223 = vmatprep.subr.mxu0 0.0
        %5224 = vmatpush1.msra.mxu0 0.0
        %5225 = vmatprep.subr.mxu0 0.0
        %5226 = vmatpush1.msra.mxu0 %v540
        %5227 = vmatprep.subr.mxu0 0.0
        %5228 = vmatpush1.msra.mxu0 %v539
        %5229 = vmatprep.subr.mxu0 0.0
        %5230 = vmatpush2.msra.mxu0 0.0
        %5231 = vmatprep.subr.mxu0 0.0
        %5232 = vmatpush2.msra.mxu0 0.0
        %5233 = vmatprep.subr.mxu0 0.0
        %5234 = vmatpush2.msra.mxu0 0.0
        %5235 = vmatprep.subr.mxu0 0.0
        %5236 = vmatpush2.msra.mxu0 0.0
        %5237 = vmatprep.subr.mxu0 0.0
        %5238 = vmatpush2.msra.mxu0 0.0
        %5239 = vmatprep.subr.mxu0 0.0
        %5240 = vmatpush2.msra.mxu0 0.0
        %5241 = vmatprep.subr.mxu0 0.0
        %5242 = vmatpush2.msra.mxu0 0.0
        %5243 = vmatprep.subr.mxu0 0.0
        %5244 = vmatpush2.msra.mxu0 0.0
        %5245 = vmatprep.subr.mxu0 0.0
        %5246 = vmatpush2.msra.mxu0 0.0
        %5247 = vmatprep.subr.mxu0 0.0
        %5248 = vmatpush2.msra.mxu0 0.0
        %5249 = vmatprep.subr.mxu0 0.0
        %5250 = vmatpush2.msra.mxu0 0.0
        %5251 = vmatprep.subr.mxu0 0.0
        %5252 = vmatpush2.msra.mxu0 0.0
        %5253 = vmatprep.subr.mxu0 0.0
        %5254 = vmatpush2.msra.mxu0 0.0
        %5255 = vmatprep.subr.mxu0 0.0
        %5256 = vmatpush2.msra.mxu0 0.0
        %5257 = vmatprep.subr.mxu0 0.0
        %5258 = vmatpush2.msra.mxu0 0.0
        %5259 = vmatprep.subr.mxu0 0.0
        %5260 = vmatpush2.msra.mxu0 0.0
        %5261 = vmatprep.mubr.f32.mxu0 0.0
        %5262 = vmatmul.mubr.f32.gmra.mxu0 %v5195
        %v5263 = vpop.f32.mrf.mxu0
        %v5264 = vadd.f32 %v5190, %v5263
        %v5265 = vpop.f32.mrf.mxu0
        %5266 = vdwg.mxu0
        %5267 = vrot.lane.b32.xlu0 %v537, 16
        %v5268 = vpop.permute.xlu0 %5267
        %v5269 = vsel %vm545, %v5268, 0
        %5271 = vmatprep.subr.mxu0 0.0
        %5272 = vmatpush1.msra.mxu0 0.0
        %5273 = vmatprep.subr.mxu0 0.0
        %5274 = vmatpush1.msra.mxu0 0.0
        %5275 = vmatprep.subr.mxu0 0.0
        %5276 = vmatpush1.msra.mxu0 0.0
        %5277 = vmatprep.subr.mxu0 0.0
        %5278 = vmatpush1.msra.mxu0 0.0
        %5279 = vmatprep.subr.mxu0 0.0
        %5280 = vmatpush1.msra.mxu0 0.0
        %5281 = vmatprep.subr.mxu0 0.0
        %5282 = vmatpush1.msra.mxu0 0.0
        %5283 = vmatprep.subr.mxu0 0.0
        %5284 = vmatpush1.msra.mxu0 0.0
        %5285 = vmatprep.subr.mxu0 0.0
        %5286 = vmatpush1.msra.mxu0 0.0
        %5287 = vmatprep.subr.mxu0 0.0
        %5288 = vmatpush1.msra.mxu0 0.0
        %5289 = vmatprep.subr.mxu0 0.0
        %5290 = vmatpush1.msra.mxu0 0.0
        %5291 = vmatprep.subr.mxu0 0.0
        %5292 = vmatpush1.msra.mxu0 0.0
        %5293 = vmatprep.subr.mxu0 0.0
        %5294 = vmatpush1.msra.mxu0 0.0
        %5295 = vmatprep.subr.mxu0 0.0
        %5296 = vmatpush1.msra.mxu0 0.0
        %5297 = vmatprep.subr.mxu0 0.0
        %5298 = vmatpush1.msra.mxu0 0.0
        %5299 = vmatprep.subr.mxu0 0.0
        %5300 = vmatpush1.msra.mxu0 %v543
        %5301 = vmatprep.subr.mxu0 0.0
        %5302 = vmatpush1.msra.mxu0 %v542
        %5303 = vmatprep.subr.mxu0 0.0
        %5304 = vmatpush2.msra.mxu0 0.0
        %5305 = vmatprep.subr.mxu0 0.0
        %5306 = vmatpush2.msra.mxu0 0.0
        %5307 = vmatprep.subr.mxu0 0.0
        %5308 = vmatpush2.msra.mxu0 0.0
        %5309 = vmatprep.subr.mxu0 0.0
        %5310 = vmatpush2.msra.mxu0 0.0
        %5311 = vmatprep.subr.mxu0 0.0
        %5312 = vmatpush2.msra.mxu0 0.0
        %5313 = vmatprep.subr.mxu0 0.0
        %5314 = vmatpush2.msra.mxu0 0.0
        %5315 = vmatprep.subr.mxu0 0.0
        %5316 = vmatpush2.msra.mxu0 0.0
        %5317 = vmatprep.subr.mxu0 0.0
        %5318 = vmatpush2.msra.mxu0 0.0
        %5319 = vmatprep.subr.mxu0 0.0
        %5320 = vmatpush2.msra.mxu0 0.0
        %5321 = vmatprep.subr.mxu0 0.0
        %5322 = vmatpush2.msra.mxu0 0.0
        %5323 = vmatprep.subr.mxu0 0.0
        %5324 = vmatpush2.msra.mxu0 0.0
        %5325 = vmatprep.subr.mxu0 0.0
        %5326 = vmatpush2.msra.mxu0 0.0
        %5327 = vmatprep.subr.mxu0 0.0
        %5328 = vmatpush2.msra.mxu0 0.0
        %5329 = vmatprep.subr.mxu0 0.0
        %5330 = vmatpush2.msra.mxu0 0.0
        %5331 = vmatprep.subr.mxu0 0.0
        %5332 = vmatpush2.msra.mxu0 0.0
        %5333 = vmatprep.subr.mxu0 0.0
        %5334 = vmatpush2.msra.mxu0 0.0
        %5335 = vmatprep.mubr.f32.mxu0 0.0
        %5336 = vmatmul.mubr.f32.gmra.mxu0 %v5269
        %v5337 = vpop.f32.mrf.mxu0
        %v5338 = vadd.f32 0.0, %v5337
        %v5339 = vpop.f32.mrf.mxu0
        %5340 = vdwg.mxu0
        %5341 = vrot.lane.b32.xlu0 %v461, 16
        %v5342 = vpop.permute.xlu0 %5341
        %v5343 = vsel %vm545, %v5342, 0
        %5345 = vmatprep.subr.mxu0 0.0
        %5346 = vmatpush1.msra.mxu0 0.0
        %5347 = vmatprep.subr.mxu0 0.0
        %5348 = vmatpush1.msra.mxu0 0.0
        %5349 = vmatprep.subr.mxu0 0.0
        %5350 = vmatpush1.msra.mxu0 0.0
        %5351 = vmatprep.subr.mxu0 0.0
        %5352 = vmatpush1.msra.mxu0 0.0
        %5353 = vmatprep.subr.mxu0 0.0
        %5354 = vmatpush1.msra.mxu0 0.0
        %5355 = vmatprep.subr.mxu0 0.0
        %5356 = vmatpush1.msra.mxu0 0.0
        %5357 = vmatprep.subr.mxu0 0.0
        %5358 = vmatpush1.msra.mxu0 0.0
        %5359 = vmatprep.subr.mxu0 0.0
        %5360 = vmatpush1.msra.mxu0 0.0
        %5361 = vmatprep.subr.mxu0 0.0
        %5362 = vmatpush1.msra.mxu0 0.0
        %5363 = vmatprep.subr.mxu0 0.0
        %5364 = vmatpush1.msra.mxu0 0.0
        %5365 = vmatprep.subr.mxu0 0.0
        %5366 = vmatpush1.msra.mxu0 0.0
        %5367 = vmatprep.subr.mxu0 0.0
        %5368 = vmatpush1.msra.mxu0 0.0
        %5369 = vmatprep.subr.mxu0 0.0
        %5370 = vmatpush1.msra.mxu0 0.0
        %5371 = vmatprep.subr.mxu0 0.0
        %5372 = vmatpush1.msra.mxu0 0.0
        %5373 = vmatprep.subr.mxu0 0.0
        %5374 = vmatpush1.msra.mxu0 %v540
        %5375 = vmatprep.subr.mxu0 0.0
        %5376 = vmatpush1.msra.mxu0 %v539
        %5377 = vmatprep.subr.mxu0 0.0
        %5378 = vmatpush2.msra.mxu0 0.0
        %5379 = vmatprep.subr.mxu0 0.0
        %5380 = vmatpush2.msra.mxu0 0.0
        %5381 = vmatprep.subr.mxu0 0.0
        %5382 = vmatpush2.msra.mxu0 0.0
        %5383 = vmatprep.subr.mxu0 0.0
        %5384 = vmatpush2.msra.mxu0 0.0
        %5385 = vmatprep.subr.mxu0 0.0
        %5386 = vmatpush2.msra.mxu0 0.0
        %5387 = vmatprep.subr.mxu0 0.0
        %5388 = vmatpush2.msra.mxu0 0.0
        %5389 = vmatprep.subr.mxu0 0.0
        %5390 = vmatpush2.msra.mxu0 0.0
        %5391 = vmatprep.subr.mxu0 0.0
        %5392 = vmatpush2.msra.mxu0 0.0
        %5393 = vmatprep.subr.mxu0 0.0
        %5394 = vmatpush2.msra.mxu0 0.0
        %5395 = vmatprep.subr.mxu0 0.0
        %5396 = vmatpush2.msra.mxu0 0.0
        %5397 = vmatprep.subr.mxu0 0.0
        %5398 = vmatpush2.msra.mxu0 0.0
        %5399 = vmatprep.subr.mxu0 0.0
        %5400 = vmatpush2.msra.mxu0 0.0
        %5401 = vmatprep.subr.mxu0 0.0
        %5402 = vmatpush2.msra.mxu0 0.0
        %5403 = vmatprep.subr.mxu0 0.0
        %5404 = vmatpush2.msra.mxu0 0.0
        %5405 = vmatprep.subr.mxu0 0.0
        %5406 = vmatpush2.msra.mxu0 0.0
        %5407 = vmatprep.subr.mxu0 0.0
        %5408 = vmatpush2.msra.mxu0 0.0
        %5409 = vmatprep.mubr.f32.mxu0 0.0
        %5410 = vmatmul.mubr.f32.gmra.mxu0 %v5343
        %v5411 = vpop.f32.mrf.mxu0
        %v5412 = vadd.f32 %v5338, %v5411
        %v5413 = vpop.f32.mrf.mxu0
        %5414 = vdwg.mxu0
        %5416 = vrot.lane.b32.xlu0 %v5412, 32
        %v5417 = vpop.permute.xlu0 %5416
        %v5419 = vsel %vm842, %v5264, %v5417
        %v5420 = vadd.f32 %v5419, %v847
        %5422 = vrot.lane.b32.xlu0 %v5420, 64
        %v5423 = vpop.permute.xlu0 %5422
        %5425 = vst.msk [vmem:[%s215 + $0x38] sm:$0xff] %vm1158, %v5423
        %s5426 = sand.u32 %s131, 1
        %s5427 = scalar_lea.sflag [#allocation3], %s5426
        %s5428 = sand.u32 %s131, 1
        %s5429 = smul.addr %s5428, 64
        %s5430 = scalar_lea.vmem [#allocation2], %s5429
        // Predicated region
        $region37: #{tpu_custom_call.1} parent=35 // pred_check
          %p5431 = pneg %p141
        $region38: #{tpu_custom_call.1} parent=35 // pred_check_branch
          %5433 = sbr.rel (%p5431) target = $region40
        $region39: #{tpu_custom_call.1} parent=35 // pred_region
          %s5434 = smul.u32 8, %s23
          %s5436 = ssub.s32 1024, 1024
          %5437 = vsyncadd %s5427, %s5436
          %s5438 = smul.addr %s22, 8
          %s5439 = sadd.s32 %s5434, %s5438
          %s5440 = smul.addr %s5439, 128
          %s5441 = scalar_lea.hbm %s4, %s5440
          %s5443 = sshll.u32 %s5430, 4
          %s5444 = int_to_ptr.vmem [resolvable:$true] %s5443
          %5446 = dma.vmem_to_hbm [thread:$0]  %s5444, 1024, %s5441, %s5427
        $region40: #{tpu_custom_call.1} parent=35 // pred_fallthru
          _
      $region36: #{tpu_custom_call.1} parent=5 // pred_fallthru
        _
      %p5447 = scmp.le.s32.totalorder 2, %s13
      // Predicated region
      $region41: #{tpu_custom_call.1} parent=5 // pred_check
        %p5448 = pneg %p5447
      $region42: #{tpu_custom_call.1} parent=5 // pred_check_branch
        %5450 = sbr.rel (%p5448) target = $region44
      $region43: #{tpu_custom_call.1} parent=5 // pred_region
        %s5451 = ssub.s32 %s13, 2
        // Predicated region
        $region45: #{tpu_custom_call.1} parent=43 // pred_check
          %p5452 = pneg %p147
        $region46: #{tpu_custom_call.1} parent=43 // pred_check_branch
          %5454 = sbr.rel (%p5452) target = $region48
        $region47: #{tpu_custom_call.1} parent=43 // pred_region
          %s5455 = sand.u32 %s132, 1
          %s5456 = scalar_lea.sflag [#allocation3], %s5455
          %s5457 = sand.u32 %s132, 1
          %s5458 = smul.addr %s5457, 64
          %s5459 = scalar_lea.vmem [#allocation2], %s5458
          %5460 = dma.done %s5456, 1024
        $region48: #{tpu_custom_call.1} parent=43 // pred_fallthru
          _
      $region44: #{tpu_custom_call.1} parent=5 // pred_fallthru
        _
    $region6: #{tpu_custom_call.1} parent=1 // loop_footer
      %s17 = sadd.s32 1, %s13
    $region7: #{tpu_custom_call.1} parent=1 // loop_footer_branch
      %12 = sbr.rel target = $region3
    $region8: #{tpu_custom_call.1} parent=1 // loop_exit
      _
    %5461 = vsyncpa [#allocation3], 1
    %s5462 = scalar_lea.sflag [#allocation3], 1
    %5463 = vsyncpa %s5462, 1

</llo_original>
